<compile_context>
chip_gen: v7x
topology: tpu7x:2x2x1
jax: 0.10.0
libtpu: 0.0.40
codegen_flags: <defaults>
</compile_context>

<pallas_src>
import functools

import jax
import jax.numpy as jnp
from jax.experimental import pallas as pl
from jax.experimental.pallas import tpu as pltpu

LANE = 128  # pad hidden/output feature dims to one full lane width


def _round_up(n, m):
    return ((n + m - 1) // m) * m


def _mlp_kernel(x_ref, w0_ref, wh_ref, wo_ref, b_ref, o_ref,
                *, n_layers: int, precision):
    """Fused MLP forward. All refs are full-array VMEM blocks.

    h = relu(x @ W0 + b[0])
    for i in range(n_layers): h = relu(h @ Wh[i] + b[1+i])
    o = h @ Wo + b[n_layers+1]

    Weights may be bf16 (activations are cast to the weight dtype before each
    matmul); accumulation is always f32.  Intermediates stay in vregs and only
    the final lane-dense tile is stored.
    """
    w_dtype = w0_ref.dtype
    b = b_ref[...]                                    # (n_layers + 2, 128) f32, one load

    h = jnp.dot(x_ref[...].astype(w_dtype), w0_ref[...],
                precision=precision, preferred_element_type=jnp.float32)
    h = jnp.maximum(h + b[0:1, :], 0.0)
    for i in range(n_layers):                         # static unroll; n_layers is tiny (3)
        h = jnp.dot(h.astype(w_dtype), wh_ref[i],
                    precision=precision, preferred_element_type=jnp.float32)
        h = jnp.maximum(h + b[i + 1:i + 2, :], 0.0)
    y = jnp.dot(h.astype(w_dtype), wo_ref[...],
                precision=precision, preferred_element_type=jnp.float32)
    o_ref[...] = (y + b[n_layers + 1:n_layers + 2, :]).astype(o_ref.dtype)


def init_mlp_params(key, n_layers=3, hl_dim=10, in_dim=28 * 28, out_dim=10):
    """Deterministic init mimicking nn.Linear's U(-1/sqrt(fan_in), 1/sqrt(fan_in))."""
    dims = [in_dim] + [hl_dim] * (n_layers + 1) + [out_dim]
    params = []
    for i in range(len(dims) - 1):
        fan_in, fan_out = dims[i], dims[i + 1]
        key, kw, kb = jax.random.split(key, 3)
        bound = 1.0 / (fan_in ** 0.5)
        w = jax.random.uniform(kw, (fan_in, fan_out), jnp.float32, -bound, bound)
        b = jax.random.uniform(kb, (1, fan_out), jnp.float32, -bound, bound)
        params.append((w, b))
    return params


def pack_params(params, n_layers, *, weights_dtype=jnp.bfloat16):
    """Pad feature dims to 128 lanes, pad K to a multiple of 128, stack hidden
    weights and pack ALL biases into one (n_layers+2, 128) f32 tile.
    Done ONCE, outside the per-call hot path.  Zero padding is exact."""
    w0, _ = params[0]
    hidden = params[1:1 + n_layers]
    wo, _ = params[-1]

    in_dim, hl_dim = w0.shape
    out_dim = wo.shape[1]
    if hl_dim > LANE or out_dim > LANE:
        raise ValueError(f"hl_dim/out_dim must be <= {LANE}; got {hl_dim}/{out_dim}")
    k_pad = _round_up(in_dim, LANE)                                  # 784 -> 896

    w0p = jnp.pad(w0, ((0, k_pad - in_dim), (0, LANE - hl_dim)))     # (896, 128)
    whp = jnp.stack([
        jnp.pad(w, ((0, LANE - hl_dim), (0, LANE - hl_dim)))
        for (w, _) in hidden
    ])                                                               # (n_layers, 128, 128)
    wop = jnp.pad(wo, ((0, LANE - hl_dim), (0, LANE - out_dim)))     # (128, 128)

    biases = [params[0][1]] + [b for (_, b) in hidden] + [params[-1][1]]
    bp = jnp.stack([jnp.pad(b.reshape(-1), (0, LANE - b.size)) for b in biases])
    bp = bp.astype(jnp.float32)                                      # (n_layers+2, 128)

    return (w0p.astype(weights_dtype), whp.astype(weights_dtype),
            wop.astype(weights_dtype), bp)


def model_nn_forward(x, packed_params, *, n_layers, out_dim,
                     precision=jax.lax.Precision.DEFAULT):
    """Single fused pallas_call for the whole MLP; slices padded logits back."""
    w0, wh, wo, b = packed_params
    batch, in_dim = x.shape
    k_pad = w0.shape[0]
    xp = jnp.pad(x, ((0, 0), (0, k_pad - in_dim)))   # lane-dense K (zero pad, exact)
    y = pl.pallas_call(
        functools.partial(_mlp_kernel, n_layers=n_layers, precision=precision),
        out_shape=jax.ShapeDtypeStruct((batch, LANE), jnp.float32),
        in_specs=[pl.BlockSpec(memory_space=pltpu.MemorySpace.VMEM)] * 5,
        out_specs=pl.BlockSpec(memory_space=pltpu.MemorySpace.VMEM),
    )(xp, w0, wh, wo, b)
    return y[:, :out_dim]


if __name__ == "__main__":
    key = jax.random.PRNGKey(0)
    k_in, k_params = jax.random.split(key)

    # Module defaults: n_layers=3, hl_dim=10, in_dim=784, out_dim=10.
    batch, in_dim, hl_dim, out_dim, n_layers = 8, 28 * 28, 10, 10, 3

    x = jax.random.normal(k_in, (batch, in_dim), jnp.float32)
    params = init_mlp_params(k_params, n_layers=n_layers, hl_dim=hl_dim,
                             in_dim=in_dim, out_dim=out_dim)

    # Reference in plain JAX on the ORIGINAL (unpadded, f32) params.
    ref = x
    for i, (w, b) in enumerate(params):
        ref = ref @ w + b
        if i < len(params) - 1:
            ref = jnp.maximum(ref, 0.0)

    # 1) Exact path: f32 weights + explicit Precision.HIGHEST -> 1e-5 contract.
    packed_f32 = pack_params(params, n_layers, weights_dtype=jnp.float32)
    fwd_f32 = jax.jit(functools.partial(
        model_nn_forward, n_layers=n_layers, out_dim=out_dim,
        precision=jax.lax.Precision.HIGHEST))
    out_f32 = jax.block_until_ready(fwd_f32(x, packed_f32))
    assert out_f32.shape == (batch, out_dim)
    assert jnp.allclose(out_f32, ref, atol=1e-5, rtol=1e-5)

    # 2) Fast path: bf16 weights (halved HBM bytes, single-pass MXU), f32 accum.
    packed_bf16 = pack_params(params, n_layers, weights_dtype=jnp.bfloat16)
    fwd_bf16 = jax.jit(functools.partial(
        model_nn_forward, n_layers=n_layers, out_dim=out_dim,
        precision=jax.lax.Precision.DEFAULT))
    out_bf16 = jax.block_until_ready(fwd_bf16(x, packed_bf16))
    assert out_bf16.shape == (batch, out_dim)
    assert jnp.allclose(out_bf16, ref, atol=5e-2, rtol=5e-2)

    print("KERNEL_OK")
</pallas_src>

<mosaic_0001>
module attributes {stable_mosaic.version = 11 : i64} {
  func.func @_mlp_kernel(%arg0: memref<8x896xf32, #tpu.memory_space<vmem>>, %arg1: memref<896x128xf32, #tpu.memory_space<vmem>>, %arg2: memref<3x128x128xf32, #tpu.memory_space<vmem>>, %arg3: memref<128x128xf32, #tpu.memory_space<vmem>>, %arg4: memref<5x128xf32, #tpu.memory_space<vmem>>, %arg5: memref<8x128xf32, #tpu.memory_space<vmem>>) attributes {dimension_semantics = [], scalar_prefetch = 0 : i64, scratch_operands = 0 : i64, tpu.core_type = #tpu.core_type<tc>} {
    %c0 = arith.constant 0 : index
    %c0_0 = arith.constant 0 : index
    %0 = vector.load %arg4[%c0, %c0_0] : memref<5x128xf32, #tpu.memory_space<vmem>>, vector<5x128xf32>
    %c0_1 = arith.constant 0 : index
    %c0_2 = arith.constant 0 : index
    %1 = vector.load %arg0[%c0_1, %c0_2] : memref<8x896xf32, #tpu.memory_space<vmem>>, vector<8x896xf32>
    %c0_3 = arith.constant 0 : index
    %c0_4 = arith.constant 0 : index
    %2 = vector.load %arg1[%c0_3, %c0_4] : memref<896x128xf32, #tpu.memory_space<vmem>>, vector<896x128xf32>
    %cst = arith.constant dense<0.000000e+00> : vector<8x128xf32>
    %3 = tpu.matmul %1, %2, %cst {dimension_numbers = #tpu.dot_dimension_numbers<[1], [0], [0], [1], [0, 0, 1, 1], [], []>, precision = #tpu.contract_precision<fp32>} : vector<8x896xf32>, vector<896x128xf32>, vector<8x128xf32> -> vector<8x128xf32>
    %4 = vector.extract_strided_slice %0 {offsets = [0, 0], sizes = [1, 128], strides = [1, 1]} : vector<5x128xf32> to vector<1x128xf32>
    %5 = vector.broadcast %4 : vector<1x128xf32> to vector<8x128xf32>
    %6 = arith.addf %3, %5 : vector<8x128xf32>
    %cst_5 = arith.constant 0.000000e+00 : f32
    %7 = vector.broadcast %cst_5 : f32 to vector<8x128xf32>
    %8 = arith.maximumf %6, %7 : vector<8x128xf32>
    %c0_6 = arith.constant 0 : index
    %c0_7 = arith.constant 0 : index
    %c0_8 = arith.constant 0 : index
    %9 = vector.load %arg2[%c0_6, %c0_7, %c0_8] : memref<3x128x128xf32, #tpu.memory_space<vmem>>, vector<1x128x128xf32>
    %10 = vector.shape_cast %9 : vector<1x128x128xf32> to vector<128x128xf32>
    %cst_9 = arith.constant dense<0.000000e+00> : vector<8x128xf32>
    %11 = tpu.matmul %8, %10, %cst_9 {dimension_numbers = #tpu.dot_dimension_numbers<[1], [0], [0], [1], [0, 0, 1, 1], [], []>, precision = #tpu.contract_precision<fp32>} : vector<8x128xf32>, vector<128x128xf32>, vector<8x128xf32> -> vector<8x128xf32>
    %12 = vector.extract_strided_slice %0 {offsets = [1, 0], sizes = [1, 128], strides = [1, 1]} : vector<5x128xf32> to vector<1x128xf32>
    %13 = vector.broadcast %12 : vector<1x128xf32> to vector<8x128xf32>
    %14 = arith.addf %11, %13 : vector<8x128xf32>
    %cst_10 = arith.constant 0.000000e+00 : f32
    %15 = vector.broadcast %cst_10 : f32 to vector<8x128xf32>
    %16 = arith.maximumf %14, %15 : vector<8x128xf32>
    %c1 = arith.constant 1 : index
    %c0_11 = arith.constant 0 : index
    %c0_12 = arith.constant 0 : index
    %17 = vector.load %arg2[%c1, %c0_11, %c0_12] : memref<3x128x128xf32, #tpu.memory_space<vmem>>, vector<1x128x128xf32>
    %18 = vector.shape_cast %17 : vector<1x128x128xf32> to vector<128x128xf32>
    %cst_13 = arith.constant dense<0.000000e+00> : vector<8x128xf32>
    %19 = tpu.matmul %16, %18, %cst_13 {dimension_numbers = #tpu.dot_dimension_numbers<[1], [0], [0], [1], [0, 0, 1, 1], [], []>, precision = #tpu.contract_precision<fp32>} : vector<8x128xf32>, vector<128x128xf32>, vector<8x128xf32> -> vector<8x128xf32>
    %20 = vector.extract_strided_slice %0 {offsets = [2, 0], sizes = [1, 128], strides = [1, 1]} : vector<5x128xf32> to vector<1x128xf32>
    %21 = vector.broadcast %20 : vector<1x128xf32> to vector<8x128xf32>
    %22 = arith.addf %19, %21 : vector<8x128xf32>
    %cst_14 = arith.constant 0.000000e+00 : f32
    %23 = vector.broadcast %cst_14 : f32 to vector<8x128xf32>
    %24 = arith.maximumf %22, %23 : vector<8x128xf32>
    %c2 = arith.constant 2 : index
    %c0_15 = arith.constant 0 : index
    %c0_16 = arith.constant 0 : index
    %25 = vector.load %arg2[%c2, %c0_15, %c0_16] : memref<3x128x128xf32, #tpu.memory_space<vmem>>, vector<1x128x128xf32>
    %26 = vector.shape_cast %25 : vector<1x128x128xf32> to vector<128x128xf32>
    %cst_17 = arith.constant dense<0.000000e+00> : vector<8x128xf32>
    %27 = tpu.matmul %24, %26, %cst_17 {dimension_numbers = #tpu.dot_dimension_numbers<[1], [0], [0], [1], [0, 0, 1, 1], [], []>, precision = #tpu.contract_precision<fp32>} : vector<8x128xf32>, vector<128x128xf32>, vector<8x128xf32> -> vector<8x128xf32>
    %28 = vector.extract_strided_slice %0 {offsets = [3, 0], sizes = [1, 128], strides = [1, 1]} : vector<5x128xf32> to vector<1x128xf32>
    %29 = vector.broadcast %28 : vector<1x128xf32> to vector<8x128xf32>
    %30 = arith.addf %27, %29 : vector<8x128xf32>
    %cst_18 = arith.constant 0.000000e+00 : f32
    %31 = vector.broadcast %cst_18 : f32 to vector<8x128xf32>
    %32 = arith.maximumf %30, %31 : vector<8x128xf32>
    %c0_19 = arith.constant 0 : index
    %c0_20 = arith.constant 0 : index
    %33 = vector.load %arg3[%c0_19, %c0_20] : memref<128x128xf32, #tpu.memory_space<vmem>>, vector<128x128xf32>
    %cst_21 = arith.constant dense<0.000000e+00> : vector<8x128xf32>
    %34 = tpu.matmul %32, %33, %cst_21 {dimension_numbers = #tpu.dot_dimension_numbers<[1], [0], [0], [1], [0, 0, 1, 1], [], []>, precision = #tpu.contract_precision<fp32>} : vector<8x128xf32>, vector<128x128xf32>, vector<8x128xf32> -> vector<8x128xf32>
    %35 = vector.extract_strided_slice %0 {offsets = [4, 0], sizes = [1, 128], strides = [1, 1]} : vector<5x128xf32> to vector<1x128xf32>
    %36 = vector.broadcast %35 : vector<1x128xf32> to vector<8x128xf32>
    %37 = arith.addf %34, %36 : vector<8x128xf32>
    %c0_22 = arith.constant 0 : index
    %c0_23 = arith.constant 0 : index
    %38 = vector.load %arg5[%c0_22, %c0_23] : memref<8x128xf32, #tpu.memory_space<vmem>>, vector<8x128xf32>
    tpu.vector_store %arg5[%c0_22, %c0_23], %37 {strides = array<i32>} : memref<8x128xf32, #tpu.memory_space<vmem>>, vector<8x128xf32>,
    return
  }
}

</mosaic_0001>

<llo_original>
// kernel: model_nn_forward.1
$region0: #{model_nn_forward.1}
  #allocation0 [shape = 'u32[]', space=smem, size = 0x4, offset = 0x4, fixed_abs, tag = 'smem constant byte address 0x4 - core index']
  #allocation1 [shape = 'u32[144,128]{1,0:T(1,128)}', space=vmem, size = 0x12000, scoped, tag = 'internal scratch']
  %s0 = inlined_call_operand.vmem [shape: f32[8,896], index: 0, kind: input, shape index: {}]
  %s1 = inlined_call_operand.hbm [shape: f32[896,128], index: 1, kind: input, shape index: {}]
  %s2 = inlined_call_operand.hbm [shape: f32[3,128,128], index: 2, kind: input, shape index: {}]
  %s3 = inlined_call_operand.hbm [shape: f32[128,128], index: 3, kind: input, shape index: {}]
  %s4 = inlined_call_operand.vmem [shape: f32[5,128], index: 4, kind: input, shape index: {}]
  %s5 = inlined_call_operand.hbm [shape: f32[8,128], index: 5, kind: output, shape index: {}]
  %s6 = sld [smem:[#allocation0]]
  $region42: #{model_nn_forward.1} parent=0
    _
  %s8 = ssub.s32 1, %s6
  %s9 = scalar_select 0, %s8, %s6
  $region1: #{model_nn_forward.1} parent=0
    #allocation2 [shape = 'u8[458752]{0}', space=vmem, size = 0x70000, scoped, tag = 'input window, operand 1, single buffered']
    #allocation3 [shape = 's32[1]{0}', space=sflag, size = 0x4, scoped, tag = 'scoped memory for model_nn_forward.1']
    #allocation4 [shape = 's32[1]{0}', space=sflag, size = 0x4, scoped, tag = 'scoped memory for model_nn_forward.1']
    #allocation5 [shape = 'u8[196608]{0}', space=vmem, size = 0x30000, scoped, tag = 'input window, operand 2, single buffered']
    #allocation6 [shape = 's32[1]{0}', space=sflag, size = 0x4, scoped, tag = 'scoped memory for model_nn_forward.1']
    #allocation7 [shape = 'u8[65536]{0}', space=vmem, size = 0x10000, scoped, tag = 'input window, operand 3, single buffered']
    #allocation8 [shape = 'u8[4096]{0}', space=vmem, size = 0x1000, scoped, tag = 'output window, operand 0, single buffered']
    %10 = vsyncpa [#allocation3], 0
    %11 = vsyncpa [#allocation6], 0
    %12 = vsyncpa [#allocation4], 0
    // Predicated region
    $region2: #{model_nn_forward.1} parent=1 // pred_check
      _
    $region3: #{model_nn_forward.1} parent=1 // pred_check_branch
      %14 = sbr.rel (0) target = $region5
    $region4: #{model_nn_forward.1} parent=1 // pred_region
      _
    $region5: #{model_nn_forward.1} parent=1 // pred_fallthru
      _
    // Predicated region
    $region6: #{model_nn_forward.1} parent=1 // pred_check
      _
    $region7: #{model_nn_forward.1} parent=1 // pred_check_branch
      %16 = sbr.rel (0) target = $region9
    $region8: #{model_nn_forward.1} parent=1 // pred_region
      %s18 = ssub.s32 14336, 14336
      %19 = vsyncadd [#allocation3], %s18
      %s20 = sshll.u32 [#allocation2], 4
      %s21 = int_to_ptr.vmem [resolvable:$true] %s20
      %26 = dma.hbm_to_vmem [thread:$0]  %s1, 14336, %s21, [#allocation3], 128, 128, 8
    $region9: #{model_nn_forward.1} parent=1 // pred_fallthru
      _
    // Predicated region
    $region10: #{model_nn_forward.1} parent=1 // pred_check
      _
    $region11: #{model_nn_forward.1} parent=1 // pred_check_branch
      %28 = sbr.rel (0) target = $region13
    $region12: #{model_nn_forward.1} parent=1 // pred_region
      %s30 = ssub.s32 6144, 6144
      %31 = vsyncadd [#allocation6], %s30
      %s32 = sshll.u32 [#allocation5], 4
      %s33 = int_to_ptr.vmem [resolvable:$true] %s32
      %38 = dma.hbm_to_vmem [thread:$0]  %s2, 6144, %s33, [#allocation6], 128, 128, 8
    $region13: #{model_nn_forward.1} parent=1 // pred_fallthru
      _
    // Predicated region
    $region14: #{model_nn_forward.1} parent=1 // pred_check
      _
    $region15: #{model_nn_forward.1} parent=1 // pred_check_branch
      %40 = sbr.rel (0) target = $region17
    $region16: #{model_nn_forward.1} parent=1 // pred_region
      %s42 = ssub.s32 2048, 2048
      %43 = vsyncadd [#allocation6], %s42
      %s44 = sshll.u32 [#allocation7], 4
      %s45 = int_to_ptr.vmem [resolvable:$true] %s44
      %50 = dma.hbm_to_vmem [thread:$0]  %s3, 2048, %s45, [#allocation6], 128, 128, 8
    $region17: #{model_nn_forward.1} parent=1 // pred_fallthru
      _
    // Predicated region
    $region18: #{model_nn_forward.1} parent=1 // pred_check
      _
    $region19: #{model_nn_forward.1} parent=1 // pred_check_branch
      %52 = sbr.rel (0) target = $region21
    $region20: #{model_nn_forward.1} parent=1 // pred_region
      _
    $region21: #{model_nn_forward.1} parent=1 // pred_fallthru
      _
    // Predicated region
    $region22: #{model_nn_forward.1} parent=1 // pred_check
      _
    $region23: #{model_nn_forward.1} parent=1 // pred_check_branch
      %54 = sbr.rel (0) target = $region25
    $region24: #{model_nn_forward.1} parent=1 // pred_region
      %55 = dma.done [#allocation3], 14336
    $region25: #{model_nn_forward.1} parent=1 // pred_fallthru
      _
    // Predicated region
    $region26: #{model_nn_forward.1} parent=1 // pred_check
      _
    $region27: #{model_nn_forward.1} parent=1 // pred_check_branch
      %57 = sbr.rel (0) target = $region29
    $region28: #{model_nn_forward.1} parent=1 // pred_region
      %58 = dma.done [#allocation6], 6144
    $region29: #{model_nn_forward.1} parent=1 // pred_fallthru
      _
    // Predicated region
    $region30: #{model_nn_forward.1} parent=1 // pred_check
      _
    $region31: #{model_nn_forward.1} parent=1 // pred_check_branch
      %60 = sbr.rel (0) target = $region33
    $region32: #{model_nn_forward.1} parent=1 // pred_region
      %61 = dma.done [#allocation6], 2048
    $region33: #{model_nn_forward.1} parent=1 // pred_fallthru
      _
    %v62 = vld [vmem:[%s4] sm:$0x1f]
    %v63 = vld [vmem:[%s0] sm:$0xff]
    %v64 = vld [vmem:[%s0 + $0x8] sm:$0xff]
    %v65 = vld [vmem:[%s0 + $0x10] sm:$0xff]
    %v66 = vld [vmem:[%s0 + $0x18] sm:$0xff]
    %v67 = vld [vmem:[%s0 + $0x20] sm:$0xff]
    %v68 = vld [vmem:[%s0 + $0x28] sm:$0xff]
    %v69 = vld [vmem:[%s0 + $0x30] sm:$0xff]
    %v70 = vld [vmem:[#allocation2] sm:$0xff]
    %v71 = vld [vmem:[#allocation2 + $0x8] sm:$0xff]
    %v72 = vld [vmem:[#allocation2 + $0x10] sm:$0xff]
    %v73 = vld [vmem:[#allocation2 + $0x18] sm:$0xff]
    %v74 = vld [vmem:[#allocation2 + $0x20] sm:$0xff]
    %v75 = vld [vmem:[#allocation2 + $0x28] sm:$0xff]
    %v76 = vld [vmem:[#allocation2 + $0x30] sm:$0xff]
    %v77 = vld [vmem:[#allocation2 + $0x38] sm:$0xff]
    %v78 = vld [vmem:[#allocation2 + $0x40] sm:$0xff]
    %v79 = vld [vmem:[#allocation2 + $0x48] sm:$0xff]
    %v80 = vld [vmem:[#allocation2 + $0x50] sm:$0xff]
    %v81 = vld [vmem:[#allocation2 + $0x58] sm:$0xff]
    %v82 = vld [vmem:[#allocation2 + $0x60] sm:$0xff]
    %v83 = vld [vmem:[#allocation2 + $0x68] sm:$0xff]
    %v84 = vld [vmem:[#allocation2 + $0x70] sm:$0xff]
    %v85 = vld [vmem:[#allocation2 + $0x78] sm:$0xff]
    %v86 = vld [vmem:[#allocation2 + $0x80] sm:$0xff]
    %v87 = vld [vmem:[#allocation2 + $0x88] sm:$0xff]
    %v88 = vld [vmem:[#allocation2 + $0x90] sm:$0xff]
    %v89 = vld [vmem:[#allocation2 + $0x98] sm:$0xff]
    %v90 = vld [vmem:[#allocation2 + $0xa0] sm:$0xff]
    %v91 = vld [vmem:[#allocation2 + $0xa8] sm:$0xff]
    %v92 = vld [vmem:[#allocation2 + $0xb0] sm:$0xff]
    %v93 = vld [vmem:[#allocation2 + $0xb8] sm:$0xff]
    %v94 = vld [vmem:[#allocation2 + $0xc0] sm:$0xff]
    %v95 = vld [vmem:[#allocation2 + $0xc8] sm:$0xff]
    %v96 = vld [vmem:[#allocation2 + $0xd0] sm:$0xff]
    %v97 = vld [vmem:[#allocation2 + $0xd8] sm:$0xff]
    %v98 = vld [vmem:[#allocation2 + $0xe0] sm:$0xff]
    %v99 = vld [vmem:[#allocation2 + $0xe8] sm:$0xff]
    %v100 = vld [vmem:[#allocation2 + $0xf0] sm:$0xff]
    %v101 = vld [vmem:[#allocation2 + $0xf8] sm:$0xff]
    %v102 = vld [vmem:[#allocation2 + $0x100] sm:$0xff]
    %v103 = vld [vmem:[#allocation2 + $0x108] sm:$0xff]
    %v104 = vld [vmem:[#allocation2 + $0x110] sm:$0xff]
    %v105 = vld [vmem:[#allocation2 + $0x118] sm:$0xff]
    %v106 = vld [vmem:[#allocation2 + $0x120] sm:$0xff]
    %v107 = vld [vmem:[#allocation2 + $0x128] sm:$0xff]
    %v108 = vld [vmem:[#allocation2 + $0x130] sm:$0xff]
    %v109 = vld [vmem:[#allocation2 + $0x138] sm:$0xff]
    %v110 = vld [vmem:[#allocation2 + $0x140] sm:$0xff]
    %v111 = vld [vmem:[#allocation2 + $0x148] sm:$0xff]
    %v112 = vld [vmem:[#allocation2 + $0x150] sm:$0xff]
    %v113 = vld [vmem:[#allocation2 + $0x158] sm:$0xff]
    %v114 = vld [vmem:[#allocation2 + $0x160] sm:$0xff]
    %v115 = vld [vmem:[#allocation2 + $0x168] sm:$0xff]
    %v116 = vld [vmem:[#allocation2 + $0x170] sm:$0xff]
    %v117 = vld [vmem:[#allocation2 + $0x178] sm:$0xff]
    %v118 = vld [vmem:[#allocation2 + $0x180] sm:$0xff]
    %v119 = vld [vmem:[#allocation2 + $0x188] sm:$0xff]
    %v120 = vld [vmem:[#allocation2 + $0x190] sm:$0xff]
    %v121 = vld [vmem:[#allocation2 + $0x198] sm:$0xff]
    %v122 = vld [vmem:[#allocation2 + $0x1a0] sm:$0xff]
    %v123 = vld [vmem:[#allocation2 + $0x1a8] sm:$0xff]
    %v124 = vld [vmem:[#allocation2 + $0x1b0] sm:$0xff]
    %v125 = vld [vmem:[#allocation2 + $0x1b8] sm:$0xff]
    %v126 = vld [vmem:[#allocation2 + $0x1c0] sm:$0xff]
    %v127 = vld [vmem:[#allocation2 + $0x1c8] sm:$0xff]
    %v128 = vld [vmem:[#allocation2 + $0x1d0] sm:$0xff]
    %v129 = vld [vmem:[#allocation2 + $0x1d8] sm:$0xff]
    %v130 = vld [vmem:[#allocation2 + $0x1e0] sm:$0xff]
    %v131 = vld [vmem:[#allocation2 + $0x1e8] sm:$0xff]
    %v132 = vld [vmem:[#allocation2 + $0x1f0] sm:$0xff]
    %v133 = vld [vmem:[#allocation2 + $0x1f8] sm:$0xff]
    %v134 = vld [vmem:[#allocation2 + $0x200] sm:$0xff]
    %v135 = vld [vmem:[#allocation2 + $0x208] sm:$0xff]
    %v136 = vld [vmem:[#allocation2 + $0x210] sm:$0xff]
    %v137 = vld [vmem:[#allocation2 + $0x218] sm:$0xff]
    %v138 = vld [vmem:[#allocation2 + $0x220] sm:$0xff]
    %v139 = vld [vmem:[#allocation2 + $0x228] sm:$0xff]
    %v140 = vld [vmem:[#allocation2 + $0x230] sm:$0xff]
    %v141 = vld [vmem:[#allocation2 + $0x238] sm:$0xff]
    %v142 = vld [vmem:[#allocation2 + $0x240] sm:$0xff]
    %v143 = vld [vmem:[#allocation2 + $0x248] sm:$0xff]
    %v144 = vld [vmem:[#allocation2 + $0x250] sm:$0xff]
    %v145 = vld [vmem:[#allocation2 + $0x258] sm:$0xff]
    %v146 = vld [vmem:[#allocation2 + $0x260] sm:$0xff]
    %v147 = vld [vmem:[#allocation2 + $0x268] sm:$0xff]
    %v148 = vld [vmem:[#allocation2 + $0x270] sm:$0xff]
    %v149 = vld [vmem:[#allocation2 + $0x278] sm:$0xff]
    %v150 = vld [vmem:[#allocation2 + $0x280] sm:$0xff]
    %v151 = vld [vmem:[#allocation2 + $0x288] sm:$0xff]
    %v152 = vld [vmem:[#allocation2 + $0x290] sm:$0xff]
    %v153 = vld [vmem:[#allocation2 + $0x298] sm:$0xff]
    %v154 = vld [vmem:[#allocation2 + $0x2a0] sm:$0xff]
    %v155 = vld [vmem:[#allocation2 + $0x2a8] sm:$0xff]
    %v156 = vld [vmem:[#allocation2 + $0x2b0] sm:$0xff]
    %v157 = vld [vmem:[#allocation2 + $0x2b8] sm:$0xff]
    %v158 = vld [vmem:[#allocation2 + $0x2c0] sm:$0xff]
    %v159 = vld [vmem:[#allocation2 + $0x2c8] sm:$0xff]
    %v160 = vld [vmem:[#allocation2 + $0x2d0] sm:$0xff]
    %v161 = vld [vmem:[#allocation2 + $0x2d8] sm:$0xff]
    %v162 = vld [vmem:[#allocation2 + $0x2e0] sm:$0xff]
    %v163 = vld [vmem:[#allocation2 + $0x2e8] sm:$0xff]
    %v164 = vld [vmem:[#allocation2 + $0x2f0] sm:$0xff]
    %v165 = vld [vmem:[#allocation2 + $0x2f8] sm:$0xff]
    %v166 = vld [vmem:[#allocation2 + $0x300] sm:$0xff]
    %v167 = vld [vmem:[#allocation2 + $0x308] sm:$0xff]
    %v168 = vld [vmem:[#allocation2 + $0x310] sm:$0xff]
    %v169 = vld [vmem:[#allocation2 + $0x318] sm:$0xff]
    %v170 = vld [vmem:[#allocation2 + $0x320] sm:$0xff]
    %v171 = vld [vmem:[#allocation2 + $0x328] sm:$0xff]
    %v172 = vld [vmem:[#allocation2 + $0x330] sm:$0xff]
    %v173 = vld [vmem:[#allocation2 + $0x338] sm:$0xff]
    %v174 = vld [vmem:[#allocation2 + $0x340] sm:$0xff]
    %v175 = vld [vmem:[#allocation2 + $0x348] sm:$0xff]
    %v176 = vld [vmem:[#allocation2 + $0x350] sm:$0xff]
    %v177 = vld [vmem:[#allocation2 + $0x358] sm:$0xff]
    %v178 = vld [vmem:[#allocation2 + $0x360] sm:$0xff]
    %v179 = vld [vmem:[#allocation2 + $0x368] sm:$0xff]
    %v180 = vld [vmem:[#allocation2 + $0x370] sm:$0xff]
    %v181 = vld [vmem:[#allocation2 + $0x378] sm:$0xff]
    %v182 = vlaneseq
    %v183 = vshrl.u32 %v182, 7
    %v184 = vsub.s32 0, %v183
    %v185 = vrot.slane %v62, %v184
    %186 = vmatprep.subr.mxu0 0.0
    %v187 = vand.u32 %v70, 4294901760
    %188 = vmatpush1.msra.mxu0 %v187
    %189 = vmatprep.subr.mxu0 0.0
    %v190 = vand.u32 %v71, 4294901760
    %191 = vmatpush1.msra.mxu0 %v190
    %192 = vmatprep.subr.mxu0 0.0
    %v193 = vand.u32 %v72, 4294901760
    %194 = vmatpush1.msra.mxu0 %v193
    %195 = vmatprep.subr.mxu0 0.0
    %v196 = vand.u32 %v73, 4294901760
    %197 = vmatpush1.msra.mxu0 %v196
    %198 = vmatprep.subr.mxu0 0.0
    %v199 = vand.u32 %v74, 4294901760
    %200 = vmatpush1.msra.mxu0 %v199
    %201 = vmatprep.subr.mxu0 0.0
    %v202 = vand.u32 %v75, 4294901760
    %203 = vmatpush1.msra.mxu0 %v202
    %204 = vmatprep.subr.mxu0 0.0
    %v205 = vand.u32 %v76, 4294901760
    %206 = vmatpush1.msra.mxu0 %v205
    %207 = vmatprep.subr.mxu0 0.0
    %v208 = vand.u32 %v77, 4294901760
    %209 = vmatpush1.msra.mxu0 %v208
    %210 = vmatprep.subr.mxu0 0.0
    %v211 = vand.u32 %v78, 4294901760
    %212 = vmatpush1.msra.mxu0 %v211
    %213 = vmatprep.subr.mxu0 0.0
    %v214 = vand.u32 %v79, 4294901760
    %215 = vmatpush1.msra.mxu0 %v214
    %216 = vmatprep.subr.mxu0 0.0
    %v217 = vand.u32 %v80, 4294901760
    %218 = vmatpush1.msra.mxu0 %v217
    %219 = vmatprep.subr.mxu0 0.0
    %v220 = vand.u32 %v81, 4294901760
    %221 = vmatpush1.msra.mxu0 %v220
    %222 = vmatprep.subr.mxu0 0.0
    %v223 = vand.u32 %v82, 4294901760
    %224 = vmatpush1.msra.mxu0 %v223
    %225 = vmatprep.subr.mxu0 0.0
    %v226 = vand.u32 %v83, 4294901760
    %227 = vmatpush1.msra.mxu0 %v226
    %228 = vmatprep.subr.mxu0 0.0
    %v229 = vand.u32 %v84, 4294901760
    %230 = vmatpush1.msra.mxu0 %v229
    %231 = vmatprep.subr.mxu0 0.0
    %v232 = vand.u32 %v85, 4294901760
    %233 = vmatpush1.msra.mxu0 %v232
    %234 = vmatprep.subr.mxu0 0.0
    %v235 = vand.u32 %v86, 4294901760
    %236 = vmatpush1.msra.mxu0 %v235
    %237 = vmatprep.subr.mxu0 0.0
    %v238 = vand.u32 %v87, 4294901760
    %239 = vmatpush1.msra.mxu0 %v238
    %240 = vmatprep.subr.mxu0 0.0
    %v241 = vand.u32 %v88, 4294901760
    %242 = vmatpush1.msra.mxu0 %v241
    %243 = vmatprep.subr.mxu0 0.0
    %v244 = vand.u32 %v89, 4294901760
    %245 = vmatpush1.msra.mxu0 %v244
    %246 = vmatprep.subr.mxu0 0.0
    %v247 = vand.u32 %v90, 4294901760
    %248 = vmatpush1.msra.mxu0 %v247
    %249 = vmatprep.subr.mxu0 0.0
    %v250 = vand.u32 %v91, 4294901760
    %251 = vmatpush1.msra.mxu0 %v250
    %252 = vmatprep.subr.mxu0 0.0
    %v253 = vand.u32 %v92, 4294901760
    %254 = vmatpush1.msra.mxu0 %v253
    %255 = vmatprep.subr.mxu0 0.0
    %v256 = vand.u32 %v93, 4294901760
    %257 = vmatpush1.msra.mxu0 %v256
    %258 = vmatprep.subr.mxu0 0.0
    %v259 = vand.u32 %v94, 4294901760
    %260 = vmatpush1.msra.mxu0 %v259
    %261 = vmatprep.subr.mxu0 0.0
    %v262 = vand.u32 %v95, 4294901760
    %263 = vmatpush1.msra.mxu0 %v262
    %264 = vmatprep.subr.mxu0 0.0
    %v265 = vand.u32 %v96, 4294901760
    %266 = vmatpush1.msra.mxu0 %v265
    %267 = vmatprep.subr.mxu0 0.0
    %v268 = vand.u32 %v97, 4294901760
    %269 = vmatpush1.msra.mxu0 %v268
    %270 = vmatprep.subr.mxu0 0.0
    %v271 = vand.u32 %v98, 4294901760
    %272 = vmatpush1.msra.mxu0 %v271
    %273 = vmatprep.subr.mxu0 0.0
    %v274 = vand.u32 %v99, 4294901760
    %275 = vmatpush1.msra.mxu0 %v274
    %276 = vmatprep.subr.mxu0 0.0
    %v277 = vand.u32 %v100, 4294901760
    %278 = vmatpush1.msra.mxu0 %v277
    %279 = vmatprep.subr.mxu0 0.0
    %v280 = vand.u32 %v101, 4294901760
    %281 = vmatpush1.msra.mxu0 %v280
    %v282 = vand.u32 %v64, 4294901760
    %v283 = vsub.f32 %v64, %v282
    %v284 = vand.u32 %v283, 4294901760
    %v285 = vsub.f32 %v283, %v284
    %v286 = vand.u32 %v285, 4294901760
    %287 = vmatprep.mubr.f32.mxu0 %v286
    %v288 = vand.u32 %v63, 4294901760
    %v289 = vsub.f32 %v63, %v288
    %v290 = vand.u32 %v289, 4294901760
    %v291 = vsub.f32 %v289, %v290
    %v292 = vand.u32 %v291, 4294901760
    %293 = vmatmul.mubr.f32.gmra.mrb[0].mxu0 %v292
    %v294 = vpop.f32.mrb[0].mxu0
    %v295 = vadd.f32 %v185, %v294
    %v296 = vpop.f32.mrb[0].mxu0
    %297 = vdwg.mxu0
    %298 = vmatprep.subr.mxu0 0.0
    %v299 = vand.u32 %v70, 4294901760
    %v300 = vsub.f32 %v70, %v299
    %v301 = vand.u32 %v300, 4294901760
    %v302 = vsub.f32 %v300, %v301
    %v303 = vand.u32 %v302, 4294901760
    %304 = vmatpush1.msra.mxu0 %v303
    %305 = vmatprep.subr.mxu0 0.0
    %v306 = vand.u32 %v71, 4294901760
    %v307 = vsub.f32 %v71, %v306
    %v308 = vand.u32 %v307, 4294901760
    %v309 = vsub.f32 %v307, %v308
    %v310 = vand.u32 %v309, 4294901760
    %311 = vmatpush1.msra.mxu0 %v310
    %312 = vmatprep.subr.mxu0 0.0
    %v313 = vand.u32 %v72, 4294901760
    %v314 = vsub.f32 %v72, %v313
    %v315 = vand.u32 %v314, 4294901760
    %v316 = vsub.f32 %v314, %v315
    %v317 = vand.u32 %v316, 4294901760
    %318 = vmatpush1.msra.mxu0 %v317
    %319 = vmatprep.subr.mxu0 0.0
    %v320 = vand.u32 %v73, 4294901760
    %v321 = vsub.f32 %v73, %v320
    %v322 = vand.u32 %v321, 4294901760
    %v323 = vsub.f32 %v321, %v322
    %v324 = vand.u32 %v323, 4294901760
    %325 = vmatpush1.msra.mxu0 %v324
    %326 = vmatprep.subr.mxu0 0.0
    %v327 = vand.u32 %v74, 4294901760
    %v328 = vsub.f32 %v74, %v327
    %v329 = vand.u32 %v328, 4294901760
    %v330 = vsub.f32 %v328, %v329
    %v331 = vand.u32 %v330, 4294901760
    %332 = vmatpush1.msra.mxu0 %v331
    %333 = vmatprep.subr.mxu0 0.0
    %v334 = vand.u32 %v75, 4294901760
    %v335 = vsub.f32 %v75, %v334
    %v336 = vand.u32 %v335, 4294901760
    %v337 = vsub.f32 %v335, %v336
    %v338 = vand.u32 %v337, 4294901760
    %339 = vmatpush1.msra.mxu0 %v338
    %340 = vmatprep.subr.mxu0 0.0
    %v341 = vand.u32 %v76, 4294901760
    %v342 = vsub.f32 %v76, %v341
    %v343 = vand.u32 %v342, 4294901760
    %v344 = vsub.f32 %v342, %v343
    %v345 = vand.u32 %v344, 4294901760
    %346 = vmatpush1.msra.mxu0 %v345
    %347 = vmatprep.subr.mxu0 0.0
    %v348 = vand.u32 %v77, 4294901760
    %v349 = vsub.f32 %v77, %v348
    %v350 = vand.u32 %v349, 4294901760
    %v351 = vsub.f32 %v349, %v350
    %v352 = vand.u32 %v351, 4294901760
    %353 = vmatpush1.msra.mxu0 %v352
    %354 = vmatprep.subr.mxu0 0.0
    %v355 = vand.u32 %v78, 4294901760
    %v356 = vsub.f32 %v78, %v355
    %v357 = vand.u32 %v356, 4294901760
    %v358 = vsub.f32 %v356, %v357
    %v359 = vand.u32 %v358, 4294901760
    %360 = vmatpush1.msra.mxu0 %v359
    %361 = vmatprep.subr.mxu0 0.0
    %v362 = vand.u32 %v79, 4294901760
    %v363 = vsub.f32 %v79, %v362
    %v364 = vand.u32 %v363, 4294901760
    %v365 = vsub.f32 %v363, %v364
    %v366 = vand.u32 %v365, 4294901760
    %367 = vmatpush1.msra.mxu0 %v366
    %368 = vmatprep.subr.mxu0 0.0
    %v369 = vand.u32 %v80, 4294901760
    %v370 = vsub.f32 %v80, %v369
    %v371 = vand.u32 %v370, 4294901760
    %v372 = vsub.f32 %v370, %v371
    %v373 = vand.u32 %v372, 4294901760
    %374 = vmatpush1.msra.mxu0 %v373
    %375 = vmatprep.subr.mxu0 0.0
    %v376 = vand.u32 %v81, 4294901760
    %v377 = vsub.f32 %v81, %v376
    %v378 = vand.u32 %v377, 4294901760
    %v379 = vsub.f32 %v377, %v378
    %v380 = vand.u32 %v379, 4294901760
    %381 = vmatpush1.msra.mxu0 %v380
    %382 = vmatprep.subr.mxu0 0.0
    %v383 = vand.u32 %v82, 4294901760
    %v384 = vsub.f32 %v82, %v383
    %v385 = vand.u32 %v384, 4294901760
    %v386 = vsub.f32 %v384, %v385
    %v387 = vand.u32 %v386, 4294901760
    %388 = vmatpush1.msra.mxu0 %v387
    %389 = vmatprep.subr.mxu0 0.0
    %v390 = vand.u32 %v83, 4294901760
    %v391 = vsub.f32 %v83, %v390
    %v392 = vand.u32 %v391, 4294901760
    %v393 = vsub.f32 %v391, %v392
    %v394 = vand.u32 %v393, 4294901760
    %395 = vmatpush1.msra.mxu0 %v394
    %396 = vmatprep.subr.mxu0 0.0
    %v397 = vand.u32 %v84, 4294901760
    %v398 = vsub.f32 %v84, %v397
    %v399 = vand.u32 %v398, 4294901760
    %v400 = vsub.f32 %v398, %v399
    %v401 = vand.u32 %v400, 4294901760
    %402 = vmatpush1.msra.mxu0 %v401
    %403 = vmatprep.subr.mxu0 0.0
    %v404 = vand.u32 %v85, 4294901760
    %v405 = vsub.f32 %v85, %v404
    %v406 = vand.u32 %v405, 4294901760
    %v407 = vsub.f32 %v405, %v406
    %v408 = vand.u32 %v407, 4294901760
    %409 = vmatpush1.msra.mxu0 %v408
    %410 = vmatprep.subr.mxu0 0.0
    %v411 = vand.u32 %v86, 4294901760
    %v412 = vsub.f32 %v86, %v411
    %v413 = vand.u32 %v412, 4294901760
    %v414 = vsub.f32 %v412, %v413
    %v415 = vand.u32 %v414, 4294901760
    %416 = vmatpush1.msra.mxu0 %v415
    %417 = vmatprep.subr.mxu0 0.0
    %v418 = vand.u32 %v87, 4294901760
    %v419 = vsub.f32 %v87, %v418
    %v420 = vand.u32 %v419, 4294901760
    %v421 = vsub.f32 %v419, %v420
    %v422 = vand.u32 %v421, 4294901760
    %423 = vmatpush1.msra.mxu0 %v422
    %424 = vmatprep.subr.mxu0 0.0
    %v425 = vand.u32 %v88, 4294901760
    %v426 = vsub.f32 %v88, %v425
    %v427 = vand.u32 %v426, 4294901760
    %v428 = vsub.f32 %v426, %v427
    %v429 = vand.u32 %v428, 4294901760
    %430 = vmatpush1.msra.mxu0 %v429
    %431 = vmatprep.subr.mxu0 0.0
    %v432 = vand.u32 %v89, 4294901760
    %v433 = vsub.f32 %v89, %v432
    %v434 = vand.u32 %v433, 4294901760
    %v435 = vsub.f32 %v433, %v434
    %v436 = vand.u32 %v435, 4294901760
    %437 = vmatpush1.msra.mxu0 %v436
    %438 = vmatprep.subr.mxu0 0.0
    %v439 = vand.u32 %v90, 4294901760
    %v440 = vsub.f32 %v90, %v439
    %v441 = vand.u32 %v440, 4294901760
    %v442 = vsub.f32 %v440, %v441
    %v443 = vand.u32 %v442, 4294901760
    %444 = vmatpush1.msra.mxu0 %v443
    %445 = vmatprep.subr.mxu0 0.0
    %v446 = vand.u32 %v91, 4294901760
    %v447 = vsub.f32 %v91, %v446
    %v448 = vand.u32 %v447, 4294901760
    %v449 = vsub.f32 %v447, %v448
    %v450 = vand.u32 %v449, 4294901760
    %451 = vmatpush1.msra.mxu0 %v450
    %452 = vmatprep.subr.mxu0 0.0
    %v453 = vand.u32 %v92, 4294901760
    %v454 = vsub.f32 %v92, %v453
    %v455 = vand.u32 %v454, 4294901760
    %v456 = vsub.f32 %v454, %v455
    %v457 = vand.u32 %v456, 4294901760
    %458 = vmatpush1.msra.mxu0 %v457
    %459 = vmatprep.subr.mxu0 0.0
    %v460 = vand.u32 %v93, 4294901760
    %v461 = vsub.f32 %v93, %v460
    %v462 = vand.u32 %v461, 4294901760
    %v463 = vsub.f32 %v461, %v462
    %v464 = vand.u32 %v463, 4294901760
    %465 = vmatpush1.msra.mxu0 %v464
    %466 = vmatprep.subr.mxu0 0.0
    %v467 = vand.u32 %v94, 4294901760
    %v468 = vsub.f32 %v94, %v467
    %v469 = vand.u32 %v468, 4294901760
    %v470 = vsub.f32 %v468, %v469
    %v471 = vand.u32 %v470, 4294901760
    %472 = vmatpush1.msra.mxu0 %v471
    %473 = vmatprep.subr.mxu0 0.0
    %v474 = vand.u32 %v95, 4294901760
    %v475 = vsub.f32 %v95, %v474
    %v476 = vand.u32 %v475, 4294901760
    %v477 = vsub.f32 %v475, %v476
    %v478 = vand.u32 %v477, 4294901760
    %479 = vmatpush1.msra.mxu0 %v478
    %480 = vmatprep.subr.mxu0 0.0
    %v481 = vand.u32 %v96, 4294901760
    %v482 = vsub.f32 %v96, %v481
    %v483 = vand.u32 %v482, 4294901760
    %v484 = vsub.f32 %v482, %v483
    %v485 = vand.u32 %v484, 4294901760
    %486 = vmatpush1.msra.mxu0 %v485
    %487 = vmatprep.subr.mxu0 0.0
    %v488 = vand.u32 %v97, 4294901760
    %v489 = vsub.f32 %v97, %v488
    %v490 = vand.u32 %v489, 4294901760
    %v491 = vsub.f32 %v489, %v490
    %v492 = vand.u32 %v491, 4294901760
    %493 = vmatpush1.msra.mxu0 %v492
    %494 = vmatprep.subr.mxu0 0.0
    %v495 = vand.u32 %v98, 4294901760
    %v496 = vsub.f32 %v98, %v495
    %v497 = vand.u32 %v496, 4294901760
    %v498 = vsub.f32 %v496, %v497
    %v499 = vand.u32 %v498, 4294901760
    %500 = vmatpush1.msra.mxu0 %v499
    %501 = vmatprep.subr.mxu0 0.0
    %v502 = vand.u32 %v99, 4294901760
    %v503 = vsub.f32 %v99, %v502
    %v504 = vand.u32 %v503, 4294901760
    %v505 = vsub.f32 %v503, %v504
    %v506 = vand.u32 %v505, 4294901760
    %507 = vmatpush1.msra.mxu0 %v506
    %508 = vmatprep.subr.mxu0 0.0
    %v509 = vand.u32 %v100, 4294901760
    %v510 = vsub.f32 %v100, %v509
    %v511 = vand.u32 %v510, 4294901760
    %v512 = vsub.f32 %v510, %v511
    %v513 = vand.u32 %v512, 4294901760
    %514 = vmatpush1.msra.mxu0 %v513
    %515 = vmatprep.subr.mxu0 0.0
    %v516 = vand.u32 %v101, 4294901760
    %v517 = vsub.f32 %v101, %v516
    %v518 = vand.u32 %v517, 4294901760
    %v519 = vsub.f32 %v517, %v518
    %v520 = vand.u32 %v519, 4294901760
    %521 = vmatpush1.msra.mxu0 %v520
    %v522 = vand.u32 %v64, 4294901760
    %523 = vmatprep.mubr.f32.mxu0 %v522
    %v524 = vand.u32 %v63, 4294901760
    %525 = vmatmul.mubr.f32.gmra.mrb[0].mxu0 %v524
    %v526 = vpop.f32.mrb[0].mxu0
    %v527 = vadd.f32 %v295, %v526
    %v528 = vpop.f32.mrb[0].mxu0
    %529 = vdwg.mxu0
    %530 = vmatprep.subr.mxu0 0.0
    %v531 = vand.u32 %v70, 4294901760
    %v532 = vsub.f32 %v70, %v531
    %533 = vmatpush1.msra.mxu0 %v532
    %534 = vmatprep.subr.mxu0 0.0
    %v535 = vand.u32 %v71, 4294901760
    %v536 = vsub.f32 %v71, %v535
    %537 = vmatpush1.msra.mxu0 %v536
    %538 = vmatprep.subr.mxu0 0.0
    %v539 = vand.u32 %v72, 4294901760
    %v540 = vsub.f32 %v72, %v539
    %541 = vmatpush1.msra.mxu0 %v540
    %542 = vmatprep.subr.mxu0 0.0
    %v543 = vand.u32 %v73, 4294901760
    %v544 = vsub.f32 %v73, %v543
    %545 = vmatpush1.msra.mxu0 %v544
    %546 = vmatprep.subr.mxu0 0.0
    %v547 = vand.u32 %v74, 4294901760
    %v548 = vsub.f32 %v74, %v547
    %549 = vmatpush1.msra.mxu0 %v548
    %550 = vmatprep.subr.mxu0 0.0
    %v551 = vand.u32 %v75, 4294901760
    %v552 = vsub.f32 %v75, %v551
    %553 = vmatpush1.msra.mxu0 %v552
    %554 = vmatprep.subr.mxu0 0.0
    %v555 = vand.u32 %v76, 4294901760
    %v556 = vsub.f32 %v76, %v555
    %557 = vmatpush1.msra.mxu0 %v556
    %558 = vmatprep.subr.mxu0 0.0
    %v559 = vand.u32 %v77, 4294901760
    %v560 = vsub.f32 %v77, %v559
    %561 = vmatpush1.msra.mxu0 %v560
    %562 = vmatprep.subr.mxu0 0.0
    %v563 = vand.u32 %v78, 4294901760
    %v564 = vsub.f32 %v78, %v563
    %565 = vmatpush1.msra.mxu0 %v564
    %566 = vmatprep.subr.mxu0 0.0
    %v567 = vand.u32 %v79, 4294901760
    %v568 = vsub.f32 %v79, %v567
    %569 = vmatpush1.msra.mxu0 %v568
    %570 = vmatprep.subr.mxu0 0.0
    %v571 = vand.u32 %v80, 4294901760
    %v572 = vsub.f32 %v80, %v571
    %573 = vmatpush1.msra.mxu0 %v572
    %574 = vmatprep.subr.mxu0 0.0
    %v575 = vand.u32 %v81, 4294901760
    %v576 = vsub.f32 %v81, %v575
    %577 = vmatpush1.msra.mxu0 %v576
    %578 = vmatprep.subr.mxu0 0.0
    %v579 = vand.u32 %v82, 4294901760
    %v580 = vsub.f32 %v82, %v579
    %581 = vmatpush1.msra.mxu0 %v580
    %582 = vmatprep.subr.mxu0 0.0
    %v583 = vand.u32 %v83, 4294901760
    %v584 = vsub.f32 %v83, %v583
    %585 = vmatpush1.msra.mxu0 %v584
    %586 = vmatprep.subr.mxu0 0.0
    %v587 = vand.u32 %v84, 4294901760
    %v588 = vsub.f32 %v84, %v587
    %589 = vmatpush1.msra.mxu0 %v588
    %590 = vmatprep.subr.mxu0 0.0
    %v591 = vand.u32 %v85, 4294901760
    %v592 = vsub.f32 %v85, %v591
    %593 = vmatpush1.msra.mxu0 %v592
    %594 = vmatprep.subr.mxu0 0.0
    %v595 = vand.u32 %v86, 4294901760
    %v596 = vsub.f32 %v86, %v595
    %597 = vmatpush1.msra.mxu0 %v596
    %598 = vmatprep.subr.mxu0 0.0
    %v599 = vand.u32 %v87, 4294901760
    %v600 = vsub.f32 %v87, %v599
    %601 = vmatpush1.msra.mxu0 %v600
    %602 = vmatprep.subr.mxu0 0.0
    %v603 = vand.u32 %v88, 4294901760
    %v604 = vsub.f32 %v88, %v603
    %605 = vmatpush1.msra.mxu0 %v604
    %606 = vmatprep.subr.mxu0 0.0
    %v607 = vand.u32 %v89, 4294901760
    %v608 = vsub.f32 %v89, %v607
    %609 = vmatpush1.msra.mxu0 %v608
    %610 = vmatprep.subr.mxu0 0.0
    %v611 = vand.u32 %v90, 4294901760
    %v612 = vsub.f32 %v90, %v611
    %613 = vmatpush1.msra.mxu0 %v612
    %614 = vmatprep.subr.mxu0 0.0
    %v615 = vand.u32 %v91, 4294901760
    %v616 = vsub.f32 %v91, %v615
    %617 = vmatpush1.msra.mxu0 %v616
    %618 = vmatprep.subr.mxu0 0.0
    %v619 = vand.u32 %v92, 4294901760
    %v620 = vsub.f32 %v92, %v619
    %621 = vmatpush1.msra.mxu0 %v620
    %622 = vmatprep.subr.mxu0 0.0
    %v623 = vand.u32 %v93, 4294901760
    %v624 = vsub.f32 %v93, %v623
    %625 = vmatpush1.msra.mxu0 %v624
    %626 = vmatprep.subr.mxu0 0.0
    %v627 = vand.u32 %v94, 4294901760
    %v628 = vsub.f32 %v94, %v627
    %629 = vmatpush1.msra.mxu0 %v628
    %630 = vmatprep.subr.mxu0 0.0
    %v631 = vand.u32 %v95, 4294901760
    %v632 = vsub.f32 %v95, %v631
    %633 = vmatpush1.msra.mxu0 %v632
    %634 = vmatprep.subr.mxu0 0.0
    %v635 = vand.u32 %v96, 4294901760
    %v636 = vsub.f32 %v96, %v635
    %637 = vmatpush1.msra.mxu0 %v636
    %638 = vmatprep.subr.mxu0 0.0
    %v639 = vand.u32 %v97, 4294901760
    %v640 = vsub.f32 %v97, %v639
    %641 = vmatpush1.msra.mxu0 %v640
    %642 = vmatprep.subr.mxu0 0.0
    %v643 = vand.u32 %v98, 4294901760
    %v644 = vsub.f32 %v98, %v643
    %645 = vmatpush1.msra.mxu0 %v644
    %646 = vmatprep.subr.mxu0 0.0
    %v647 = vand.u32 %v99, 4294901760
    %v648 = vsub.f32 %v99, %v647
    %649 = vmatpush1.msra.mxu0 %v648
    %650 = vmatprep.subr.mxu0 0.0
    %v651 = vand.u32 %v100, 4294901760
    %v652 = vsub.f32 %v100, %v651
    %653 = vmatpush1.msra.mxu0 %v652
    %654 = vmatprep.subr.mxu0 0.0
    %v655 = vand.u32 %v101, 4294901760
    %v656 = vsub.f32 %v101, %v655
    %657 = vmatpush1.msra.mxu0 %v656
    %v658 = vand.u32 %v64, 4294901760
    %v659 = vsub.f32 %v64, %v658
    %660 = vmatprep.mubr.f32.mxu0 %v659
    %v661 = vand.u32 %v63, 4294901760
    %v662 = vsub.f32 %v63, %v661
    %663 = vmatmul.mubr.f32.gmra.mrb[0].mxu0 %v662
    %v664 = vpop.f32.mrb[0].mxu0
    %v665 = vadd.f32 %v527, %v664
    %v666 = vpop.f32.mrb[0].mxu0
    %667 = vdwg.mxu0
    %668 = vmatprep.subr.mxu0 0.0
    %v669 = vand.u32 %v70, 4294901760
    %670 = vmatpush1.msra.mxu0 %v669
    %671 = vmatprep.subr.mxu0 0.0
    %v672 = vand.u32 %v71, 4294901760
    %673 = vmatpush1.msra.mxu0 %v672
    %674 = vmatprep.subr.mxu0 0.0
    %v675 = vand.u32 %v72, 4294901760
    %676 = vmatpush1.msra.mxu0 %v675
    %677 = vmatprep.subr.mxu0 0.0
    %v678 = vand.u32 %v73, 4294901760
    %679 = vmatpush1.msra.mxu0 %v678
    %680 = vmatprep.subr.mxu0 0.0
    %v681 = vand.u32 %v74, 4294901760
    %682 = vmatpush1.msra.mxu0 %v681
    %683 = vmatprep.subr.mxu0 0.0
    %v684 = vand.u32 %v75, 4294901760
    %685 = vmatpush1.msra.mxu0 %v684
    %686 = vmatprep.subr.mxu0 0.0
    %v687 = vand.u32 %v76, 4294901760
    %688 = vmatpush1.msra.mxu0 %v687
    %689 = vmatprep.subr.mxu0 0.0
    %v690 = vand.u32 %v77, 4294901760
    %691 = vmatpush1.msra.mxu0 %v690
    %692 = vmatprep.subr.mxu0 0.0
    %v693 = vand.u32 %v78, 4294901760
    %694 = vmatpush1.msra.mxu0 %v693
    %695 = vmatprep.subr.mxu0 0.0
    %v696 = vand.u32 %v79, 4294901760
    %697 = vmatpush1.msra.mxu0 %v696
    %698 = vmatprep.subr.mxu0 0.0
    %v699 = vand.u32 %v80, 4294901760
    %700 = vmatpush1.msra.mxu0 %v699
    %701 = vmatprep.subr.mxu0 0.0
    %v702 = vand.u32 %v81, 4294901760
    %703 = vmatpush1.msra.mxu0 %v702
    %704 = vmatprep.subr.mxu0 0.0
    %v705 = vand.u32 %v82, 4294901760
    %706 = vmatpush1.msra.mxu0 %v705
    %707 = vmatprep.subr.mxu0 0.0
    %v708 = vand.u32 %v83, 4294901760
    %709 = vmatpush1.msra.mxu0 %v708
    %710 = vmatprep.subr.mxu0 0.0
    %v711 = vand.u32 %v84, 4294901760
    %712 = vmatpush1.msra.mxu0 %v711
    %713 = vmatprep.subr.mxu0 0.0
    %v714 = vand.u32 %v85, 4294901760
    %715 = vmatpush1.msra.mxu0 %v714
    %716 = vmatprep.subr.mxu0 0.0
    %v717 = vand.u32 %v86, 4294901760
    %718 = vmatpush1.msra.mxu0 %v717
    %719 = vmatprep.subr.mxu0 0.0
    %v720 = vand.u32 %v87, 4294901760
    %721 = vmatpush1.msra.mxu0 %v720
    %722 = vmatprep.subr.mxu0 0.0
    %v723 = vand.u32 %v88, 4294901760
    %724 = vmatpush1.msra.mxu0 %v723
    %725 = vmatprep.subr.mxu0 0.0
    %v726 = vand.u32 %v89, 4294901760
    %727 = vmatpush1.msra.mxu0 %v726
    %728 = vmatprep.subr.mxu0 0.0
    %v729 = vand.u32 %v90, 4294901760
    %730 = vmatpush1.msra.mxu0 %v729
    %731 = vmatprep.subr.mxu0 0.0
    %v732 = vand.u32 %v91, 4294901760
    %733 = vmatpush1.msra.mxu0 %v732
    %734 = vmatprep.subr.mxu0 0.0
    %v735 = vand.u32 %v92, 4294901760
    %736 = vmatpush1.msra.mxu0 %v735
    %737 = vmatprep.subr.mxu0 0.0
    %v738 = vand.u32 %v93, 4294901760
    %739 = vmatpush1.msra.mxu0 %v738
    %740 = vmatprep.subr.mxu0 0.0
    %v741 = vand.u32 %v94, 4294901760
    %742 = vmatpush1.msra.mxu0 %v741
    %743 = vmatprep.subr.mxu0 0.0
    %v744 = vand.u32 %v95, 4294901760
    %745 = vmatpush1.msra.mxu0 %v744
    %746 = vmatprep.subr.mxu0 0.0
    %v747 = vand.u32 %v96, 4294901760
    %748 = vmatpush1.msra.mxu0 %v747
    %749 = vmatprep.subr.mxu0 0.0
    %v750 = vand.u32 %v97, 4294901760
    %751 = vmatpush1.msra.mxu0 %v750
    %752 = vmatprep.subr.mxu0 0.0
    %v753 = vand.u32 %v98, 4294901760
    %754 = vmatpush1.msra.mxu0 %v753
    %755 = vmatprep.subr.mxu0 0.0
    %v756 = vand.u32 %v99, 4294901760
    %757 = vmatpush1.msra.mxu0 %v756
    %758 = vmatprep.subr.mxu0 0.0
    %v759 = vand.u32 %v100, 4294901760
    %760 = vmatpush1.msra.mxu0 %v759
    %761 = vmatprep.subr.mxu0 0.0
    %v762 = vand.u32 %v101, 4294901760
    %763 = vmatpush1.msra.mxu0 %v762
    %v764 = vand.u32 %v64, 4294901760
    %v765 = vsub.f32 %v64, %v764
    %v766 = vand.u32 %v765, 4294901760
    %767 = vmatprep.mubr.f32.mxu0 %v766
    %v768 = vand.u32 %v63, 4294901760
    %v769 = vsub.f32 %v63, %v768
    %v770 = vand.u32 %v769, 4294901760
    %771 = vmatmul.mubr.f32.gmra.mrb[0].mxu0 %v770
    %v772 = vpop.f32.mrb[0].mxu0
    %v773 = vadd.f32 %v665, %v772
    %v774 = vpop.f32.mrb[0].mxu0
    %775 = vdwg.mxu0
    %776 = vmatprep.subr.mxu0 0.0
    %v777 = vand.u32 %v70, 4294901760
    %v778 = vsub.f32 %v70, %v777
    %v779 = vand.u32 %v778, 4294901760
    %780 = vmatpush1.msra.mxu0 %v779
    %781 = vmatprep.subr.mxu0 0.0
    %v782 = vand.u32 %v71, 4294901760
    %v783 = vsub.f32 %v71, %v782
    %v784 = vand.u32 %v783, 4294901760
    %785 = vmatpush1.msra.mxu0 %v784
    %786 = vmatprep.subr.mxu0 0.0
    %v787 = vand.u32 %v72, 4294901760
    %v788 = vsub.f32 %v72, %v787
    %v789 = vand.u32 %v788, 4294901760
    %790 = vmatpush1.msra.mxu0 %v789
    %791 = vmatprep.subr.mxu0 0.0
    %v792 = vand.u32 %v73, 4294901760
    %v793 = vsub.f32 %v73, %v792
    %v794 = vand.u32 %v793, 4294901760
    %795 = vmatpush1.msra.mxu0 %v794
    %796 = vmatprep.subr.mxu0 0.0
    %v797 = vand.u32 %v74, 4294901760
    %v798 = vsub.f32 %v74, %v797
    %v799 = vand.u32 %v798, 4294901760
    %800 = vmatpush1.msra.mxu0 %v799
    %801 = vmatprep.subr.mxu0 0.0
    %v802 = vand.u32 %v75, 4294901760
    %v803 = vsub.f32 %v75, %v802
    %v804 = vand.u32 %v803, 4294901760
    %805 = vmatpush1.msra.mxu0 %v804
    %806 = vmatprep.subr.mxu0 0.0
    %v807 = vand.u32 %v76, 4294901760
    %v808 = vsub.f32 %v76, %v807
    %v809 = vand.u32 %v808, 4294901760
    %810 = vmatpush1.msra.mxu0 %v809
    %811 = vmatprep.subr.mxu0 0.0
    %v812 = vand.u32 %v77, 4294901760
    %v813 = vsub.f32 %v77, %v812
    %v814 = vand.u32 %v813, 4294901760
    %815 = vmatpush1.msra.mxu0 %v814
    %816 = vmatprep.subr.mxu0 0.0
    %v817 = vand.u32 %v78, 4294901760
    %v818 = vsub.f32 %v78, %v817
    %v819 = vand.u32 %v818, 4294901760
    %820 = vmatpush1.msra.mxu0 %v819
    %821 = vmatprep.subr.mxu0 0.0
    %v822 = vand.u32 %v79, 4294901760
    %v823 = vsub.f32 %v79, %v822
    %v824 = vand.u32 %v823, 4294901760
    %825 = vmatpush1.msra.mxu0 %v824
    %826 = vmatprep.subr.mxu0 0.0
    %v827 = vand.u32 %v80, 4294901760
    %v828 = vsub.f32 %v80, %v827
    %v829 = vand.u32 %v828, 4294901760
    %830 = vmatpush1.msra.mxu0 %v829
    %831 = vmatprep.subr.mxu0 0.0
    %v832 = vand.u32 %v81, 4294901760
    %v833 = vsub.f32 %v81, %v832
    %v834 = vand.u32 %v833, 4294901760
    %835 = vmatpush1.msra.mxu0 %v834
    %836 = vmatprep.subr.mxu0 0.0
    %v837 = vand.u32 %v82, 4294901760
    %v838 = vsub.f32 %v82, %v837
    %v839 = vand.u32 %v838, 4294901760
    %840 = vmatpush1.msra.mxu0 %v839
    %841 = vmatprep.subr.mxu0 0.0
    %v842 = vand.u32 %v83, 4294901760
    %v843 = vsub.f32 %v83, %v842
    %v844 = vand.u32 %v843, 4294901760
    %845 = vmatpush1.msra.mxu0 %v844
    %846 = vmatprep.subr.mxu0 0.0
    %v847 = vand.u32 %v84, 4294901760
    %v848 = vsub.f32 %v84, %v847
    %v849 = vand.u32 %v848, 4294901760
    %850 = vmatpush1.msra.mxu0 %v849
    %851 = vmatprep.subr.mxu0 0.0
    %v852 = vand.u32 %v85, 4294901760
    %v853 = vsub.f32 %v85, %v852
    %v854 = vand.u32 %v853, 4294901760
    %855 = vmatpush1.msra.mxu0 %v854
    %856 = vmatprep.subr.mxu0 0.0
    %v857 = vand.u32 %v86, 4294901760
    %v858 = vsub.f32 %v86, %v857
    %v859 = vand.u32 %v858, 4294901760
    %860 = vmatpush1.msra.mxu0 %v859
    %861 = vmatprep.subr.mxu0 0.0
    %v862 = vand.u32 %v87, 4294901760
    %v863 = vsub.f32 %v87, %v862
    %v864 = vand.u32 %v863, 4294901760
    %865 = vmatpush1.msra.mxu0 %v864
    %866 = vmatprep.subr.mxu0 0.0
    %v867 = vand.u32 %v88, 4294901760
    %v868 = vsub.f32 %v88, %v867
    %v869 = vand.u32 %v868, 4294901760
    %870 = vmatpush1.msra.mxu0 %v869
    %871 = vmatprep.subr.mxu0 0.0
    %v872 = vand.u32 %v89, 4294901760
    %v873 = vsub.f32 %v89, %v872
    %v874 = vand.u32 %v873, 4294901760
    %875 = vmatpush1.msra.mxu0 %v874
    %876 = vmatprep.subr.mxu0 0.0
    %v877 = vand.u32 %v90, 4294901760
    %v878 = vsub.f32 %v90, %v877
    %v879 = vand.u32 %v878, 4294901760
    %880 = vmatpush1.msra.mxu0 %v879
    %881 = vmatprep.subr.mxu0 0.0
    %v882 = vand.u32 %v91, 4294901760
    %v883 = vsub.f32 %v91, %v882
    %v884 = vand.u32 %v883, 4294901760
    %885 = vmatpush1.msra.mxu0 %v884
    %886 = vmatprep.subr.mxu0 0.0
    %v887 = vand.u32 %v92, 4294901760
    %v888 = vsub.f32 %v92, %v887
    %v889 = vand.u32 %v888, 4294901760
    %890 = vmatpush1.msra.mxu0 %v889
    %891 = vmatprep.subr.mxu0 0.0
    %v892 = vand.u32 %v93, 4294901760
    %v893 = vsub.f32 %v93, %v892
    %v894 = vand.u32 %v893, 4294901760
    %895 = vmatpush1.msra.mxu0 %v894
    %896 = vmatprep.subr.mxu0 0.0
    %v897 = vand.u32 %v94, 4294901760
    %v898 = vsub.f32 %v94, %v897
    %v899 = vand.u32 %v898, 4294901760
    %900 = vmatpush1.msra.mxu0 %v899
    %901 = vmatprep.subr.mxu0 0.0
    %v902 = vand.u32 %v95, 4294901760
    %v903 = vsub.f32 %v95, %v902
    %v904 = vand.u32 %v903, 4294901760
    %905 = vmatpush1.msra.mxu0 %v904
    %906 = vmatprep.subr.mxu0 0.0
    %v907 = vand.u32 %v96, 4294901760
    %v908 = vsub.f32 %v96, %v907
    %v909 = vand.u32 %v908, 4294901760
    %910 = vmatpush1.msra.mxu0 %v909
    %911 = vmatprep.subr.mxu0 0.0
    %v912 = vand.u32 %v97, 4294901760
    %v913 = vsub.f32 %v97, %v912
    %v914 = vand.u32 %v913, 4294901760
    %915 = vmatpush1.msra.mxu0 %v914
    %916 = vmatprep.subr.mxu0 0.0
    %v917 = vand.u32 %v98, 4294901760
    %v918 = vsub.f32 %v98, %v917
    %v919 = vand.u32 %v918, 4294901760
    %920 = vmatpush1.msra.mxu0 %v919
    %921 = vmatprep.subr.mxu0 0.0
    %v922 = vand.u32 %v99, 4294901760
    %v923 = vsub.f32 %v99, %v922
    %v924 = vand.u32 %v923, 4294901760
    %925 = vmatpush1.msra.mxu0 %v924
    %926 = vmatprep.subr.mxu0 0.0
    %v927 = vand.u32 %v100, 4294901760
    %v928 = vsub.f32 %v100, %v927
    %v929 = vand.u32 %v928, 4294901760
    %930 = vmatpush1.msra.mxu0 %v929
    %931 = vmatprep.subr.mxu0 0.0
    %v932 = vand.u32 %v101, 4294901760
    %v933 = vsub.f32 %v101, %v932
    %v934 = vand.u32 %v933, 4294901760
    %935 = vmatpush1.msra.mxu0 %v934
    %v936 = vand.u32 %v64, 4294901760
    %937 = vmatprep.mubr.f32.mxu0 %v936
    %v938 = vand.u32 %v63, 4294901760
    %939 = vmatmul.mubr.f32.gmra.mrb[0].mxu0 %v938
    %v940 = vpop.f32.mrb[0].mxu0
    %v941 = vadd.f32 %v773, %v940
    %v942 = vpop.f32.mrb[0].mxu0
    %943 = vdwg.mxu0
    %944 = vmatprep.subr.mxu0 0.0
    %v945 = vand.u32 %v70, 4294901760
    %946 = vmatpush1.msra.mxu0 %v945
    %947 = vmatprep.subr.mxu0 0.0
    %v948 = vand.u32 %v71, 4294901760
    %949 = vmatpush1.msra.mxu0 %v948
    %950 = vmatprep.subr.mxu0 0.0
    %v951 = vand.u32 %v72, 4294901760
    %952 = vmatpush1.msra.mxu0 %v951
    %953 = vmatprep.subr.mxu0 0.0
    %v954 = vand.u32 %v73, 4294901760
    %955 = vmatpush1.msra.mxu0 %v954
    %956 = vmatprep.subr.mxu0 0.0
    %v957 = vand.u32 %v74, 4294901760
    %958 = vmatpush1.msra.mxu0 %v957
    %959 = vmatprep.subr.mxu0 0.0
    %v960 = vand.u32 %v75, 4294901760
    %961 = vmatpush1.msra.mxu0 %v960
    %962 = vmatprep.subr.mxu0 0.0
    %v963 = vand.u32 %v76, 4294901760
    %964 = vmatpush1.msra.mxu0 %v963
    %965 = vmatprep.subr.mxu0 0.0
    %v966 = vand.u32 %v77, 4294901760
    %967 = vmatpush1.msra.mxu0 %v966
    %968 = vmatprep.subr.mxu0 0.0
    %v969 = vand.u32 %v78, 4294901760
    %970 = vmatpush1.msra.mxu0 %v969
    %971 = vmatprep.subr.mxu0 0.0
    %v972 = vand.u32 %v79, 4294901760
    %973 = vmatpush1.msra.mxu0 %v972
    %974 = vmatprep.subr.mxu0 0.0
    %v975 = vand.u32 %v80, 4294901760
    %976 = vmatpush1.msra.mxu0 %v975
    %977 = vmatprep.subr.mxu0 0.0
    %v978 = vand.u32 %v81, 4294901760
    %979 = vmatpush1.msra.mxu0 %v978
    %980 = vmatprep.subr.mxu0 0.0
    %v981 = vand.u32 %v82, 4294901760
    %982 = vmatpush1.msra.mxu0 %v981
    %983 = vmatprep.subr.mxu0 0.0
    %v984 = vand.u32 %v83, 4294901760
    %985 = vmatpush1.msra.mxu0 %v984
    %986 = vmatprep.subr.mxu0 0.0
    %v987 = vand.u32 %v84, 4294901760
    %988 = vmatpush1.msra.mxu0 %v987
    %989 = vmatprep.subr.mxu0 0.0
    %v990 = vand.u32 %v85, 4294901760
    %991 = vmatpush1.msra.mxu0 %v990
    %992 = vmatprep.subr.mxu0 0.0
    %v993 = vand.u32 %v86, 4294901760
    %994 = vmatpush1.msra.mxu0 %v993
    %995 = vmatprep.subr.mxu0 0.0
    %v996 = vand.u32 %v87, 4294901760
    %997 = vmatpush1.msra.mxu0 %v996
    %998 = vmatprep.subr.mxu0 0.0
    %v999 = vand.u32 %v88, 4294901760
    %1000 = vmatpush1.msra.mxu0 %v999
    %1001 = vmatprep.subr.mxu0 0.0
    %v1002 = vand.u32 %v89, 4294901760
    %1003 = vmatpush1.msra.mxu0 %v1002
    %1004 = vmatprep.subr.mxu0 0.0
    %v1005 = vand.u32 %v90, 4294901760
    %1006 = vmatpush1.msra.mxu0 %v1005
    %1007 = vmatprep.subr.mxu0 0.0
    %v1008 = vand.u32 %v91, 4294901760
    %1009 = vmatpush1.msra.mxu0 %v1008
    %1010 = vmatprep.subr.mxu0 0.0
    %v1011 = vand.u32 %v92, 4294901760
    %1012 = vmatpush1.msra.mxu0 %v1011
    %1013 = vmatprep.subr.mxu0 0.0
    %v1014 = vand.u32 %v93, 4294901760
    %1015 = vmatpush1.msra.mxu0 %v1014
    %1016 = vmatprep.subr.mxu0 0.0
    %v1017 = vand.u32 %v94, 4294901760
    %1018 = vmatpush1.msra.mxu0 %v1017
    %1019 = vmatprep.subr.mxu0 0.0
    %v1020 = vand.u32 %v95, 4294901760
    %1021 = vmatpush1.msra.mxu0 %v1020
    %1022 = vmatprep.subr.mxu0 0.0
    %v1023 = vand.u32 %v96, 4294901760
    %1024 = vmatpush1.msra.mxu0 %v1023
    %1025 = vmatprep.subr.mxu0 0.0
    %v1026 = vand.u32 %v97, 4294901760
    %1027 = vmatpush1.msra.mxu0 %v1026
    %1028 = vmatprep.subr.mxu0 0.0
    %v1029 = vand.u32 %v98, 4294901760
    %1030 = vmatpush1.msra.mxu0 %v1029
    %1031 = vmatprep.subr.mxu0 0.0
    %v1032 = vand.u32 %v99, 4294901760
    %1033 = vmatpush1.msra.mxu0 %v1032
    %1034 = vmatprep.subr.mxu0 0.0
    %v1035 = vand.u32 %v100, 4294901760
    %1036 = vmatpush1.msra.mxu0 %v1035
    %1037 = vmatprep.subr.mxu0 0.0
    %v1038 = vand.u32 %v101, 4294901760
    %1039 = vmatpush1.msra.mxu0 %v1038
    %v1040 = vand.u32 %v64, 4294901760
    %1041 = vmatprep.mubr.f32.mxu0 %v1040
    %v1042 = vand.u32 %v63, 4294901760
    %1043 = vmatmul.mubr.f32.gmra.mrb[0].mxu0 %v1042
    %v1044 = vpop.f32.mrb[0].mxu0
    %v1045 = vadd.f32 %v941, %v1044
    %v1046 = vpop.f32.mrb[0].mxu0
    %1047 = vdwg.mxu0
    %1048 = vmatprep.subr.mxu0 0.0
    %v1049 = vand.u32 %v102, 4294901760
    %1050 = vmatpush1.msra.mxu0 %v1049
    %1051 = vmatprep.subr.mxu0 0.0
    %v1052 = vand.u32 %v103, 4294901760
    %1053 = vmatpush1.msra.mxu0 %v1052
    %1054 = vmatprep.subr.mxu0 0.0
    %v1055 = vand.u32 %v104, 4294901760
    %1056 = vmatpush1.msra.mxu0 %v1055
    %1057 = vmatprep.subr.mxu0 0.0
    %v1058 = vand.u32 %v105, 4294901760
    %1059 = vmatpush1.msra.mxu0 %v1058
    %1060 = vmatprep.subr.mxu0 0.0
    %v1061 = vand.u32 %v106, 4294901760
    %1062 = vmatpush1.msra.mxu0 %v1061
    %1063 = vmatprep.subr.mxu0 0.0
    %v1064 = vand.u32 %v107, 4294901760
    %1065 = vmatpush1.msra.mxu0 %v1064
    %1066 = vmatprep.subr.mxu0 0.0
    %v1067 = vand.u32 %v108, 4294901760
    %1068 = vmatpush1.msra.mxu0 %v1067
    %1069 = vmatprep.subr.mxu0 0.0
    %v1070 = vand.u32 %v109, 4294901760
    %1071 = vmatpush1.msra.mxu0 %v1070
    %1072 = vmatprep.subr.mxu0 0.0
    %v1073 = vand.u32 %v110, 4294901760
    %1074 = vmatpush1.msra.mxu0 %v1073
    %1075 = vmatprep.subr.mxu0 0.0
    %v1076 = vand.u32 %v111, 4294901760
    %1077 = vmatpush1.msra.mxu0 %v1076
    %1078 = vmatprep.subr.mxu0 0.0
    %v1079 = vand.u32 %v112, 4294901760
    %1080 = vmatpush1.msra.mxu0 %v1079
    %1081 = vmatprep.subr.mxu0 0.0
    %v1082 = vand.u32 %v113, 4294901760
    %1083 = vmatpush1.msra.mxu0 %v1082
    %1084 = vmatprep.subr.mxu0 0.0
    %v1085 = vand.u32 %v114, 4294901760
    %1086 = vmatpush1.msra.mxu0 %v1085
    %1087 = vmatprep.subr.mxu0 0.0
    %v1088 = vand.u32 %v115, 4294901760
    %1089 = vmatpush1.msra.mxu0 %v1088
    %1090 = vmatprep.subr.mxu0 0.0
    %v1091 = vand.u32 %v116, 4294901760
    %1092 = vmatpush1.msra.mxu0 %v1091
    %1093 = vmatprep.subr.mxu0 0.0
    %v1094 = vand.u32 %v117, 4294901760
    %1095 = vmatpush1.msra.mxu0 %v1094
    %1096 = vmatprep.subr.mxu0 0.0
    %v1097 = vand.u32 %v118, 4294901760
    %1098 = vmatpush1.msra.mxu0 %v1097
    %1099 = vmatprep.subr.mxu0 0.0
    %v1100 = vand.u32 %v119, 4294901760
    %1101 = vmatpush1.msra.mxu0 %v1100
    %1102 = vmatprep.subr.mxu0 0.0
    %v1103 = vand.u32 %v120, 4294901760
    %1104 = vmatpush1.msra.mxu0 %v1103
    %1105 = vmatprep.subr.mxu0 0.0
    %v1106 = vand.u32 %v121, 4294901760
    %1107 = vmatpush1.msra.mxu0 %v1106
    %1108 = vmatprep.subr.mxu0 0.0
    %v1109 = vand.u32 %v122, 4294901760
    %1110 = vmatpush1.msra.mxu0 %v1109
    %1111 = vmatprep.subr.mxu0 0.0
    %v1112 = vand.u32 %v123, 4294901760
    %1113 = vmatpush1.msra.mxu0 %v1112
    %1114 = vmatprep.subr.mxu0 0.0
    %v1115 = vand.u32 %v124, 4294901760
    %1116 = vmatpush1.msra.mxu0 %v1115
    %1117 = vmatprep.subr.mxu0 0.0
    %v1118 = vand.u32 %v125, 4294901760
    %1119 = vmatpush1.msra.mxu0 %v1118
    %1120 = vmatprep.subr.mxu0 0.0
    %v1121 = vand.u32 %v126, 4294901760
    %1122 = vmatpush1.msra.mxu0 %v1121
    %1123 = vmatprep.subr.mxu0 0.0
    %v1124 = vand.u32 %v127, 4294901760
    %1125 = vmatpush1.msra.mxu0 %v1124
    %1126 = vmatprep.subr.mxu0 0.0
    %v1127 = vand.u32 %v128, 4294901760
    %1128 = vmatpush1.msra.mxu0 %v1127
    %1129 = vmatprep.subr.mxu0 0.0
    %v1130 = vand.u32 %v129, 4294901760
    %1131 = vmatpush1.msra.mxu0 %v1130
    %1132 = vmatprep.subr.mxu0 0.0
    %v1133 = vand.u32 %v130, 4294901760
    %1134 = vmatpush1.msra.mxu0 %v1133
    %1135 = vmatprep.subr.mxu0 0.0
    %v1136 = vand.u32 %v131, 4294901760
    %1137 = vmatpush1.msra.mxu0 %v1136
    %1138 = vmatprep.subr.mxu0 0.0
    %v1139 = vand.u32 %v132, 4294901760
    %1140 = vmatpush1.msra.mxu0 %v1139
    %1141 = vmatprep.subr.mxu0 0.0
    %v1142 = vand.u32 %v133, 4294901760
    %1143 = vmatpush1.msra.mxu0 %v1142
    %v1144 = vand.u32 %v66, 4294901760
    %v1145 = vsub.f32 %v66, %v1144
    %v1146 = vand.u32 %v1145, 4294901760
    %v1147 = vsub.f32 %v1145, %v1146
    %v1148 = vand.u32 %v1147, 4294901760
    %1149 = vmatprep.mubr.f32.mxu0 %v1148
    %v1150 = vand.u32 %v65, 4294901760
    %v1151 = vsub.f32 %v65, %v1150
    %v1152 = vand.u32 %v1151, 4294901760
    %v1153 = vsub.f32 %v1151, %v1152
    %v1154 = vand.u32 %v1153, 4294901760
    %1155 = vmatmul.mubr.f32.gmra.mrb[0].mxu0 %v1154
    %v1156 = vpop.f32.mrb[0].mxu0
    %v1157 = vadd.f32 %v1045, %v1156
    %v1158 = vpop.f32.mrb[0].mxu0
    %1159 = vdwg.mxu0
    %1160 = vmatprep.subr.mxu0 0.0
    %v1161 = vand.u32 %v102, 4294901760
    %v1162 = vsub.f32 %v102, %v1161
    %v1163 = vand.u32 %v1162, 4294901760
    %v1164 = vsub.f32 %v1162, %v1163
    %v1165 = vand.u32 %v1164, 4294901760
    %1166 = vmatpush1.msra.mxu0 %v1165
    %1167 = vmatprep.subr.mxu0 0.0
    %v1168 = vand.u32 %v103, 4294901760
    %v1169 = vsub.f32 %v103, %v1168
    %v1170 = vand.u32 %v1169, 4294901760
    %v1171 = vsub.f32 %v1169, %v1170
    %v1172 = vand.u32 %v1171, 4294901760
    %1173 = vmatpush1.msra.mxu0 %v1172
    %1174 = vmatprep.subr.mxu0 0.0
    %v1175 = vand.u32 %v104, 4294901760
    %v1176 = vsub.f32 %v104, %v1175
    %v1177 = vand.u32 %v1176, 4294901760
    %v1178 = vsub.f32 %v1176, %v1177
    %v1179 = vand.u32 %v1178, 4294901760
    %1180 = vmatpush1.msra.mxu0 %v1179
    %1181 = vmatprep.subr.mxu0 0.0
    %v1182 = vand.u32 %v105, 4294901760
    %v1183 = vsub.f32 %v105, %v1182
    %v1184 = vand.u32 %v1183, 4294901760
    %v1185 = vsub.f32 %v1183, %v1184
    %v1186 = vand.u32 %v1185, 4294901760
    %1187 = vmatpush1.msra.mxu0 %v1186
    %1188 = vmatprep.subr.mxu0 0.0
    %v1189 = vand.u32 %v106, 4294901760
    %v1190 = vsub.f32 %v106, %v1189
    %v1191 = vand.u32 %v1190, 4294901760
    %v1192 = vsub.f32 %v1190, %v1191
    %v1193 = vand.u32 %v1192, 4294901760
    %1194 = vmatpush1.msra.mxu0 %v1193
    %1195 = vmatprep.subr.mxu0 0.0
    %v1196 = vand.u32 %v107, 4294901760
    %v1197 = vsub.f32 %v107, %v1196
    %v1198 = vand.u32 %v1197, 4294901760
    %v1199 = vsub.f32 %v1197, %v1198
    %v1200 = vand.u32 %v1199, 4294901760
    %1201 = vmatpush1.msra.mxu0 %v1200
    %1202 = vmatprep.subr.mxu0 0.0
    %v1203 = vand.u32 %v108, 4294901760
    %v1204 = vsub.f32 %v108, %v1203
    %v1205 = vand.u32 %v1204, 4294901760
    %v1206 = vsub.f32 %v1204, %v1205
    %v1207 = vand.u32 %v1206, 4294901760
    %1208 = vmatpush1.msra.mxu0 %v1207
    %1209 = vmatprep.subr.mxu0 0.0
    %v1210 = vand.u32 %v109, 4294901760
    %v1211 = vsub.f32 %v109, %v1210
    %v1212 = vand.u32 %v1211, 4294901760
    %v1213 = vsub.f32 %v1211, %v1212
    %v1214 = vand.u32 %v1213, 4294901760
    %1215 = vmatpush1.msra.mxu0 %v1214
    %1216 = vmatprep.subr.mxu0 0.0
    %v1217 = vand.u32 %v110, 4294901760
    %v1218 = vsub.f32 %v110, %v1217
    %v1219 = vand.u32 %v1218, 4294901760
    %v1220 = vsub.f32 %v1218, %v1219
    %v1221 = vand.u32 %v1220, 4294901760
    %1222 = vmatpush1.msra.mxu0 %v1221
    %1223 = vmatprep.subr.mxu0 0.0
    %v1224 = vand.u32 %v111, 4294901760
    %v1225 = vsub.f32 %v111, %v1224
    %v1226 = vand.u32 %v1225, 4294901760
    %v1227 = vsub.f32 %v1225, %v1226
    %v1228 = vand.u32 %v1227, 4294901760
    %1229 = vmatpush1.msra.mxu0 %v1228
    %1230 = vmatprep.subr.mxu0 0.0
    %v1231 = vand.u32 %v112, 4294901760
    %v1232 = vsub.f32 %v112, %v1231
    %v1233 = vand.u32 %v1232, 4294901760
    %v1234 = vsub.f32 %v1232, %v1233
    %v1235 = vand.u32 %v1234, 4294901760
    %1236 = vmatpush1.msra.mxu0 %v1235
    %1237 = vmatprep.subr.mxu0 0.0
    %v1238 = vand.u32 %v113, 4294901760
    %v1239 = vsub.f32 %v113, %v1238
    %v1240 = vand.u32 %v1239, 4294901760
    %v1241 = vsub.f32 %v1239, %v1240
    %v1242 = vand.u32 %v1241, 4294901760
    %1243 = vmatpush1.msra.mxu0 %v1242
    %1244 = vmatprep.subr.mxu0 0.0
    %v1245 = vand.u32 %v114, 4294901760
    %v1246 = vsub.f32 %v114, %v1245
    %v1247 = vand.u32 %v1246, 4294901760
    %v1248 = vsub.f32 %v1246, %v1247
    %v1249 = vand.u32 %v1248, 4294901760
    %1250 = vmatpush1.msra.mxu0 %v1249
    %1251 = vmatprep.subr.mxu0 0.0
    %v1252 = vand.u32 %v115, 4294901760
    %v1253 = vsub.f32 %v115, %v1252
    %v1254 = vand.u32 %v1253, 4294901760
    %v1255 = vsub.f32 %v1253, %v1254
    %v1256 = vand.u32 %v1255, 4294901760
    %1257 = vmatpush1.msra.mxu0 %v1256
    %1258 = vmatprep.subr.mxu0 0.0
    %v1259 = vand.u32 %v116, 4294901760
    %v1260 = vsub.f32 %v116, %v1259
    %v1261 = vand.u32 %v1260, 4294901760
    %v1262 = vsub.f32 %v1260, %v1261
    %v1263 = vand.u32 %v1262, 4294901760
    %1264 = vmatpush1.msra.mxu0 %v1263
    %1265 = vmatprep.subr.mxu0 0.0
    %v1266 = vand.u32 %v117, 4294901760
    %v1267 = vsub.f32 %v117, %v1266
    %v1268 = vand.u32 %v1267, 4294901760
    %v1269 = vsub.f32 %v1267, %v1268
    %v1270 = vand.u32 %v1269, 4294901760
    %1271 = vmatpush1.msra.mxu0 %v1270
    %1272 = vmatprep.subr.mxu0 0.0
    %v1273 = vand.u32 %v118, 4294901760
    %v1274 = vsub.f32 %v118, %v1273
    %v1275 = vand.u32 %v1274, 4294901760
    %v1276 = vsub.f32 %v1274, %v1275
    %v1277 = vand.u32 %v1276, 4294901760
    %1278 = vmatpush1.msra.mxu0 %v1277
    %1279 = vmatprep.subr.mxu0 0.0
    %v1280 = vand.u32 %v119, 4294901760
    %v1281 = vsub.f32 %v119, %v1280
    %v1282 = vand.u32 %v1281, 4294901760
    %v1283 = vsub.f32 %v1281, %v1282
    %v1284 = vand.u32 %v1283, 4294901760
    %1285 = vmatpush1.msra.mxu0 %v1284
    %1286 = vmatprep.subr.mxu0 0.0
    %v1287 = vand.u32 %v120, 4294901760
    %v1288 = vsub.f32 %v120, %v1287
    %v1289 = vand.u32 %v1288, 4294901760
    %v1290 = vsub.f32 %v1288, %v1289
    %v1291 = vand.u32 %v1290, 4294901760
    %1292 = vmatpush1.msra.mxu0 %v1291
    %1293 = vmatprep.subr.mxu0 0.0
    %v1294 = vand.u32 %v121, 4294901760
    %v1295 = vsub.f32 %v121, %v1294
    %v1296 = vand.u32 %v1295, 4294901760
    %v1297 = vsub.f32 %v1295, %v1296
    %v1298 = vand.u32 %v1297, 4294901760
    %1299 = vmatpush1.msra.mxu0 %v1298
    %1300 = vmatprep.subr.mxu0 0.0
    %v1301 = vand.u32 %v122, 4294901760
    %v1302 = vsub.f32 %v122, %v1301
    %v1303 = vand.u32 %v1302, 4294901760
    %v1304 = vsub.f32 %v1302, %v1303
    %v1305 = vand.u32 %v1304, 4294901760
    %1306 = vmatpush1.msra.mxu0 %v1305
    %1307 = vmatprep.subr.mxu0 0.0
    %v1308 = vand.u32 %v123, 4294901760
    %v1309 = vsub.f32 %v123, %v1308
    %v1310 = vand.u32 %v1309, 4294901760
    %v1311 = vsub.f32 %v1309, %v1310
    %v1312 = vand.u32 %v1311, 4294901760
    %1313 = vmatpush1.msra.mxu0 %v1312
    %1314 = vmatprep.subr.mxu0 0.0
    %v1315 = vand.u32 %v124, 4294901760
    %v1316 = vsub.f32 %v124, %v1315
    %v1317 = vand.u32 %v1316, 4294901760
    %v1318 = vsub.f32 %v1316, %v1317
    %v1319 = vand.u32 %v1318, 4294901760
    %1320 = vmatpush1.msra.mxu0 %v1319
    %1321 = vmatprep.subr.mxu0 0.0
    %v1322 = vand.u32 %v125, 4294901760
    %v1323 = vsub.f32 %v125, %v1322
    %v1324 = vand.u32 %v1323, 4294901760
    %v1325 = vsub.f32 %v1323, %v1324
    %v1326 = vand.u32 %v1325, 4294901760
    %1327 = vmatpush1.msra.mxu0 %v1326
    %1328 = vmatprep.subr.mxu0 0.0
    %v1329 = vand.u32 %v126, 4294901760
    %v1330 = vsub.f32 %v126, %v1329
    %v1331 = vand.u32 %v1330, 4294901760
    %v1332 = vsub.f32 %v1330, %v1331
    %v1333 = vand.u32 %v1332, 4294901760
    %1334 = vmatpush1.msra.mxu0 %v1333
    %1335 = vmatprep.subr.mxu0 0.0
    %v1336 = vand.u32 %v127, 4294901760
    %v1337 = vsub.f32 %v127, %v1336
    %v1338 = vand.u32 %v1337, 4294901760
    %v1339 = vsub.f32 %v1337, %v1338
    %v1340 = vand.u32 %v1339, 4294901760
    %1341 = vmatpush1.msra.mxu0 %v1340
    %1342 = vmatprep.subr.mxu0 0.0
    %v1343 = vand.u32 %v128, 4294901760
    %v1344 = vsub.f32 %v128, %v1343
    %v1345 = vand.u32 %v1344, 4294901760
    %v1346 = vsub.f32 %v1344, %v1345
    %v1347 = vand.u32 %v1346, 4294901760
    %1348 = vmatpush1.msra.mxu0 %v1347
    %1349 = vmatprep.subr.mxu0 0.0
    %v1350 = vand.u32 %v129, 4294901760
    %v1351 = vsub.f32 %v129, %v1350
    %v1352 = vand.u32 %v1351, 4294901760
    %v1353 = vsub.f32 %v1351, %v1352
    %v1354 = vand.u32 %v1353, 4294901760
    %1355 = vmatpush1.msra.mxu0 %v1354
    %1356 = vmatprep.subr.mxu0 0.0
    %v1357 = vand.u32 %v130, 4294901760
    %v1358 = vsub.f32 %v130, %v1357
    %v1359 = vand.u32 %v1358, 4294901760
    %v1360 = vsub.f32 %v1358, %v1359
    %v1361 = vand.u32 %v1360, 4294901760
    %1362 = vmatpush1.msra.mxu0 %v1361
    %1363 = vmatprep.subr.mxu0 0.0
    %v1364 = vand.u32 %v131, 4294901760
    %v1365 = vsub.f32 %v131, %v1364
    %v1366 = vand.u32 %v1365, 4294901760
    %v1367 = vsub.f32 %v1365, %v1366
    %v1368 = vand.u32 %v1367, 4294901760
    %1369 = vmatpush1.msra.mxu0 %v1368
    %1370 = vmatprep.subr.mxu0 0.0
    %v1371 = vand.u32 %v132, 4294901760
    %v1372 = vsub.f32 %v132, %v1371
    %v1373 = vand.u32 %v1372, 4294901760
    %v1374 = vsub.f32 %v1372, %v1373
    %v1375 = vand.u32 %v1374, 4294901760
    %1376 = vmatpush1.msra.mxu0 %v1375
    %1377 = vmatprep.subr.mxu0 0.0
    %v1378 = vand.u32 %v133, 4294901760
    %v1379 = vsub.f32 %v133, %v1378
    %v1380 = vand.u32 %v1379, 4294901760
    %v1381 = vsub.f32 %v1379, %v1380
    %v1382 = vand.u32 %v1381, 4294901760
    %1383 = vmatpush1.msra.mxu0 %v1382
    %v1384 = vand.u32 %v66, 4294901760
    %1385 = vmatprep.mubr.f32.mxu0 %v1384
    %v1386 = vand.u32 %v65, 4294901760
    %1387 = vmatmul.mubr.f32.gmra.mrb[0].mxu0 %v1386
    %v1388 = vpop.f32.mrb[0].mxu0
    %v1389 = vadd.f32 %v1157, %v1388
    %v1390 = vpop.f32.mrb[0].mxu0
    %1391 = vdwg.mxu0
    %1392 = vmatprep.subr.mxu0 0.0
    %v1393 = vand.u32 %v102, 4294901760
    %v1394 = vsub.f32 %v102, %v1393
    %1395 = vmatpush1.msra.mxu0 %v1394
    %1396 = vmatprep.subr.mxu0 0.0
    %v1397 = vand.u32 %v103, 4294901760
    %v1398 = vsub.f32 %v103, %v1397
    %1399 = vmatpush1.msra.mxu0 %v1398
    %1400 = vmatprep.subr.mxu0 0.0
    %v1401 = vand.u32 %v104, 4294901760
    %v1402 = vsub.f32 %v104, %v1401
    %1403 = vmatpush1.msra.mxu0 %v1402
    %1404 = vmatprep.subr.mxu0 0.0
    %v1405 = vand.u32 %v105, 4294901760
    %v1406 = vsub.f32 %v105, %v1405
    %1407 = vmatpush1.msra.mxu0 %v1406
    %1408 = vmatprep.subr.mxu0 0.0
    %v1409 = vand.u32 %v106, 4294901760
    %v1410 = vsub.f32 %v106, %v1409
    %1411 = vmatpush1.msra.mxu0 %v1410
    %1412 = vmatprep.subr.mxu0 0.0
    %v1413 = vand.u32 %v107, 4294901760
    %v1414 = vsub.f32 %v107, %v1413
    %1415 = vmatpush1.msra.mxu0 %v1414
    %1416 = vmatprep.subr.mxu0 0.0
    %v1417 = vand.u32 %v108, 4294901760
    %v1418 = vsub.f32 %v108, %v1417
    %1419 = vmatpush1.msra.mxu0 %v1418
    %1420 = vmatprep.subr.mxu0 0.0
    %v1421 = vand.u32 %v109, 4294901760
    %v1422 = vsub.f32 %v109, %v1421
    %1423 = vmatpush1.msra.mxu0 %v1422
    %1424 = vmatprep.subr.mxu0 0.0
    %v1425 = vand.u32 %v110, 4294901760
    %v1426 = vsub.f32 %v110, %v1425
    %1427 = vmatpush1.msra.mxu0 %v1426
    %1428 = vmatprep.subr.mxu0 0.0
    %v1429 = vand.u32 %v111, 4294901760
    %v1430 = vsub.f32 %v111, %v1429
    %1431 = vmatpush1.msra.mxu0 %v1430
    %1432 = vmatprep.subr.mxu0 0.0
    %v1433 = vand.u32 %v112, 4294901760
    %v1434 = vsub.f32 %v112, %v1433
    %1435 = vmatpush1.msra.mxu0 %v1434
    %1436 = vmatprep.subr.mxu0 0.0
    %v1437 = vand.u32 %v113, 4294901760
    %v1438 = vsub.f32 %v113, %v1437
    %1439 = vmatpush1.msra.mxu0 %v1438
    %1440 = vmatprep.subr.mxu0 0.0
    %v1441 = vand.u32 %v114, 4294901760
    %v1442 = vsub.f32 %v114, %v1441
    %1443 = vmatpush1.msra.mxu0 %v1442
    %1444 = vmatprep.subr.mxu0 0.0
    %v1445 = vand.u32 %v115, 4294901760
    %v1446 = vsub.f32 %v115, %v1445
    %1447 = vmatpush1.msra.mxu0 %v1446
    %1448 = vmatprep.subr.mxu0 0.0
    %v1449 = vand.u32 %v116, 4294901760
    %v1450 = vsub.f32 %v116, %v1449
    %1451 = vmatpush1.msra.mxu0 %v1450
    %1452 = vmatprep.subr.mxu0 0.0
    %v1453 = vand.u32 %v117, 4294901760
    %v1454 = vsub.f32 %v117, %v1453
    %1455 = vmatpush1.msra.mxu0 %v1454
    %1456 = vmatprep.subr.mxu0 0.0
    %v1457 = vand.u32 %v118, 4294901760
    %v1458 = vsub.f32 %v118, %v1457
    %1459 = vmatpush1.msra.mxu0 %v1458
    %1460 = vmatprep.subr.mxu0 0.0
    %v1461 = vand.u32 %v119, 4294901760
    %v1462 = vsub.f32 %v119, %v1461
    %1463 = vmatpush1.msra.mxu0 %v1462
    %1464 = vmatprep.subr.mxu0 0.0
    %v1465 = vand.u32 %v120, 4294901760
    %v1466 = vsub.f32 %v120, %v1465
    %1467 = vmatpush1.msra.mxu0 %v1466
    %1468 = vmatprep.subr.mxu0 0.0
    %v1469 = vand.u32 %v121, 4294901760
    %v1470 = vsub.f32 %v121, %v1469
    %1471 = vmatpush1.msra.mxu0 %v1470
    %1472 = vmatprep.subr.mxu0 0.0
    %v1473 = vand.u32 %v122, 4294901760
    %v1474 = vsub.f32 %v122, %v1473
    %1475 = vmatpush1.msra.mxu0 %v1474
    %1476 = vmatprep.subr.mxu0 0.0
    %v1477 = vand.u32 %v123, 4294901760
    %v1478 = vsub.f32 %v123, %v1477
    %1479 = vmatpush1.msra.mxu0 %v1478
    %1480 = vmatprep.subr.mxu0 0.0
    %v1481 = vand.u32 %v124, 4294901760
    %v1482 = vsub.f32 %v124, %v1481
    %1483 = vmatpush1.msra.mxu0 %v1482
    %1484 = vmatprep.subr.mxu0 0.0
    %v1485 = vand.u32 %v125, 4294901760
    %v1486 = vsub.f32 %v125, %v1485
    %1487 = vmatpush1.msra.mxu0 %v1486
    %1488 = vmatprep.subr.mxu0 0.0
    %v1489 = vand.u32 %v126, 4294901760
    %v1490 = vsub.f32 %v126, %v1489
    %1491 = vmatpush1.msra.mxu0 %v1490
    %1492 = vmatprep.subr.mxu0 0.0
    %v1493 = vand.u32 %v127, 4294901760
    %v1494 = vsub.f32 %v127, %v1493
    %1495 = vmatpush1.msra.mxu0 %v1494
    %1496 = vmatprep.subr.mxu0 0.0
    %v1497 = vand.u32 %v128, 4294901760
    %v1498 = vsub.f32 %v128, %v1497
    %1499 = vmatpush1.msra.mxu0 %v1498
    %1500 = vmatprep.subr.mxu0 0.0
    %v1501 = vand.u32 %v129, 4294901760
    %v1502 = vsub.f32 %v129, %v1501
    %1503 = vmatpush1.msra.mxu0 %v1502
    %1504 = vmatprep.subr.mxu0 0.0
    %v1505 = vand.u32 %v130, 4294901760
    %v1506 = vsub.f32 %v130, %v1505
    %1507 = vmatpush1.msra.mxu0 %v1506
    %1508 = vmatprep.subr.mxu0 0.0
    %v1509 = vand.u32 %v131, 4294901760
    %v1510 = vsub.f32 %v131, %v1509
    %1511 = vmatpush1.msra.mxu0 %v1510
    %1512 = vmatprep.subr.mxu0 0.0
    %v1513 = vand.u32 %v132, 4294901760
    %v1514 = vsub.f32 %v132, %v1513
    %1515 = vmatpush1.msra.mxu0 %v1514
    %1516 = vmatprep.subr.mxu0 0.0
    %v1517 = vand.u32 %v133, 4294901760
    %v1518 = vsub.f32 %v133, %v1517
    %1519 = vmatpush1.msra.mxu0 %v1518
    %v1520 = vand.u32 %v66, 4294901760
    %v1521 = vsub.f32 %v66, %v1520
    %1522 = vmatprep.mubr.f32.mxu0 %v1521
    %v1523 = vand.u32 %v65, 4294901760
    %v1524 = vsub.f32 %v65, %v1523
    %1525 = vmatmul.mubr.f32.gmra.mrb[0].mxu0 %v1524
    %v1526 = vpop.f32.mrb[0].mxu0
    %v1527 = vadd.f32 %v1389, %v1526
    %v1528 = vpop.f32.mrb[0].mxu0
    %1529 = vdwg.mxu0
    %1530 = vmatprep.subr.mxu0 0.0
    %v1531 = vand.u32 %v102, 4294901760
    %1532 = vmatpush1.msra.mxu0 %v1531
    %1533 = vmatprep.subr.mxu0 0.0
    %v1534 = vand.u32 %v103, 4294901760
    %1535 = vmatpush1.msra.mxu0 %v1534
    %1536 = vmatprep.subr.mxu0 0.0
    %v1537 = vand.u32 %v104, 4294901760
    %1538 = vmatpush1.msra.mxu0 %v1537
    %1539 = vmatprep.subr.mxu0 0.0
    %v1540 = vand.u32 %v105, 4294901760
    %1541 = vmatpush1.msra.mxu0 %v1540
    %1542 = vmatprep.subr.mxu0 0.0
    %v1543 = vand.u32 %v106, 4294901760
    %1544 = vmatpush1.msra.mxu0 %v1543
    %1545 = vmatprep.subr.mxu0 0.0
    %v1546 = vand.u32 %v107, 4294901760
    %1547 = vmatpush1.msra.mxu0 %v1546
    %1548 = vmatprep.subr.mxu0 0.0
    %v1549 = vand.u32 %v108, 4294901760
    %1550 = vmatpush1.msra.mxu0 %v1549
    %1551 = vmatprep.subr.mxu0 0.0
    %v1552 = vand.u32 %v109, 4294901760
    %1553 = vmatpush1.msra.mxu0 %v1552
    %1554 = vmatprep.subr.mxu0 0.0
    %v1555 = vand.u32 %v110, 4294901760
    %1556 = vmatpush1.msra.mxu0 %v1555
    %1557 = vmatprep.subr.mxu0 0.0
    %v1558 = vand.u32 %v111, 4294901760
    %1559 = vmatpush1.msra.mxu0 %v1558
    %1560 = vmatprep.subr.mxu0 0.0
    %v1561 = vand.u32 %v112, 4294901760
    %1562 = vmatpush1.msra.mxu0 %v1561
    %1563 = vmatprep.subr.mxu0 0.0
    %v1564 = vand.u32 %v113, 4294901760
    %1565 = vmatpush1.msra.mxu0 %v1564
    %1566 = vmatprep.subr.mxu0 0.0
    %v1567 = vand.u32 %v114, 4294901760
    %1568 = vmatpush1.msra.mxu0 %v1567
    %1569 = vmatprep.subr.mxu0 0.0
    %v1570 = vand.u32 %v115, 4294901760
    %1571 = vmatpush1.msra.mxu0 %v1570
    %1572 = vmatprep.subr.mxu0 0.0
    %v1573 = vand.u32 %v116, 4294901760
    %1574 = vmatpush1.msra.mxu0 %v1573
    %1575 = vmatprep.subr.mxu0 0.0
    %v1576 = vand.u32 %v117, 4294901760
    %1577 = vmatpush1.msra.mxu0 %v1576
    %1578 = vmatprep.subr.mxu0 0.0
    %v1579 = vand.u32 %v118, 4294901760
    %1580 = vmatpush1.msra.mxu0 %v1579
    %1581 = vmatprep.subr.mxu0 0.0
    %v1582 = vand.u32 %v119, 4294901760
    %1583 = vmatpush1.msra.mxu0 %v1582
    %1584 = vmatprep.subr.mxu0 0.0
    %v1585 = vand.u32 %v120, 4294901760
    %1586 = vmatpush1.msra.mxu0 %v1585
    %1587 = vmatprep.subr.mxu0 0.0
    %v1588 = vand.u32 %v121, 4294901760
    %1589 = vmatpush1.msra.mxu0 %v1588
    %1590 = vmatprep.subr.mxu0 0.0
    %v1591 = vand.u32 %v122, 4294901760
    %1592 = vmatpush1.msra.mxu0 %v1591
    %1593 = vmatprep.subr.mxu0 0.0
    %v1594 = vand.u32 %v123, 4294901760
    %1595 = vmatpush1.msra.mxu0 %v1594
    %1596 = vmatprep.subr.mxu0 0.0
    %v1597 = vand.u32 %v124, 4294901760
    %1598 = vmatpush1.msra.mxu0 %v1597
    %1599 = vmatprep.subr.mxu0 0.0
    %v1600 = vand.u32 %v125, 4294901760
    %1601 = vmatpush1.msra.mxu0 %v1600
    %1602 = vmatprep.subr.mxu0 0.0
    %v1603 = vand.u32 %v126, 4294901760
    %1604 = vmatpush1.msra.mxu0 %v1603
    %1605 = vmatprep.subr.mxu0 0.0
    %v1606 = vand.u32 %v127, 4294901760
    %1607 = vmatpush1.msra.mxu0 %v1606
    %1608 = vmatprep.subr.mxu0 0.0
    %v1609 = vand.u32 %v128, 4294901760
    %1610 = vmatpush1.msra.mxu0 %v1609
    %1611 = vmatprep.subr.mxu0 0.0
    %v1612 = vand.u32 %v129, 4294901760
    %1613 = vmatpush1.msra.mxu0 %v1612
    %1614 = vmatprep.subr.mxu0 0.0
    %v1615 = vand.u32 %v130, 4294901760
    %1616 = vmatpush1.msra.mxu0 %v1615
    %1617 = vmatprep.subr.mxu0 0.0
    %v1618 = vand.u32 %v131, 4294901760
    %1619 = vmatpush1.msra.mxu0 %v1618
    %1620 = vmatprep.subr.mxu0 0.0
    %v1621 = vand.u32 %v132, 4294901760
    %1622 = vmatpush1.msra.mxu0 %v1621
    %1623 = vmatprep.subr.mxu0 0.0
    %v1624 = vand.u32 %v133, 4294901760
    %1625 = vmatpush1.msra.mxu0 %v1624
    %v1626 = vand.u32 %v66, 4294901760
    %v1627 = vsub.f32 %v66, %v1626
    %v1628 = vand.u32 %v1627, 4294901760
    %1629 = vmatprep.mubr.f32.mxu0 %v1628
    %v1630 = vand.u32 %v65, 4294901760
    %v1631 = vsub.f32 %v65, %v1630
    %v1632 = vand.u32 %v1631, 4294901760
    %1633 = vmatmul.mubr.f32.gmra.mrb[0].mxu0 %v1632
    %v1634 = vpop.f32.mrb[0].mxu0
    %v1635 = vadd.f32 %v1527, %v1634
    %v1636 = vpop.f32.mrb[0].mxu0
    %1637 = vdwg.mxu0
    %1638 = vmatprep.subr.mxu0 0.0
    %v1639 = vand.u32 %v102, 4294901760
    %v1640 = vsub.f32 %v102, %v1639
    %v1641 = vand.u32 %v1640, 4294901760
    %1642 = vmatpush1.msra.mxu0 %v1641
    %1643 = vmatprep.subr.mxu0 0.0
    %v1644 = vand.u32 %v103, 4294901760
    %v1645 = vsub.f32 %v103, %v1644
    %v1646 = vand.u32 %v1645, 4294901760
    %1647 = vmatpush1.msra.mxu0 %v1646
    %1648 = vmatprep.subr.mxu0 0.0
    %v1649 = vand.u32 %v104, 4294901760
    %v1650 = vsub.f32 %v104, %v1649
    %v1651 = vand.u32 %v1650, 4294901760
    %1652 = vmatpush1.msra.mxu0 %v1651
    %1653 = vmatprep.subr.mxu0 0.0
    %v1654 = vand.u32 %v105, 4294901760
    %v1655 = vsub.f32 %v105, %v1654
    %v1656 = vand.u32 %v1655, 4294901760
    %1657 = vmatpush1.msra.mxu0 %v1656
    %1658 = vmatprep.subr.mxu0 0.0
    %v1659 = vand.u32 %v106, 4294901760
    %v1660 = vsub.f32 %v106, %v1659
    %v1661 = vand.u32 %v1660, 4294901760
    %1662 = vmatpush1.msra.mxu0 %v1661
    %1663 = vmatprep.subr.mxu0 0.0
    %v1664 = vand.u32 %v107, 4294901760
    %v1665 = vsub.f32 %v107, %v1664
    %v1666 = vand.u32 %v1665, 4294901760
    %1667 = vmatpush1.msra.mxu0 %v1666
    %1668 = vmatprep.subr.mxu0 0.0
    %v1669 = vand.u32 %v108, 4294901760
    %v1670 = vsub.f32 %v108, %v1669
    %v1671 = vand.u32 %v1670, 4294901760
    %1672 = vmatpush1.msra.mxu0 %v1671
    %1673 = vmatprep.subr.mxu0 0.0
    %v1674 = vand.u32 %v109, 4294901760
    %v1675 = vsub.f32 %v109, %v1674
    %v1676 = vand.u32 %v1675, 4294901760
    %1677 = vmatpush1.msra.mxu0 %v1676
    %1678 = vmatprep.subr.mxu0 0.0
    %v1679 = vand.u32 %v110, 4294901760
    %v1680 = vsub.f32 %v110, %v1679
    %v1681 = vand.u32 %v1680, 4294901760
    %1682 = vmatpush1.msra.mxu0 %v1681
    %1683 = vmatprep.subr.mxu0 0.0
    %v1684 = vand.u32 %v111, 4294901760
    %v1685 = vsub.f32 %v111, %v1684
    %v1686 = vand.u32 %v1685, 4294901760
    %1687 = vmatpush1.msra.mxu0 %v1686
    %1688 = vmatprep.subr.mxu0 0.0
    %v1689 = vand.u32 %v112, 4294901760
    %v1690 = vsub.f32 %v112, %v1689
    %v1691 = vand.u32 %v1690, 4294901760
    %1692 = vmatpush1.msra.mxu0 %v1691
    %1693 = vmatprep.subr.mxu0 0.0
    %v1694 = vand.u32 %v113, 4294901760
    %v1695 = vsub.f32 %v113, %v1694
    %v1696 = vand.u32 %v1695, 4294901760
    %1697 = vmatpush1.msra.mxu0 %v1696
    %1698 = vmatprep.subr.mxu0 0.0
    %v1699 = vand.u32 %v114, 4294901760
    %v1700 = vsub.f32 %v114, %v1699
    %v1701 = vand.u32 %v1700, 4294901760
    %1702 = vmatpush1.msra.mxu0 %v1701
    %1703 = vmatprep.subr.mxu0 0.0
    %v1704 = vand.u32 %v115, 4294901760
    %v1705 = vsub.f32 %v115, %v1704
    %v1706 = vand.u32 %v1705, 4294901760
    %1707 = vmatpush1.msra.mxu0 %v1706
    %1708 = vmatprep.subr.mxu0 0.0
    %v1709 = vand.u32 %v116, 4294901760
    %v1710 = vsub.f32 %v116, %v1709
    %v1711 = vand.u32 %v1710, 4294901760
    %1712 = vmatpush1.msra.mxu0 %v1711
    %1713 = vmatprep.subr.mxu0 0.0
    %v1714 = vand.u32 %v117, 4294901760
    %v1715 = vsub.f32 %v117, %v1714
    %v1716 = vand.u32 %v1715, 4294901760
    %1717 = vmatpush1.msra.mxu0 %v1716
    %1718 = vmatprep.subr.mxu0 0.0
    %v1719 = vand.u32 %v118, 4294901760
    %v1720 = vsub.f32 %v118, %v1719
    %v1721 = vand.u32 %v1720, 4294901760
    %1722 = vmatpush1.msra.mxu0 %v1721
    %1723 = vmatprep.subr.mxu0 0.0
    %v1724 = vand.u32 %v119, 4294901760
    %v1725 = vsub.f32 %v119, %v1724
    %v1726 = vand.u32 %v1725, 4294901760
    %1727 = vmatpush1.msra.mxu0 %v1726
    %1728 = vmatprep.subr.mxu0 0.0
    %v1729 = vand.u32 %v120, 4294901760
    %v1730 = vsub.f32 %v120, %v1729
    %v1731 = vand.u32 %v1730, 4294901760
    %1732 = vmatpush1.msra.mxu0 %v1731
    %1733 = vmatprep.subr.mxu0 0.0
    %v1734 = vand.u32 %v121, 4294901760
    %v1735 = vsub.f32 %v121, %v1734
    %v1736 = vand.u32 %v1735, 4294901760
    %1737 = vmatpush1.msra.mxu0 %v1736
    %1738 = vmatprep.subr.mxu0 0.0
    %v1739 = vand.u32 %v122, 4294901760
    %v1740 = vsub.f32 %v122, %v1739
    %v1741 = vand.u32 %v1740, 4294901760
    %1742 = vmatpush1.msra.mxu0 %v1741
    %1743 = vmatprep.subr.mxu0 0.0
    %v1744 = vand.u32 %v123, 4294901760
    %v1745 = vsub.f32 %v123, %v1744
    %v1746 = vand.u32 %v1745, 4294901760
    %1747 = vmatpush1.msra.mxu0 %v1746
    %1748 = vmatprep.subr.mxu0 0.0
    %v1749 = vand.u32 %v124, 4294901760
    %v1750 = vsub.f32 %v124, %v1749
    %v1751 = vand.u32 %v1750, 4294901760
    %1752 = vmatpush1.msra.mxu0 %v1751
    %1753 = vmatprep.subr.mxu0 0.0
    %v1754 = vand.u32 %v125, 4294901760
    %v1755 = vsub.f32 %v125, %v1754
    %v1756 = vand.u32 %v1755, 4294901760
    %1757 = vmatpush1.msra.mxu0 %v1756
    %1758 = vmatprep.subr.mxu0 0.0
    %v1759 = vand.u32 %v126, 4294901760
    %v1760 = vsub.f32 %v126, %v1759
    %v1761 = vand.u32 %v1760, 4294901760
    %1762 = vmatpush1.msra.mxu0 %v1761
    %1763 = vmatprep.subr.mxu0 0.0
    %v1764 = vand.u32 %v127, 4294901760
    %v1765 = vsub.f32 %v127, %v1764
    %v1766 = vand.u32 %v1765, 4294901760
    %1767 = vmatpush1.msra.mxu0 %v1766
    %1768 = vmatprep.subr.mxu0 0.0
    %v1769 = vand.u32 %v128, 4294901760
    %v1770 = vsub.f32 %v128, %v1769
    %v1771 = vand.u32 %v1770, 4294901760
    %1772 = vmatpush1.msra.mxu0 %v1771
    %1773 = vmatprep.subr.mxu0 0.0
    %v1774 = vand.u32 %v129, 4294901760
    %v1775 = vsub.f32 %v129, %v1774
    %v1776 = vand.u32 %v1775, 4294901760
    %1777 = vmatpush1.msra.mxu0 %v1776
    %1778 = vmatprep.subr.mxu0 0.0
    %v1779 = vand.u32 %v130, 4294901760
    %v1780 = vsub.f32 %v130, %v1779
    %v1781 = vand.u32 %v1780, 4294901760
    %1782 = vmatpush1.msra.mxu0 %v1781
    %1783 = vmatprep.subr.mxu0 0.0
    %v1784 = vand.u32 %v131, 4294901760
    %v1785 = vsub.f32 %v131, %v1784
    %v1786 = vand.u32 %v1785, 4294901760
    %1787 = vmatpush1.msra.mxu0 %v1786
    %1788 = vmatprep.subr.mxu0 0.0
    %v1789 = vand.u32 %v132, 4294901760
    %v1790 = vsub.f32 %v132, %v1789
    %v1791 = vand.u32 %v1790, 4294901760
    %1792 = vmatpush1.msra.mxu0 %v1791
    %1793 = vmatprep.subr.mxu0 0.0
    %v1794 = vand.u32 %v133, 4294901760
    %v1795 = vsub.f32 %v133, %v1794
    %v1796 = vand.u32 %v1795, 4294901760
    %1797 = vmatpush1.msra.mxu0 %v1796
    %v1798 = vand.u32 %v66, 4294901760
    %1799 = vmatprep.mubr.f32.mxu0 %v1798
    %v1800 = vand.u32 %v65, 4294901760
    %1801 = vmatmul.mubr.f32.gmra.mrb[0].mxu0 %v1800
    %v1802 = vpop.f32.mrb[0].mxu0
    %v1803 = vadd.f32 %v1635, %v1802
    %v1804 = vpop.f32.mrb[0].mxu0
    %1805 = vdwg.mxu0
    %1806 = vmatprep.subr.mxu0 0.0
    %v1807 = vand.u32 %v102, 4294901760
    %1808 = vmatpush1.msra.mxu0 %v1807
    %1809 = vmatprep.subr.mxu0 0.0
    %v1810 = vand.u32 %v103, 4294901760
    %1811 = vmatpush1.msra.mxu0 %v1810
    %1812 = vmatprep.subr.mxu0 0.0
    %v1813 = vand.u32 %v104, 4294901760
    %1814 = vmatpush1.msra.mxu0 %v1813
    %1815 = vmatprep.subr.mxu0 0.0
    %v1816 = vand.u32 %v105, 4294901760
    %1817 = vmatpush1.msra.mxu0 %v1816
    %1818 = vmatprep.subr.mxu0 0.0
    %v1819 = vand.u32 %v106, 4294901760
    %1820 = vmatpush1.msra.mxu0 %v1819
    %1821 = vmatprep.subr.mxu0 0.0
    %v1822 = vand.u32 %v107, 4294901760
    %1823 = vmatpush1.msra.mxu0 %v1822
    %1824 = vmatprep.subr.mxu0 0.0
    %v1825 = vand.u32 %v108, 4294901760
    %1826 = vmatpush1.msra.mxu0 %v1825
    %1827 = vmatprep.subr.mxu0 0.0
    %v1828 = vand.u32 %v109, 4294901760
    %1829 = vmatpush1.msra.mxu0 %v1828
    %1830 = vmatprep.subr.mxu0 0.0
    %v1831 = vand.u32 %v110, 4294901760
    %1832 = vmatpush1.msra.mxu0 %v1831
    %1833 = vmatprep.subr.mxu0 0.0
    %v1834 = vand.u32 %v111, 4294901760
    %1835 = vmatpush1.msra.mxu0 %v1834
    %1836 = vmatprep.subr.mxu0 0.0
    %v1837 = vand.u32 %v112, 4294901760
    %1838 = vmatpush1.msra.mxu0 %v1837
    %1839 = vmatprep.subr.mxu0 0.0
    %v1840 = vand.u32 %v113, 4294901760
    %1841 = vmatpush1.msra.mxu0 %v1840
    %1842 = vmatprep.subr.mxu0 0.0
    %v1843 = vand.u32 %v114, 4294901760
    %1844 = vmatpush1.msra.mxu0 %v1843
    %1845 = vmatprep.subr.mxu0 0.0
    %v1846 = vand.u32 %v115, 4294901760
    %1847 = vmatpush1.msra.mxu0 %v1846
    %1848 = vmatprep.subr.mxu0 0.0
    %v1849 = vand.u32 %v116, 4294901760
    %1850 = vmatpush1.msra.mxu0 %v1849
    %1851 = vmatprep.subr.mxu0 0.0
    %v1852 = vand.u32 %v117, 4294901760
    %1853 = vmatpush1.msra.mxu0 %v1852
    %1854 = vmatprep.subr.mxu0 0.0
    %v1855 = vand.u32 %v118, 4294901760
    %1856 = vmatpush1.msra.mxu0 %v1855
    %1857 = vmatprep.subr.mxu0 0.0
    %v1858 = vand.u32 %v119, 4294901760
    %1859 = vmatpush1.msra.mxu0 %v1858
    %1860 = vmatprep.subr.mxu0 0.0
    %v1861 = vand.u32 %v120, 4294901760
    %1862 = vmatpush1.msra.mxu0 %v1861
    %1863 = vmatprep.subr.mxu0 0.0
    %v1864 = vand.u32 %v121, 4294901760
    %1865 = vmatpush1.msra.mxu0 %v1864
    %1866 = vmatprep.subr.mxu0 0.0
    %v1867 = vand.u32 %v122, 4294901760
    %1868 = vmatpush1.msra.mxu0 %v1867
    %1869 = vmatprep.subr.mxu0 0.0
    %v1870 = vand.u32 %v123, 4294901760
    %1871 = vmatpush1.msra.mxu0 %v1870
    %1872 = vmatprep.subr.mxu0 0.0
    %v1873 = vand.u32 %v124, 4294901760
    %1874 = vmatpush1.msra.mxu0 %v1873
    %1875 = vmatprep.subr.mxu0 0.0
    %v1876 = vand.u32 %v125, 4294901760
    %1877 = vmatpush1.msra.mxu0 %v1876
    %1878 = vmatprep.subr.mxu0 0.0
    %v1879 = vand.u32 %v126, 4294901760
    %1880 = vmatpush1.msra.mxu0 %v1879
    %1881 = vmatprep.subr.mxu0 0.0
    %v1882 = vand.u32 %v127, 4294901760
    %1883 = vmatpush1.msra.mxu0 %v1882
    %1884 = vmatprep.subr.mxu0 0.0
    %v1885 = vand.u32 %v128, 4294901760
    %1886 = vmatpush1.msra.mxu0 %v1885
    %1887 = vmatprep.subr.mxu0 0.0
    %v1888 = vand.u32 %v129, 4294901760
    %1889 = vmatpush1.msra.mxu0 %v1888
    %1890 = vmatprep.subr.mxu0 0.0
    %v1891 = vand.u32 %v130, 4294901760
    %1892 = vmatpush1.msra.mxu0 %v1891
    %1893 = vmatprep.subr.mxu0 0.0
    %v1894 = vand.u32 %v131, 4294901760
    %1895 = vmatpush1.msra.mxu0 %v1894
    %1896 = vmatprep.subr.mxu0 0.0
    %v1897 = vand.u32 %v132, 4294901760
    %1898 = vmatpush1.msra.mxu0 %v1897
    %1899 = vmatprep.subr.mxu0 0.0
    %v1900 = vand.u32 %v133, 4294901760
    %1901 = vmatpush1.msra.mxu0 %v1900
    %v1902 = vand.u32 %v66, 4294901760
    %1903 = vmatprep.mubr.f32.mxu0 %v1902
    %v1904 = vand.u32 %v65, 4294901760
    %1905 = vmatmul.mubr.f32.gmra.mrb[0].mxu0 %v1904
    %v1906 = vpop.f32.mrb[0].mxu0
    %v1907 = vadd.f32 %v1803, %v1906
    %v1908 = vpop.f32.mrb[0].mxu0
    %1909 = vdwg.mxu0
    %1910 = vmatprep.subr.mxu0 0.0
    %v1911 = vand.u32 %v134, 4294901760
    %1912 = vmatpush1.msra.mxu0 %v1911
    %1913 = vmatprep.subr.mxu0 0.0
    %v1914 = vand.u32 %v135, 4294901760
    %1915 = vmatpush1.msra.mxu0 %v1914
    %1916 = vmatprep.subr.mxu0 0.0
    %v1917 = vand.u32 %v136, 4294901760
    %1918 = vmatpush1.msra.mxu0 %v1917
    %1919 = vmatprep.subr.mxu0 0.0
    %v1920 = vand.u32 %v137, 4294901760
    %1921 = vmatpush1.msra.mxu0 %v1920
    %1922 = vmatprep.subr.mxu0 0.0
    %v1923 = vand.u32 %v138, 4294901760
    %1924 = vmatpush1.msra.mxu0 %v1923
    %1925 = vmatprep.subr.mxu0 0.0
    %v1926 = vand.u32 %v139, 4294901760
    %1927 = vmatpush1.msra.mxu0 %v1926
    %1928 = vmatprep.subr.mxu0 0.0
    %v1929 = vand.u32 %v140, 4294901760
    %1930 = vmatpush1.msra.mxu0 %v1929
    %1931 = vmatprep.subr.mxu0 0.0
    %v1932 = vand.u32 %v141, 4294901760
    %1933 = vmatpush1.msra.mxu0 %v1932
    %1934 = vmatprep.subr.mxu0 0.0
    %v1935 = vand.u32 %v142, 4294901760
    %1936 = vmatpush1.msra.mxu0 %v1935
    %1937 = vmatprep.subr.mxu0 0.0
    %v1938 = vand.u32 %v143, 4294901760
    %1939 = vmatpush1.msra.mxu0 %v1938
    %1940 = vmatprep.subr.mxu0 0.0
    %v1941 = vand.u32 %v144, 4294901760
    %1942 = vmatpush1.msra.mxu0 %v1941
    %1943 = vmatprep.subr.mxu0 0.0
    %v1944 = vand.u32 %v145, 4294901760
    %1945 = vmatpush1.msra.mxu0 %v1944
    %1946 = vmatprep.subr.mxu0 0.0
    %v1947 = vand.u32 %v146, 4294901760
    %1948 = vmatpush1.msra.mxu0 %v1947
    %1949 = vmatprep.subr.mxu0 0.0
    %v1950 = vand.u32 %v147, 4294901760
    %1951 = vmatpush1.msra.mxu0 %v1950
    %1952 = vmatprep.subr.mxu0 0.0
    %v1953 = vand.u32 %v148, 4294901760
    %1954 = vmatpush1.msra.mxu0 %v1953
    %1955 = vmatprep.subr.mxu0 0.0
    %v1956 = vand.u32 %v149, 4294901760
    %1957 = vmatpush1.msra.mxu0 %v1956
    %1958 = vmatprep.subr.mxu0 0.0
    %v1959 = vand.u32 %v150, 4294901760
    %1960 = vmatpush1.msra.mxu0 %v1959
    %1961 = vmatprep.subr.mxu0 0.0
    %v1962 = vand.u32 %v151, 4294901760
    %1963 = vmatpush1.msra.mxu0 %v1962
    %1964 = vmatprep.subr.mxu0 0.0
    %v1965 = vand.u32 %v152, 4294901760
    %1966 = vmatpush1.msra.mxu0 %v1965
    %1967 = vmatprep.subr.mxu0 0.0
    %v1968 = vand.u32 %v153, 4294901760
    %1969 = vmatpush1.msra.mxu0 %v1968
    %1970 = vmatprep.subr.mxu0 0.0
    %v1971 = vand.u32 %v154, 4294901760
    %1972 = vmatpush1.msra.mxu0 %v1971
    %1973 = vmatprep.subr.mxu0 0.0
    %v1974 = vand.u32 %v155, 4294901760
    %1975 = vmatpush1.msra.mxu0 %v1974
    %1976 = vmatprep.subr.mxu0 0.0
    %v1977 = vand.u32 %v156, 4294901760
    %1978 = vmatpush1.msra.mxu0 %v1977
    %1979 = vmatprep.subr.mxu0 0.0
    %v1980 = vand.u32 %v157, 4294901760
    %1981 = vmatpush1.msra.mxu0 %v1980
    %1982 = vmatprep.subr.mxu0 0.0
    %v1983 = vand.u32 %v158, 4294901760
    %1984 = vmatpush1.msra.mxu0 %v1983
    %1985 = vmatprep.subr.mxu0 0.0
    %v1986 = vand.u32 %v159, 4294901760
    %1987 = vmatpush1.msra.mxu0 %v1986
    %1988 = vmatprep.subr.mxu0 0.0
    %v1989 = vand.u32 %v160, 4294901760
    %1990 = vmatpush1.msra.mxu0 %v1989
    %1991 = vmatprep.subr.mxu0 0.0
    %v1992 = vand.u32 %v161, 4294901760
    %1993 = vmatpush1.msra.mxu0 %v1992
    %1994 = vmatprep.subr.mxu0 0.0
    %v1995 = vand.u32 %v162, 4294901760
    %1996 = vmatpush1.msra.mxu0 %v1995
    %1997 = vmatprep.subr.mxu0 0.0
    %v1998 = vand.u32 %v163, 4294901760
    %1999 = vmatpush1.msra.mxu0 %v1998
    %2000 = vmatprep.subr.mxu0 0.0
    %v2001 = vand.u32 %v164, 4294901760
    %2002 = vmatpush1.msra.mxu0 %v2001
    %2003 = vmatprep.subr.mxu0 0.0
    %v2004 = vand.u32 %v165, 4294901760
    %2005 = vmatpush1.msra.mxu0 %v2004
    %v2006 = vand.u32 %v68, 4294901760
    %v2007 = vsub.f32 %v68, %v2006
    %v2008 = vand.u32 %v2007, 4294901760
    %v2009 = vsub.f32 %v2007, %v2008
    %v2010 = vand.u32 %v2009, 4294901760
    %2011 = vmatprep.mubr.f32.mxu0 %v2010
    %v2012 = vand.u32 %v67, 4294901760
    %v2013 = vsub.f32 %v67, %v2012
    %v2014 = vand.u32 %v2013, 4294901760
    %v2015 = vsub.f32 %v2013, %v2014
    %v2016 = vand.u32 %v2015, 4294901760
    %2017 = vmatmul.mubr.f32.gmra.mrb[0].mxu0 %v2016
    %v2018 = vpop.f32.mrb[0].mxu0
    %v2019 = vadd.f32 %v1907, %v2018
    %v2020 = vpop.f32.mrb[0].mxu0
    %2021 = vdwg.mxu0
    %2022 = vmatprep.subr.mxu0 0.0
    %v2023 = vand.u32 %v134, 4294901760
    %v2024 = vsub.f32 %v134, %v2023
    %v2025 = vand.u32 %v2024, 4294901760
    %v2026 = vsub.f32 %v2024, %v2025
    %v2027 = vand.u32 %v2026, 4294901760
    %2028 = vmatpush1.msra.mxu0 %v2027
    %2029 = vmatprep.subr.mxu0 0.0
    %v2030 = vand.u32 %v135, 4294901760
    %v2031 = vsub.f32 %v135, %v2030
    %v2032 = vand.u32 %v2031, 4294901760
    %v2033 = vsub.f32 %v2031, %v2032
    %v2034 = vand.u32 %v2033, 4294901760
    %2035 = vmatpush1.msra.mxu0 %v2034
    %2036 = vmatprep.subr.mxu0 0.0
    %v2037 = vand.u32 %v136, 4294901760
    %v2038 = vsub.f32 %v136, %v2037
    %v2039 = vand.u32 %v2038, 4294901760
    %v2040 = vsub.f32 %v2038, %v2039
    %v2041 = vand.u32 %v2040, 4294901760
    %2042 = vmatpush1.msra.mxu0 %v2041
    %2043 = vmatprep.subr.mxu0 0.0
    %v2044 = vand.u32 %v137, 4294901760
    %v2045 = vsub.f32 %v137, %v2044
    %v2046 = vand.u32 %v2045, 4294901760
    %v2047 = vsub.f32 %v2045, %v2046
    %v2048 = vand.u32 %v2047, 4294901760
    %2049 = vmatpush1.msra.mxu0 %v2048
    %2050 = vmatprep.subr.mxu0 0.0
    %v2051 = vand.u32 %v138, 4294901760
    %v2052 = vsub.f32 %v138, %v2051
    %v2053 = vand.u32 %v2052, 4294901760
    %v2054 = vsub.f32 %v2052, %v2053
    %v2055 = vand.u32 %v2054, 4294901760
    %2056 = vmatpush1.msra.mxu0 %v2055
    %2057 = vmatprep.subr.mxu0 0.0
    %v2058 = vand.u32 %v139, 4294901760
    %v2059 = vsub.f32 %v139, %v2058
    %v2060 = vand.u32 %v2059, 4294901760
    %v2061 = vsub.f32 %v2059, %v2060
    %v2062 = vand.u32 %v2061, 4294901760
    %2063 = vmatpush1.msra.mxu0 %v2062
    %2064 = vmatprep.subr.mxu0 0.0
    %v2065 = vand.u32 %v140, 4294901760
    %v2066 = vsub.f32 %v140, %v2065
    %v2067 = vand.u32 %v2066, 4294901760
    %v2068 = vsub.f32 %v2066, %v2067
    %v2069 = vand.u32 %v2068, 4294901760
    %2070 = vmatpush1.msra.mxu0 %v2069
    %2071 = vmatprep.subr.mxu0 0.0
    %v2072 = vand.u32 %v141, 4294901760
    %v2073 = vsub.f32 %v141, %v2072
    %v2074 = vand.u32 %v2073, 4294901760
    %v2075 = vsub.f32 %v2073, %v2074
    %v2076 = vand.u32 %v2075, 4294901760
    %2077 = vmatpush1.msra.mxu0 %v2076
    %2078 = vmatprep.subr.mxu0 0.0
    %v2079 = vand.u32 %v142, 4294901760
    %v2080 = vsub.f32 %v142, %v2079
    %v2081 = vand.u32 %v2080, 4294901760
    %v2082 = vsub.f32 %v2080, %v2081
    %v2083 = vand.u32 %v2082, 4294901760
    %2084 = vmatpush1.msra.mxu0 %v2083
    %2085 = vmatprep.subr.mxu0 0.0
    %v2086 = vand.u32 %v143, 4294901760
    %v2087 = vsub.f32 %v143, %v2086
    %v2088 = vand.u32 %v2087, 4294901760
    %v2089 = vsub.f32 %v2087, %v2088
    %v2090 = vand.u32 %v2089, 4294901760
    %2091 = vmatpush1.msra.mxu0 %v2090
    %2092 = vmatprep.subr.mxu0 0.0
    %v2093 = vand.u32 %v144, 4294901760
    %v2094 = vsub.f32 %v144, %v2093
    %v2095 = vand.u32 %v2094, 4294901760
    %v2096 = vsub.f32 %v2094, %v2095
    %v2097 = vand.u32 %v2096, 4294901760
    %2098 = vmatpush1.msra.mxu0 %v2097
    %2099 = vmatprep.subr.mxu0 0.0
    %v2100 = vand.u32 %v145, 4294901760
    %v2101 = vsub.f32 %v145, %v2100
    %v2102 = vand.u32 %v2101, 4294901760
    %v2103 = vsub.f32 %v2101, %v2102
    %v2104 = vand.u32 %v2103, 4294901760
    %2105 = vmatpush1.msra.mxu0 %v2104
    %2106 = vmatprep.subr.mxu0 0.0
    %v2107 = vand.u32 %v146, 4294901760
    %v2108 = vsub.f32 %v146, %v2107
    %v2109 = vand.u32 %v2108, 4294901760
    %v2110 = vsub.f32 %v2108, %v2109
    %v2111 = vand.u32 %v2110, 4294901760
    %2112 = vmatpush1.msra.mxu0 %v2111
    %2113 = vmatprep.subr.mxu0 0.0
    %v2114 = vand.u32 %v147, 4294901760
    %v2115 = vsub.f32 %v147, %v2114
    %v2116 = vand.u32 %v2115, 4294901760
    %v2117 = vsub.f32 %v2115, %v2116
    %v2118 = vand.u32 %v2117, 4294901760
    %2119 = vmatpush1.msra.mxu0 %v2118
    %2120 = vmatprep.subr.mxu0 0.0
    %v2121 = vand.u32 %v148, 4294901760
    %v2122 = vsub.f32 %v148, %v2121
    %v2123 = vand.u32 %v2122, 4294901760
    %v2124 = vsub.f32 %v2122, %v2123
    %v2125 = vand.u32 %v2124, 4294901760
    %2126 = vmatpush1.msra.mxu0 %v2125
    %2127 = vmatprep.subr.mxu0 0.0
    %v2128 = vand.u32 %v149, 4294901760
    %v2129 = vsub.f32 %v149, %v2128
    %v2130 = vand.u32 %v2129, 4294901760
    %v2131 = vsub.f32 %v2129, %v2130
    %v2132 = vand.u32 %v2131, 4294901760
    %2133 = vmatpush1.msra.mxu0 %v2132
    %2134 = vmatprep.subr.mxu0 0.0
    %v2135 = vand.u32 %v150, 4294901760
    %v2136 = vsub.f32 %v150, %v2135
    %v2137 = vand.u32 %v2136, 4294901760
    %v2138 = vsub.f32 %v2136, %v2137
    %v2139 = vand.u32 %v2138, 4294901760
    %2140 = vmatpush1.msra.mxu0 %v2139
    %2141 = vmatprep.subr.mxu0 0.0
    %v2142 = vand.u32 %v151, 4294901760
    %v2143 = vsub.f32 %v151, %v2142
    %v2144 = vand.u32 %v2143, 4294901760
    %v2145 = vsub.f32 %v2143, %v2144
    %v2146 = vand.u32 %v2145, 4294901760
    %2147 = vmatpush1.msra.mxu0 %v2146
    %2148 = vmatprep.subr.mxu0 0.0
    %v2149 = vand.u32 %v152, 4294901760
    %v2150 = vsub.f32 %v152, %v2149
    %v2151 = vand.u32 %v2150, 4294901760
    %v2152 = vsub.f32 %v2150, %v2151
    %v2153 = vand.u32 %v2152, 4294901760
    %2154 = vmatpush1.msra.mxu0 %v2153
    %2155 = vmatprep.subr.mxu0 0.0
    %v2156 = vand.u32 %v153, 4294901760
    %v2157 = vsub.f32 %v153, %v2156
    %v2158 = vand.u32 %v2157, 4294901760
    %v2159 = vsub.f32 %v2157, %v2158
    %v2160 = vand.u32 %v2159, 4294901760
    %2161 = vmatpush1.msra.mxu0 %v2160
    %2162 = vmatprep.subr.mxu0 0.0
    %v2163 = vand.u32 %v154, 4294901760
    %v2164 = vsub.f32 %v154, %v2163
    %v2165 = vand.u32 %v2164, 4294901760
    %v2166 = vsub.f32 %v2164, %v2165
    %v2167 = vand.u32 %v2166, 4294901760
    %2168 = vmatpush1.msra.mxu0 %v2167
    %2169 = vmatprep.subr.mxu0 0.0
    %v2170 = vand.u32 %v155, 4294901760
    %v2171 = vsub.f32 %v155, %v2170
    %v2172 = vand.u32 %v2171, 4294901760
    %v2173 = vsub.f32 %v2171, %v2172
    %v2174 = vand.u32 %v2173, 4294901760
    %2175 = vmatpush1.msra.mxu0 %v2174
    %2176 = vmatprep.subr.mxu0 0.0
    %v2177 = vand.u32 %v156, 4294901760
    %v2178 = vsub.f32 %v156, %v2177
    %v2179 = vand.u32 %v2178, 4294901760
    %v2180 = vsub.f32 %v2178, %v2179
    %v2181 = vand.u32 %v2180, 4294901760
    %2182 = vmatpush1.msra.mxu0 %v2181
    %2183 = vmatprep.subr.mxu0 0.0
    %v2184 = vand.u32 %v157, 4294901760
    %v2185 = vsub.f32 %v157, %v2184
    %v2186 = vand.u32 %v2185, 4294901760
    %v2187 = vsub.f32 %v2185, %v2186
    %v2188 = vand.u32 %v2187, 4294901760
    %2189 = vmatpush1.msra.mxu0 %v2188
    %2190 = vmatprep.subr.mxu0 0.0
    %v2191 = vand.u32 %v158, 4294901760
    %v2192 = vsub.f32 %v158, %v2191
    %v2193 = vand.u32 %v2192, 4294901760
    %v2194 = vsub.f32 %v2192, %v2193
    %v2195 = vand.u32 %v2194, 4294901760
    %2196 = vmatpush1.msra.mxu0 %v2195
    %2197 = vmatprep.subr.mxu0 0.0
    %v2198 = vand.u32 %v159, 4294901760
    %v2199 = vsub.f32 %v159, %v2198
    %v2200 = vand.u32 %v2199, 4294901760
    %v2201 = vsub.f32 %v2199, %v2200
    %v2202 = vand.u32 %v2201, 4294901760
    %2203 = vmatpush1.msra.mxu0 %v2202
    %2204 = vmatprep.subr.mxu0 0.0
    %v2205 = vand.u32 %v160, 4294901760
    %v2206 = vsub.f32 %v160, %v2205
    %v2207 = vand.u32 %v2206, 4294901760
    %v2208 = vsub.f32 %v2206, %v2207
    %v2209 = vand.u32 %v2208, 4294901760
    %2210 = vmatpush1.msra.mxu0 %v2209
    %2211 = vmatprep.subr.mxu0 0.0
    %v2212 = vand.u32 %v161, 4294901760
    %v2213 = vsub.f32 %v161, %v2212
    %v2214 = vand.u32 %v2213, 4294901760
    %v2215 = vsub.f32 %v2213, %v2214
    %v2216 = vand.u32 %v2215, 4294901760
    %2217 = vmatpush1.msra.mxu0 %v2216
    %2218 = vmatprep.subr.mxu0 0.0
    %v2219 = vand.u32 %v162, 4294901760
    %v2220 = vsub.f32 %v162, %v2219
    %v2221 = vand.u32 %v2220, 4294901760
    %v2222 = vsub.f32 %v2220, %v2221
    %v2223 = vand.u32 %v2222, 4294901760
    %2224 = vmatpush1.msra.mxu0 %v2223
    %2225 = vmatprep.subr.mxu0 0.0
    %v2226 = vand.u32 %v163, 4294901760
    %v2227 = vsub.f32 %v163, %v2226
    %v2228 = vand.u32 %v2227, 4294901760
    %v2229 = vsub.f32 %v2227, %v2228
    %v2230 = vand.u32 %v2229, 4294901760
    %2231 = vmatpush1.msra.mxu0 %v2230
    %2232 = vmatprep.subr.mxu0 0.0
    %v2233 = vand.u32 %v164, 4294901760
    %v2234 = vsub.f32 %v164, %v2233
    %v2235 = vand.u32 %v2234, 4294901760
    %v2236 = vsub.f32 %v2234, %v2235
    %v2237 = vand.u32 %v2236, 4294901760
    %2238 = vmatpush1.msra.mxu0 %v2237
    %2239 = vmatprep.subr.mxu0 0.0
    %v2240 = vand.u32 %v165, 4294901760
    %v2241 = vsub.f32 %v165, %v2240
    %v2242 = vand.u32 %v2241, 4294901760
    %v2243 = vsub.f32 %v2241, %v2242
    %v2244 = vand.u32 %v2243, 4294901760
    %2245 = vmatpush1.msra.mxu0 %v2244
    %v2246 = vand.u32 %v68, 4294901760
    %2247 = vmatprep.mubr.f32.mxu0 %v2246
    %v2248 = vand.u32 %v67, 4294901760
    %2249 = vmatmul.mubr.f32.gmra.mrb[0].mxu0 %v2248
    %v2250 = vpop.f32.mrb[0].mxu0
    %v2251 = vadd.f32 %v2019, %v2250
    %v2252 = vpop.f32.mrb[0].mxu0
    %2253 = vdwg.mxu0
    %2254 = vmatprep.subr.mxu0 0.0
    %v2255 = vand.u32 %v134, 4294901760
    %v2256 = vsub.f32 %v134, %v2255
    %2257 = vmatpush1.msra.mxu0 %v2256
    %2258 = vmatprep.subr.mxu0 0.0
    %v2259 = vand.u32 %v135, 4294901760
    %v2260 = vsub.f32 %v135, %v2259
    %2261 = vmatpush1.msra.mxu0 %v2260
    %2262 = vmatprep.subr.mxu0 0.0
    %v2263 = vand.u32 %v136, 4294901760
    %v2264 = vsub.f32 %v136, %v2263
    %2265 = vmatpush1.msra.mxu0 %v2264
    %2266 = vmatprep.subr.mxu0 0.0
    %v2267 = vand.u32 %v137, 4294901760
    %v2268 = vsub.f32 %v137, %v2267
    %2269 = vmatpush1.msra.mxu0 %v2268
    %2270 = vmatprep.subr.mxu0 0.0
    %v2271 = vand.u32 %v138, 4294901760
    %v2272 = vsub.f32 %v138, %v2271
    %2273 = vmatpush1.msra.mxu0 %v2272
    %2274 = vmatprep.subr.mxu0 0.0
    %v2275 = vand.u32 %v139, 4294901760
    %v2276 = vsub.f32 %v139, %v2275
    %2277 = vmatpush1.msra.mxu0 %v2276
    %2278 = vmatprep.subr.mxu0 0.0
    %v2279 = vand.u32 %v140, 4294901760
    %v2280 = vsub.f32 %v140, %v2279
    %2281 = vmatpush1.msra.mxu0 %v2280
    %2282 = vmatprep.subr.mxu0 0.0
    %v2283 = vand.u32 %v141, 4294901760
    %v2284 = vsub.f32 %v141, %v2283
    %2285 = vmatpush1.msra.mxu0 %v2284
    %2286 = vmatprep.subr.mxu0 0.0
    %v2287 = vand.u32 %v142, 4294901760
    %v2288 = vsub.f32 %v142, %v2287
    %2289 = vmatpush1.msra.mxu0 %v2288
    %2290 = vmatprep.subr.mxu0 0.0
    %v2291 = vand.u32 %v143, 4294901760
    %v2292 = vsub.f32 %v143, %v2291
    %2293 = vmatpush1.msra.mxu0 %v2292
    %2294 = vmatprep.subr.mxu0 0.0
    %v2295 = vand.u32 %v144, 4294901760
    %v2296 = vsub.f32 %v144, %v2295
    %2297 = vmatpush1.msra.mxu0 %v2296
    %2298 = vmatprep.subr.mxu0 0.0
    %v2299 = vand.u32 %v145, 4294901760
    %v2300 = vsub.f32 %v145, %v2299
    %2301 = vmatpush1.msra.mxu0 %v2300
    %2302 = vmatprep.subr.mxu0 0.0
    %v2303 = vand.u32 %v146, 4294901760
    %v2304 = vsub.f32 %v146, %v2303
    %2305 = vmatpush1.msra.mxu0 %v2304
    %2306 = vmatprep.subr.mxu0 0.0
    %v2307 = vand.u32 %v147, 4294901760
    %v2308 = vsub.f32 %v147, %v2307
    %2309 = vmatpush1.msra.mxu0 %v2308
    %2310 = vmatprep.subr.mxu0 0.0
    %v2311 = vand.u32 %v148, 4294901760
    %v2312 = vsub.f32 %v148, %v2311
    %2313 = vmatpush1.msra.mxu0 %v2312
    %2314 = vmatprep.subr.mxu0 0.0
    %v2315 = vand.u32 %v149, 4294901760
    %v2316 = vsub.f32 %v149, %v2315
    %2317 = vmatpush1.msra.mxu0 %v2316
    %2318 = vmatprep.subr.mxu0 0.0
    %v2319 = vand.u32 %v150, 4294901760
    %v2320 = vsub.f32 %v150, %v2319
    %2321 = vmatpush1.msra.mxu0 %v2320
    %2322 = vmatprep.subr.mxu0 0.0
    %v2323 = vand.u32 %v151, 4294901760
    %v2324 = vsub.f32 %v151, %v2323
    %2325 = vmatpush1.msra.mxu0 %v2324
    %2326 = vmatprep.subr.mxu0 0.0
    %v2327 = vand.u32 %v152, 4294901760
    %v2328 = vsub.f32 %v152, %v2327
    %2329 = vmatpush1.msra.mxu0 %v2328
    %2330 = vmatprep.subr.mxu0 0.0
    %v2331 = vand.u32 %v153, 4294901760
    %v2332 = vsub.f32 %v153, %v2331
    %2333 = vmatpush1.msra.mxu0 %v2332
    %2334 = vmatprep.subr.mxu0 0.0
    %v2335 = vand.u32 %v154, 4294901760
    %v2336 = vsub.f32 %v154, %v2335
    %2337 = vmatpush1.msra.mxu0 %v2336
    %2338 = vmatprep.subr.mxu0 0.0
    %v2339 = vand.u32 %v155, 4294901760
    %v2340 = vsub.f32 %v155, %v2339
    %2341 = vmatpush1.msra.mxu0 %v2340
    %2342 = vmatprep.subr.mxu0 0.0
    %v2343 = vand.u32 %v156, 4294901760
    %v2344 = vsub.f32 %v156, %v2343
    %2345 = vmatpush1.msra.mxu0 %v2344
    %2346 = vmatprep.subr.mxu0 0.0
    %v2347 = vand.u32 %v157, 4294901760
    %v2348 = vsub.f32 %v157, %v2347
    %2349 = vmatpush1.msra.mxu0 %v2348
    %2350 = vmatprep.subr.mxu0 0.0
    %v2351 = vand.u32 %v158, 4294901760
    %v2352 = vsub.f32 %v158, %v2351
    %2353 = vmatpush1.msra.mxu0 %v2352
    %2354 = vmatprep.subr.mxu0 0.0
    %v2355 = vand.u32 %v159, 4294901760
    %v2356 = vsub.f32 %v159, %v2355
    %2357 = vmatpush1.msra.mxu0 %v2356
    %2358 = vmatprep.subr.mxu0 0.0
    %v2359 = vand.u32 %v160, 4294901760
    %v2360 = vsub.f32 %v160, %v2359
    %2361 = vmatpush1.msra.mxu0 %v2360
    %2362 = vmatprep.subr.mxu0 0.0
    %v2363 = vand.u32 %v161, 4294901760
    %v2364 = vsub.f32 %v161, %v2363
    %2365 = vmatpush1.msra.mxu0 %v2364
    %2366 = vmatprep.subr.mxu0 0.0
    %v2367 = vand.u32 %v162, 4294901760
    %v2368 = vsub.f32 %v162, %v2367
    %2369 = vmatpush1.msra.mxu0 %v2368
    %2370 = vmatprep.subr.mxu0 0.0
    %v2371 = vand.u32 %v163, 4294901760
    %v2372 = vsub.f32 %v163, %v2371
    %2373 = vmatpush1.msra.mxu0 %v2372
    %2374 = vmatprep.subr.mxu0 0.0
    %v2375 = vand.u32 %v164, 4294901760
    %v2376 = vsub.f32 %v164, %v2375
    %2377 = vmatpush1.msra.mxu0 %v2376
    %2378 = vmatprep.subr.mxu0 0.0
    %v2379 = vand.u32 %v165, 4294901760
    %v2380 = vsub.f32 %v165, %v2379
    %2381 = vmatpush1.msra.mxu0 %v2380
    %v2382 = vand.u32 %v68, 4294901760
    %v2383 = vsub.f32 %v68, %v2382
    %2384 = vmatprep.mubr.f32.mxu0 %v2383
    %v2385 = vand.u32 %v67, 4294901760
    %v2386 = vsub.f32 %v67, %v2385
    %2387 = vmatmul.mubr.f32.gmra.mrb[0].mxu0 %v2386
    %v2388 = vpop.f32.mrb[0].mxu0
    %v2389 = vadd.f32 %v2251, %v2388
    %v2390 = vpop.f32.mrb[0].mxu0
    %2391 = vdwg.mxu0
    %2392 = vmatprep.subr.mxu0 0.0
    %v2393 = vand.u32 %v134, 4294901760
    %2394 = vmatpush1.msra.mxu0 %v2393
    %2395 = vmatprep.subr.mxu0 0.0
    %v2396 = vand.u32 %v135, 4294901760
    %2397 = vmatpush1.msra.mxu0 %v2396
    %2398 = vmatprep.subr.mxu0 0.0
    %v2399 = vand.u32 %v136, 4294901760
    %2400 = vmatpush1.msra.mxu0 %v2399
    %2401 = vmatprep.subr.mxu0 0.0
    %v2402 = vand.u32 %v137, 4294901760
    %2403 = vmatpush1.msra.mxu0 %v2402
    %2404 = vmatprep.subr.mxu0 0.0
    %v2405 = vand.u32 %v138, 4294901760
    %2406 = vmatpush1.msra.mxu0 %v2405
    %2407 = vmatprep.subr.mxu0 0.0
    %v2408 = vand.u32 %v139, 4294901760
    %2409 = vmatpush1.msra.mxu0 %v2408
    %2410 = vmatprep.subr.mxu0 0.0
    %v2411 = vand.u32 %v140, 4294901760
    %2412 = vmatpush1.msra.mxu0 %v2411
    %2413 = vmatprep.subr.mxu0 0.0
    %v2414 = vand.u32 %v141, 4294901760
    %2415 = vmatpush1.msra.mxu0 %v2414
    %2416 = vmatprep.subr.mxu0 0.0
    %v2417 = vand.u32 %v142, 4294901760
    %2418 = vmatpush1.msra.mxu0 %v2417
    %2419 = vmatprep.subr.mxu0 0.0
    %v2420 = vand.u32 %v143, 4294901760
    %2421 = vmatpush1.msra.mxu0 %v2420
    %2422 = vmatprep.subr.mxu0 0.0
    %v2423 = vand.u32 %v144, 4294901760
    %2424 = vmatpush1.msra.mxu0 %v2423
    %2425 = vmatprep.subr.mxu0 0.0
    %v2426 = vand.u32 %v145, 4294901760
    %2427 = vmatpush1.msra.mxu0 %v2426
    %2428 = vmatprep.subr.mxu0 0.0
    %v2429 = vand.u32 %v146, 4294901760
    %2430 = vmatpush1.msra.mxu0 %v2429
    %2431 = vmatprep.subr.mxu0 0.0
    %v2432 = vand.u32 %v147, 4294901760
    %2433 = vmatpush1.msra.mxu0 %v2432
    %2434 = vmatprep.subr.mxu0 0.0
    %v2435 = vand.u32 %v148, 4294901760
    %2436 = vmatpush1.msra.mxu0 %v2435
    %2437 = vmatprep.subr.mxu0 0.0
    %v2438 = vand.u32 %v149, 4294901760
    %2439 = vmatpush1.msra.mxu0 %v2438
    %2440 = vmatprep.subr.mxu0 0.0
    %v2441 = vand.u32 %v150, 4294901760
    %2442 = vmatpush1.msra.mxu0 %v2441
    %2443 = vmatprep.subr.mxu0 0.0
    %v2444 = vand.u32 %v151, 4294901760
    %2445 = vmatpush1.msra.mxu0 %v2444
    %2446 = vmatprep.subr.mxu0 0.0
    %v2447 = vand.u32 %v152, 4294901760
    %2448 = vmatpush1.msra.mxu0 %v2447
    %2449 = vmatprep.subr.mxu0 0.0
    %v2450 = vand.u32 %v153, 4294901760
    %2451 = vmatpush1.msra.mxu0 %v2450
    %2452 = vmatprep.subr.mxu0 0.0
    %v2453 = vand.u32 %v154, 4294901760
    %2454 = vmatpush1.msra.mxu0 %v2453
    %2455 = vmatprep.subr.mxu0 0.0
    %v2456 = vand.u32 %v155, 4294901760
    %2457 = vmatpush1.msra.mxu0 %v2456
    %2458 = vmatprep.subr.mxu0 0.0
    %v2459 = vand.u32 %v156, 4294901760
    %2460 = vmatpush1.msra.mxu0 %v2459
    %2461 = vmatprep.subr.mxu0 0.0
    %v2462 = vand.u32 %v157, 4294901760
    %2463 = vmatpush1.msra.mxu0 %v2462
    %2464 = vmatprep.subr.mxu0 0.0
    %v2465 = vand.u32 %v158, 4294901760
    %2466 = vmatpush1.msra.mxu0 %v2465
    %2467 = vmatprep.subr.mxu0 0.0
    %v2468 = vand.u32 %v159, 4294901760
    %2469 = vmatpush1.msra.mxu0 %v2468
    %2470 = vmatprep.subr.mxu0 0.0
    %v2471 = vand.u32 %v160, 4294901760
    %2472 = vmatpush1.msra.mxu0 %v2471
    %2473 = vmatprep.subr.mxu0 0.0
    %v2474 = vand.u32 %v161, 4294901760
    %2475 = vmatpush1.msra.mxu0 %v2474
    %2476 = vmatprep.subr.mxu0 0.0
    %v2477 = vand.u32 %v162, 4294901760
    %2478 = vmatpush1.msra.mxu0 %v2477
    %2479 = vmatprep.subr.mxu0 0.0
    %v2480 = vand.u32 %v163, 4294901760
    %2481 = vmatpush1.msra.mxu0 %v2480
    %2482 = vmatprep.subr.mxu0 0.0
    %v2483 = vand.u32 %v164, 4294901760
    %2484 = vmatpush1.msra.mxu0 %v2483
    %2485 = vmatprep.subr.mxu0 0.0
    %v2486 = vand.u32 %v165, 4294901760
    %2487 = vmatpush1.msra.mxu0 %v2486
    %v2488 = vand.u32 %v68, 4294901760
    %v2489 = vsub.f32 %v68, %v2488
    %v2490 = vand.u32 %v2489, 4294901760
    %2491 = vmatprep.mubr.f32.mxu0 %v2490
    %v2492 = vand.u32 %v67, 4294901760
    %v2493 = vsub.f32 %v67, %v2492
    %v2494 = vand.u32 %v2493, 4294901760
    %2495 = vmatmul.mubr.f32.gmra.mrb[0].mxu0 %v2494
    %v2496 = vpop.f32.mrb[0].mxu0
    %v2497 = vadd.f32 %v2389, %v2496
    %v2498 = vpop.f32.mrb[0].mxu0
    %2499 = vdwg.mxu0
    %2500 = vmatprep.subr.mxu0 0.0
    %v2501 = vand.u32 %v134, 4294901760
    %v2502 = vsub.f32 %v134, %v2501
    %v2503 = vand.u32 %v2502, 4294901760
    %2504 = vmatpush1.msra.mxu0 %v2503
    %2505 = vmatprep.subr.mxu0 0.0
    %v2506 = vand.u32 %v135, 4294901760
    %v2507 = vsub.f32 %v135, %v2506
    %v2508 = vand.u32 %v2507, 4294901760
    %2509 = vmatpush1.msra.mxu0 %v2508
    %2510 = vmatprep.subr.mxu0 0.0
    %v2511 = vand.u32 %v136, 4294901760
    %v2512 = vsub.f32 %v136, %v2511
    %v2513 = vand.u32 %v2512, 4294901760
    %2514 = vmatpush1.msra.mxu0 %v2513
    %2515 = vmatprep.subr.mxu0 0.0
    %v2516 = vand.u32 %v137, 4294901760
    %v2517 = vsub.f32 %v137, %v2516
    %v2518 = vand.u32 %v2517, 4294901760
    %2519 = vmatpush1.msra.mxu0 %v2518
    %2520 = vmatprep.subr.mxu0 0.0
    %v2521 = vand.u32 %v138, 4294901760
    %v2522 = vsub.f32 %v138, %v2521
    %v2523 = vand.u32 %v2522, 4294901760
    %2524 = vmatpush1.msra.mxu0 %v2523
    %2525 = vmatprep.subr.mxu0 0.0
    %v2526 = vand.u32 %v139, 4294901760
    %v2527 = vsub.f32 %v139, %v2526
    %v2528 = vand.u32 %v2527, 4294901760
    %2529 = vmatpush1.msra.mxu0 %v2528
    %2530 = vmatprep.subr.mxu0 0.0
    %v2531 = vand.u32 %v140, 4294901760
    %v2532 = vsub.f32 %v140, %v2531
    %v2533 = vand.u32 %v2532, 4294901760
    %2534 = vmatpush1.msra.mxu0 %v2533
    %2535 = vmatprep.subr.mxu0 0.0
    %v2536 = vand.u32 %v141, 4294901760
    %v2537 = vsub.f32 %v141, %v2536
    %v2538 = vand.u32 %v2537, 4294901760
    %2539 = vmatpush1.msra.mxu0 %v2538
    %2540 = vmatprep.subr.mxu0 0.0
    %v2541 = vand.u32 %v142, 4294901760
    %v2542 = vsub.f32 %v142, %v2541
    %v2543 = vand.u32 %v2542, 4294901760
    %2544 = vmatpush1.msra.mxu0 %v2543
    %2545 = vmatprep.subr.mxu0 0.0
    %v2546 = vand.u32 %v143, 4294901760
    %v2547 = vsub.f32 %v143, %v2546
    %v2548 = vand.u32 %v2547, 4294901760
    %2549 = vmatpush1.msra.mxu0 %v2548
    %2550 = vmatprep.subr.mxu0 0.0
    %v2551 = vand.u32 %v144, 4294901760
    %v2552 = vsub.f32 %v144, %v2551
    %v2553 = vand.u32 %v2552, 4294901760
    %2554 = vmatpush1.msra.mxu0 %v2553
    %2555 = vmatprep.subr.mxu0 0.0
    %v2556 = vand.u32 %v145, 4294901760
    %v2557 = vsub.f32 %v145, %v2556
    %v2558 = vand.u32 %v2557, 4294901760
    %2559 = vmatpush1.msra.mxu0 %v2558
    %2560 = vmatprep.subr.mxu0 0.0
    %v2561 = vand.u32 %v146, 4294901760
    %v2562 = vsub.f32 %v146, %v2561
    %v2563 = vand.u32 %v2562, 4294901760
    %2564 = vmatpush1.msra.mxu0 %v2563
    %2565 = vmatprep.subr.mxu0 0.0
    %v2566 = vand.u32 %v147, 4294901760
    %v2567 = vsub.f32 %v147, %v2566
    %v2568 = vand.u32 %v2567, 4294901760
    %2569 = vmatpush1.msra.mxu0 %v2568
    %2570 = vmatprep.subr.mxu0 0.0
    %v2571 = vand.u32 %v148, 4294901760
    %v2572 = vsub.f32 %v148, %v2571
    %v2573 = vand.u32 %v2572, 4294901760
    %2574 = vmatpush1.msra.mxu0 %v2573
    %2575 = vmatprep.subr.mxu0 0.0
    %v2576 = vand.u32 %v149, 4294901760
    %v2577 = vsub.f32 %v149, %v2576
    %v2578 = vand.u32 %v2577, 4294901760
    %2579 = vmatpush1.msra.mxu0 %v2578
    %2580 = vmatprep.subr.mxu0 0.0
    %v2581 = vand.u32 %v150, 4294901760
    %v2582 = vsub.f32 %v150, %v2581
    %v2583 = vand.u32 %v2582, 4294901760
    %2584 = vmatpush1.msra.mxu0 %v2583
    %2585 = vmatprep.subr.mxu0 0.0
    %v2586 = vand.u32 %v151, 4294901760
    %v2587 = vsub.f32 %v151, %v2586
    %v2588 = vand.u32 %v2587, 4294901760
    %2589 = vmatpush1.msra.mxu0 %v2588
    %2590 = vmatprep.subr.mxu0 0.0
    %v2591 = vand.u32 %v152, 4294901760
    %v2592 = vsub.f32 %v152, %v2591
    %v2593 = vand.u32 %v2592, 4294901760
    %2594 = vmatpush1.msra.mxu0 %v2593
    %2595 = vmatprep.subr.mxu0 0.0
    %v2596 = vand.u32 %v153, 4294901760
    %v2597 = vsub.f32 %v153, %v2596
    %v2598 = vand.u32 %v2597, 4294901760
    %2599 = vmatpush1.msra.mxu0 %v2598
    %2600 = vmatprep.subr.mxu0 0.0
    %v2601 = vand.u32 %v154, 4294901760
    %v2602 = vsub.f32 %v154, %v2601
    %v2603 = vand.u32 %v2602, 4294901760
    %2604 = vmatpush1.msra.mxu0 %v2603
    %2605 = vmatprep.subr.mxu0 0.0
    %v2606 = vand.u32 %v155, 4294901760
    %v2607 = vsub.f32 %v155, %v2606
    %v2608 = vand.u32 %v2607, 4294901760
    %2609 = vmatpush1.msra.mxu0 %v2608
    %2610 = vmatprep.subr.mxu0 0.0
    %v2611 = vand.u32 %v156, 4294901760
    %v2612 = vsub.f32 %v156, %v2611
    %v2613 = vand.u32 %v2612, 4294901760
    %2614 = vmatpush1.msra.mxu0 %v2613
    %2615 = vmatprep.subr.mxu0 0.0
    %v2616 = vand.u32 %v157, 4294901760
    %v2617 = vsub.f32 %v157, %v2616
    %v2618 = vand.u32 %v2617, 4294901760
    %2619 = vmatpush1.msra.mxu0 %v2618
    %2620 = vmatprep.subr.mxu0 0.0
    %v2621 = vand.u32 %v158, 4294901760
    %v2622 = vsub.f32 %v158, %v2621
    %v2623 = vand.u32 %v2622, 4294901760
    %2624 = vmatpush1.msra.mxu0 %v2623
    %2625 = vmatprep.subr.mxu0 0.0
    %v2626 = vand.u32 %v159, 4294901760
    %v2627 = vsub.f32 %v159, %v2626
    %v2628 = vand.u32 %v2627, 4294901760
    %2629 = vmatpush1.msra.mxu0 %v2628
    %2630 = vmatprep.subr.mxu0 0.0
    %v2631 = vand.u32 %v160, 4294901760
    %v2632 = vsub.f32 %v160, %v2631
    %v2633 = vand.u32 %v2632, 4294901760
    %2634 = vmatpush1.msra.mxu0 %v2633
    %2635 = vmatprep.subr.mxu0 0.0
    %v2636 = vand.u32 %v161, 4294901760
    %v2637 = vsub.f32 %v161, %v2636
    %v2638 = vand.u32 %v2637, 4294901760
    %2639 = vmatpush1.msra.mxu0 %v2638
    %2640 = vmatprep.subr.mxu0 0.0
    %v2641 = vand.u32 %v162, 4294901760
    %v2642 = vsub.f32 %v162, %v2641
    %v2643 = vand.u32 %v2642, 4294901760
    %2644 = vmatpush1.msra.mxu0 %v2643
    %2645 = vmatprep.subr.mxu0 0.0
    %v2646 = vand.u32 %v163, 4294901760
    %v2647 = vsub.f32 %v163, %v2646
    %v2648 = vand.u32 %v2647, 4294901760
    %2649 = vmatpush1.msra.mxu0 %v2648
    %2650 = vmatprep.subr.mxu0 0.0
    %v2651 = vand.u32 %v164, 4294901760
    %v2652 = vsub.f32 %v164, %v2651
    %v2653 = vand.u32 %v2652, 4294901760
    %2654 = vmatpush1.msra.mxu0 %v2653
    %2655 = vmatprep.subr.mxu0 0.0
    %v2656 = vand.u32 %v165, 4294901760
    %v2657 = vsub.f32 %v165, %v2656
    %v2658 = vand.u32 %v2657, 4294901760
    %2659 = vmatpush1.msra.mxu0 %v2658
    %v2660 = vand.u32 %v68, 4294901760
    %2661 = vmatprep.mubr.f32.mxu0 %v2660
    %v2662 = vand.u32 %v67, 4294901760
    %2663 = vmatmul.mubr.f32.gmra.mrb[0].mxu0 %v2662
    %v2664 = vpop.f32.mrb[0].mxu0
    %v2665 = vadd.f32 %v2497, %v2664
    %v2666 = vpop.f32.mrb[0].mxu0
    %2667 = vdwg.mxu0
    %2668 = vmatprep.subr.mxu0 0.0
    %v2669 = vand.u32 %v134, 4294901760
    %2670 = vmatpush1.msra.mxu0 %v2669
    %2671 = vmatprep.subr.mxu0 0.0
    %v2672 = vand.u32 %v135, 4294901760
    %2673 = vmatpush1.msra.mxu0 %v2672
    %2674 = vmatprep.subr.mxu0 0.0
    %v2675 = vand.u32 %v136, 4294901760
    %2676 = vmatpush1.msra.mxu0 %v2675
    %2677 = vmatprep.subr.mxu0 0.0
    %v2678 = vand.u32 %v137, 4294901760
    %2679 = vmatpush1.msra.mxu0 %v2678
    %2680 = vmatprep.subr.mxu0 0.0
    %v2681 = vand.u32 %v138, 4294901760
    %2682 = vmatpush1.msra.mxu0 %v2681
    %2683 = vmatprep.subr.mxu0 0.0
    %v2684 = vand.u32 %v139, 4294901760
    %2685 = vmatpush1.msra.mxu0 %v2684
    %2686 = vmatprep.subr.mxu0 0.0
    %v2687 = vand.u32 %v140, 4294901760
    %2688 = vmatpush1.msra.mxu0 %v2687
    %2689 = vmatprep.subr.mxu0 0.0
    %v2690 = vand.u32 %v141, 4294901760
    %2691 = vmatpush1.msra.mxu0 %v2690
    %2692 = vmatprep.subr.mxu0 0.0
    %v2693 = vand.u32 %v142, 4294901760
    %2694 = vmatpush1.msra.mxu0 %v2693
    %2695 = vmatprep.subr.mxu0 0.0
    %v2696 = vand.u32 %v143, 4294901760
    %2697 = vmatpush1.msra.mxu0 %v2696
    %2698 = vmatprep.subr.mxu0 0.0
    %v2699 = vand.u32 %v144, 4294901760
    %2700 = vmatpush1.msra.mxu0 %v2699
    %2701 = vmatprep.subr.mxu0 0.0
    %v2702 = vand.u32 %v145, 4294901760
    %2703 = vmatpush1.msra.mxu0 %v2702
    %2704 = vmatprep.subr.mxu0 0.0
    %v2705 = vand.u32 %v146, 4294901760
    %2706 = vmatpush1.msra.mxu0 %v2705
    %2707 = vmatprep.subr.mxu0 0.0
    %v2708 = vand.u32 %v147, 4294901760
    %2709 = vmatpush1.msra.mxu0 %v2708
    %2710 = vmatprep.subr.mxu0 0.0
    %v2711 = vand.u32 %v148, 4294901760
    %2712 = vmatpush1.msra.mxu0 %v2711
    %2713 = vmatprep.subr.mxu0 0.0
    %v2714 = vand.u32 %v149, 4294901760
    %2715 = vmatpush1.msra.mxu0 %v2714
    %2716 = vmatprep.subr.mxu0 0.0
    %v2717 = vand.u32 %v150, 4294901760
    %2718 = vmatpush1.msra.mxu0 %v2717
    %2719 = vmatprep.subr.mxu0 0.0
    %v2720 = vand.u32 %v151, 4294901760
    %2721 = vmatpush1.msra.mxu0 %v2720
    %2722 = vmatprep.subr.mxu0 0.0
    %v2723 = vand.u32 %v152, 4294901760
    %2724 = vmatpush1.msra.mxu0 %v2723
    %2725 = vmatprep.subr.mxu0 0.0
    %v2726 = vand.u32 %v153, 4294901760
    %2727 = vmatpush1.msra.mxu0 %v2726
    %2728 = vmatprep.subr.mxu0 0.0
    %v2729 = vand.u32 %v154, 4294901760
    %2730 = vmatpush1.msra.mxu0 %v2729
    %2731 = vmatprep.subr.mxu0 0.0
    %v2732 = vand.u32 %v155, 4294901760
    %2733 = vmatpush1.msra.mxu0 %v2732
    %2734 = vmatprep.subr.mxu0 0.0
    %v2735 = vand.u32 %v156, 4294901760
    %2736 = vmatpush1.msra.mxu0 %v2735
    %2737 = vmatprep.subr.mxu0 0.0
    %v2738 = vand.u32 %v157, 4294901760
    %2739 = vmatpush1.msra.mxu0 %v2738
    %2740 = vmatprep.subr.mxu0 0.0
    %v2741 = vand.u32 %v158, 4294901760
    %2742 = vmatpush1.msra.mxu0 %v2741
    %2743 = vmatprep.subr.mxu0 0.0
    %v2744 = vand.u32 %v159, 4294901760
    %2745 = vmatpush1.msra.mxu0 %v2744
    %2746 = vmatprep.subr.mxu0 0.0
    %v2747 = vand.u32 %v160, 4294901760
    %2748 = vmatpush1.msra.mxu0 %v2747
    %2749 = vmatprep.subr.mxu0 0.0
    %v2750 = vand.u32 %v161, 4294901760
    %2751 = vmatpush1.msra.mxu0 %v2750
    %2752 = vmatprep.subr.mxu0 0.0
    %v2753 = vand.u32 %v162, 4294901760
    %2754 = vmatpush1.msra.mxu0 %v2753
    %2755 = vmatprep.subr.mxu0 0.0
    %v2756 = vand.u32 %v163, 4294901760
    %2757 = vmatpush1.msra.mxu0 %v2756
    %2758 = vmatprep.subr.mxu0 0.0
    %v2759 = vand.u32 %v164, 4294901760
    %2760 = vmatpush1.msra.mxu0 %v2759
    %2761 = vmatprep.subr.mxu0 0.0
    %v2762 = vand.u32 %v165, 4294901760
    %2763 = vmatpush1.msra.mxu0 %v2762
    %v2764 = vand.u32 %v68, 4294901760
    %2765 = vmatprep.mubr.f32.mxu0 %v2764
    %v2766 = vand.u32 %v67, 4294901760
    %2767 = vmatmul.mubr.f32.gmra.mrb[0].mxu0 %v2766
    %v2768 = vpop.f32.mrb[0].mxu0
    %v2769 = vadd.f32 %v2665, %v2768
    %v2770 = vpop.f32.mrb[0].mxu0
    %2771 = vdwg.mxu0
    %2772 = vmatprep.subr.mxu0 0.0
    %v2773 = vand.u32 %v166, 4294901760
    %2774 = vmatpush1.msra.mxu0 %v2773
    %2775 = vmatprep.subr.mxu0 0.0
    %v2776 = vand.u32 %v167, 4294901760
    %2777 = vmatpush1.msra.mxu0 %v2776
    %2778 = vmatprep.subr.mxu0 0.0
    %v2779 = vand.u32 %v168, 4294901760
    %2780 = vmatpush1.msra.mxu0 %v2779
    %2781 = vmatprep.subr.mxu0 0.0
    %v2782 = vand.u32 %v169, 4294901760
    %2783 = vmatpush1.msra.mxu0 %v2782
    %2784 = vmatprep.subr.mxu0 0.0
    %v2785 = vand.u32 %v170, 4294901760
    %2786 = vmatpush1.msra.mxu0 %v2785
    %2787 = vmatprep.subr.mxu0 0.0
    %v2788 = vand.u32 %v171, 4294901760
    %2789 = vmatpush1.msra.mxu0 %v2788
    %2790 = vmatprep.subr.mxu0 0.0
    %v2791 = vand.u32 %v172, 4294901760
    %2792 = vmatpush1.msra.mxu0 %v2791
    %2793 = vmatprep.subr.mxu0 0.0
    %v2794 = vand.u32 %v173, 4294901760
    %2795 = vmatpush1.msra.mxu0 %v2794
    %2796 = vmatprep.subr.mxu0 0.0
    %v2797 = vand.u32 %v174, 4294901760
    %2798 = vmatpush1.msra.mxu0 %v2797
    %2799 = vmatprep.subr.mxu0 0.0
    %v2800 = vand.u32 %v175, 4294901760
    %2801 = vmatpush1.msra.mxu0 %v2800
    %2802 = vmatprep.subr.mxu0 0.0
    %v2803 = vand.u32 %v176, 4294901760
    %2804 = vmatpush1.msra.mxu0 %v2803
    %2805 = vmatprep.subr.mxu0 0.0
    %v2806 = vand.u32 %v177, 4294901760
    %2807 = vmatpush1.msra.mxu0 %v2806
    %2808 = vmatprep.subr.mxu0 0.0
    %v2809 = vand.u32 %v178, 4294901760
    %2810 = vmatpush1.msra.mxu0 %v2809
    %2811 = vmatprep.subr.mxu0 0.0
    %v2812 = vand.u32 %v179, 4294901760
    %2813 = vmatpush1.msra.mxu0 %v2812
    %2814 = vmatprep.subr.mxu0 0.0
    %v2815 = vand.u32 %v180, 4294901760
    %2816 = vmatpush1.msra.mxu0 %v2815
    %2817 = vmatprep.subr.mxu0 0.0
    %v2818 = vand.u32 %v181, 4294901760
    %2819 = vmatpush1.msra.mxu0 %v2818
    %2820 = vmatprep.subr.mxu0 0.0
    %2821 = vmatpush1.msra.mxu0 0.0
    %2822 = vmatprep.subr.mxu0 0.0
    %2823 = vmatpush1.msra.mxu0 0.0
    %2824 = vmatprep.subr.mxu0 0.0
    %2825 = vmatpush1.msra.mxu0 0.0
    %2826 = vmatprep.subr.mxu0 0.0
    %2827 = vmatpush1.msra.mxu0 0.0
    %2828 = vmatprep.subr.mxu0 0.0
    %2829 = vmatpush1.msra.mxu0 0.0
    %2830 = vmatprep.subr.mxu0 0.0
    %2831 = vmatpush1.msra.mxu0 0.0
    %2832 = vmatprep.subr.mxu0 0.0
    %2833 = vmatpush1.msra.mxu0 0.0
    %2834 = vmatprep.subr.mxu0 0.0
    %2835 = vmatpush1.msra.mxu0 0.0
    %2836 = vmatprep.subr.mxu0 0.0
    %2837 = vmatpush1.msra.mxu0 0.0
    %2838 = vmatprep.subr.mxu0 0.0
    %2839 = vmatpush1.msra.mxu0 0.0
    %2840 = vmatprep.subr.mxu0 0.0
    %2841 = vmatpush1.msra.mxu0 0.0
    %2842 = vmatprep.subr.mxu0 0.0
    %2843 = vmatpush1.msra.mxu0 0.0
    %2844 = vmatprep.subr.mxu0 0.0
    %2845 = vmatpush1.msra.mxu0 0.0
    %2846 = vmatprep.subr.mxu0 0.0
    %2847 = vmatpush1.msra.mxu0 0.0
    %2848 = vmatprep.subr.mxu0 0.0
    %2849 = vmatpush1.msra.mxu0 0.0
    %2850 = vmatprep.subr.mxu0 0.0
    %2851 = vmatpush1.msra.mxu0 0.0
    %2852 = vmatprep.mubr.f32.mxu0 0.0
    %v2853 = vand.u32 %v69, 4294901760
    %v2854 = vsub.f32 %v69, %v2853
    %v2855 = vand.u32 %v2854, 4294901760
    %v2856 = vsub.f32 %v2854, %v2855
    %v2857 = vand.u32 %v2856, 4294901760
    %2858 = vmatmul.mubr.f32.gmra.mrb[0].mxu0 %v2857
    %v2859 = vpop.f32.mrb[0].mxu0
    %v2860 = vadd.f32 %v2769, %v2859
    %v2861 = vpop.f32.mrb[0].mxu0
    %2862 = vdwg.mxu0
    %2863 = vmatprep.subr.mxu0 0.0
    %v2864 = vand.u32 %v166, 4294901760
    %v2865 = vsub.f32 %v166, %v2864
    %v2866 = vand.u32 %v2865, 4294901760
    %v2867 = vsub.f32 %v2865, %v2866
    %v2868 = vand.u32 %v2867, 4294901760
    %2869 = vmatpush1.msra.mxu0 %v2868
    %2870 = vmatprep.subr.mxu0 0.0
    %v2871 = vand.u32 %v167, 4294901760
    %v2872 = vsub.f32 %v167, %v2871
    %v2873 = vand.u32 %v2872, 4294901760
    %v2874 = vsub.f32 %v2872, %v2873
    %v2875 = vand.u32 %v2874, 4294901760
    %2876 = vmatpush1.msra.mxu0 %v2875
    %2877 = vmatprep.subr.mxu0 0.0
    %v2878 = vand.u32 %v168, 4294901760
    %v2879 = vsub.f32 %v168, %v2878
    %v2880 = vand.u32 %v2879, 4294901760
    %v2881 = vsub.f32 %v2879, %v2880
    %v2882 = vand.u32 %v2881, 4294901760
    %2883 = vmatpush1.msra.mxu0 %v2882
    %2884 = vmatprep.subr.mxu0 0.0
    %v2885 = vand.u32 %v169, 4294901760
    %v2886 = vsub.f32 %v169, %v2885
    %v2887 = vand.u32 %v2886, 4294901760
    %v2888 = vsub.f32 %v2886, %v2887
    %v2889 = vand.u32 %v2888, 4294901760
    %2890 = vmatpush1.msra.mxu0 %v2889
    %2891 = vmatprep.subr.mxu0 0.0
    %v2892 = vand.u32 %v170, 4294901760
    %v2893 = vsub.f32 %v170, %v2892
    %v2894 = vand.u32 %v2893, 4294901760
    %v2895 = vsub.f32 %v2893, %v2894
    %v2896 = vand.u32 %v2895, 4294901760
    %2897 = vmatpush1.msra.mxu0 %v2896
    %2898 = vmatprep.subr.mxu0 0.0
    %v2899 = vand.u32 %v171, 4294901760
    %v2900 = vsub.f32 %v171, %v2899
    %v2901 = vand.u32 %v2900, 4294901760
    %v2902 = vsub.f32 %v2900, %v2901
    %v2903 = vand.u32 %v2902, 4294901760
    %2904 = vmatpush1.msra.mxu0 %v2903
    %2905 = vmatprep.subr.mxu0 0.0
    %v2906 = vand.u32 %v172, 4294901760
    %v2907 = vsub.f32 %v172, %v2906
    %v2908 = vand.u32 %v2907, 4294901760
    %v2909 = vsub.f32 %v2907, %v2908
    %v2910 = vand.u32 %v2909, 4294901760
    %2911 = vmatpush1.msra.mxu0 %v2910
    %2912 = vmatprep.subr.mxu0 0.0
    %v2913 = vand.u32 %v173, 4294901760
    %v2914 = vsub.f32 %v173, %v2913
    %v2915 = vand.u32 %v2914, 4294901760
    %v2916 = vsub.f32 %v2914, %v2915
    %v2917 = vand.u32 %v2916, 4294901760
    %2918 = vmatpush1.msra.mxu0 %v2917
    %2919 = vmatprep.subr.mxu0 0.0
    %v2920 = vand.u32 %v174, 4294901760
    %v2921 = vsub.f32 %v174, %v2920
    %v2922 = vand.u32 %v2921, 4294901760
    %v2923 = vsub.f32 %v2921, %v2922
    %v2924 = vand.u32 %v2923, 4294901760
    %2925 = vmatpush1.msra.mxu0 %v2924
    %2926 = vmatprep.subr.mxu0 0.0
    %v2927 = vand.u32 %v175, 4294901760
    %v2928 = vsub.f32 %v175, %v2927
    %v2929 = vand.u32 %v2928, 4294901760
    %v2930 = vsub.f32 %v2928, %v2929
    %v2931 = vand.u32 %v2930, 4294901760
    %2932 = vmatpush1.msra.mxu0 %v2931
    %2933 = vmatprep.subr.mxu0 0.0
    %v2934 = vand.u32 %v176, 4294901760
    %v2935 = vsub.f32 %v176, %v2934
    %v2936 = vand.u32 %v2935, 4294901760
    %v2937 = vsub.f32 %v2935, %v2936
    %v2938 = vand.u32 %v2937, 4294901760
    %2939 = vmatpush1.msra.mxu0 %v2938
    %2940 = vmatprep.subr.mxu0 0.0
    %v2941 = vand.u32 %v177, 4294901760
    %v2942 = vsub.f32 %v177, %v2941
    %v2943 = vand.u32 %v2942, 4294901760
    %v2944 = vsub.f32 %v2942, %v2943
    %v2945 = vand.u32 %v2944, 4294901760
    %2946 = vmatpush1.msra.mxu0 %v2945
    %2947 = vmatprep.subr.mxu0 0.0
    %v2948 = vand.u32 %v178, 4294901760
    %v2949 = vsub.f32 %v178, %v2948
    %v2950 = vand.u32 %v2949, 4294901760
    %v2951 = vsub.f32 %v2949, %v2950
    %v2952 = vand.u32 %v2951, 4294901760
    %2953 = vmatpush1.msra.mxu0 %v2952
    %2954 = vmatprep.subr.mxu0 0.0
    %v2955 = vand.u32 %v179, 4294901760
    %v2956 = vsub.f32 %v179, %v2955
    %v2957 = vand.u32 %v2956, 4294901760
    %v2958 = vsub.f32 %v2956, %v2957
    %v2959 = vand.u32 %v2958, 4294901760
    %2960 = vmatpush1.msra.mxu0 %v2959
    %2961 = vmatprep.subr.mxu0 0.0
    %v2962 = vand.u32 %v180, 4294901760
    %v2963 = vsub.f32 %v180, %v2962
    %v2964 = vand.u32 %v2963, 4294901760
    %v2965 = vsub.f32 %v2963, %v2964
    %v2966 = vand.u32 %v2965, 4294901760
    %2967 = vmatpush1.msra.mxu0 %v2966
    %2968 = vmatprep.subr.mxu0 0.0
    %v2969 = vand.u32 %v181, 4294901760
    %v2970 = vsub.f32 %v181, %v2969
    %v2971 = vand.u32 %v2970, 4294901760
    %v2972 = vsub.f32 %v2970, %v2971
    %v2973 = vand.u32 %v2972, 4294901760
    %2974 = vmatpush1.msra.mxu0 %v2973
    %2975 = vmatprep.subr.mxu0 0.0
    %2976 = vmatpush1.msra.mxu0 0.0
    %2977 = vmatprep.subr.mxu0 0.0
    %2978 = vmatpush1.msra.mxu0 0.0
    %2979 = vmatprep.subr.mxu0 0.0
    %2980 = vmatpush1.msra.mxu0 0.0
    %2981 = vmatprep.subr.mxu0 0.0
    %2982 = vmatpush1.msra.mxu0 0.0
    %2983 = vmatprep.subr.mxu0 0.0
    %2984 = vmatpush1.msra.mxu0 0.0
    %2985 = vmatprep.subr.mxu0 0.0
    %2986 = vmatpush1.msra.mxu0 0.0
    %2987 = vmatprep.subr.mxu0 0.0
    %2988 = vmatpush1.msra.mxu0 0.0
    %2989 = vmatprep.subr.mxu0 0.0
    %2990 = vmatpush1.msra.mxu0 0.0
    %2991 = vmatprep.subr.mxu0 0.0
    %2992 = vmatpush1.msra.mxu0 0.0
    %2993 = vmatprep.subr.mxu0 0.0
    %2994 = vmatpush1.msra.mxu0 0.0
    %2995 = vmatprep.subr.mxu0 0.0
    %2996 = vmatpush1.msra.mxu0 0.0
    %2997 = vmatprep.subr.mxu0 0.0
    %2998 = vmatpush1.msra.mxu0 0.0
    %2999 = vmatprep.subr.mxu0 0.0
    %3000 = vmatpush1.msra.mxu0 0.0
    %3001 = vmatprep.subr.mxu0 0.0
    %3002 = vmatpush1.msra.mxu0 0.0
    %3003 = vmatprep.subr.mxu0 0.0
    %3004 = vmatpush1.msra.mxu0 0.0
    %3005 = vmatprep.subr.mxu0 0.0
    %3006 = vmatpush1.msra.mxu0 0.0
    %3007 = vmatprep.mubr.f32.mxu0 0.0
    %v3008 = vand.u32 %v69, 4294901760
    %3009 = vmatmul.mubr.f32.gmra.mrb[0].mxu0 %v3008
    %v3010 = vpop.f32.mrb[0].mxu0
    %v3011 = vadd.f32 %v2860, %v3010
    %v3012 = vpop.f32.mrb[0].mxu0
    %3013 = vdwg.mxu0
    %3014 = vmatprep.subr.mxu0 0.0
    %v3015 = vand.u32 %v166, 4294901760
    %v3016 = vsub.f32 %v166, %v3015
    %3017 = vmatpush1.msra.mxu0 %v3016
    %3018 = vmatprep.subr.mxu0 0.0
    %v3019 = vand.u32 %v167, 4294901760
    %v3020 = vsub.f32 %v167, %v3019
    %3021 = vmatpush1.msra.mxu0 %v3020
    %3022 = vmatprep.subr.mxu0 0.0
    %v3023 = vand.u32 %v168, 4294901760
    %v3024 = vsub.f32 %v168, %v3023
    %3025 = vmatpush1.msra.mxu0 %v3024
    %3026 = vmatprep.subr.mxu0 0.0
    %v3027 = vand.u32 %v169, 4294901760
    %v3028 = vsub.f32 %v169, %v3027
    %3029 = vmatpush1.msra.mxu0 %v3028
    %3030 = vmatprep.subr.mxu0 0.0
    %v3031 = vand.u32 %v170, 4294901760
    %v3032 = vsub.f32 %v170, %v3031
    %3033 = vmatpush1.msra.mxu0 %v3032
    %3034 = vmatprep.subr.mxu0 0.0
    %v3035 = vand.u32 %v171, 4294901760
    %v3036 = vsub.f32 %v171, %v3035
    %3037 = vmatpush1.msra.mxu0 %v3036
    %3038 = vmatprep.subr.mxu0 0.0
    %v3039 = vand.u32 %v172, 4294901760
    %v3040 = vsub.f32 %v172, %v3039
    %3041 = vmatpush1.msra.mxu0 %v3040
    %3042 = vmatprep.subr.mxu0 0.0
    %v3043 = vand.u32 %v173, 4294901760
    %v3044 = vsub.f32 %v173, %v3043
    %3045 = vmatpush1.msra.mxu0 %v3044
    %3046 = vmatprep.subr.mxu0 0.0
    %v3047 = vand.u32 %v174, 4294901760
    %v3048 = vsub.f32 %v174, %v3047
    %3049 = vmatpush1.msra.mxu0 %v3048
    %3050 = vmatprep.subr.mxu0 0.0
    %v3051 = vand.u32 %v175, 4294901760
    %v3052 = vsub.f32 %v175, %v3051
    %3053 = vmatpush1.msra.mxu0 %v3052
    %3054 = vmatprep.subr.mxu0 0.0
    %v3055 = vand.u32 %v176, 4294901760
    %v3056 = vsub.f32 %v176, %v3055
    %3057 = vmatpush1.msra.mxu0 %v3056
    %3058 = vmatprep.subr.mxu0 0.0
    %v3059 = vand.u32 %v177, 4294901760
    %v3060 = vsub.f32 %v177, %v3059
    %3061 = vmatpush1.msra.mxu0 %v3060
    %3062 = vmatprep.subr.mxu0 0.0
    %v3063 = vand.u32 %v178, 4294901760
    %v3064 = vsub.f32 %v178, %v3063
    %3065 = vmatpush1.msra.mxu0 %v3064
    %3066 = vmatprep.subr.mxu0 0.0
    %v3067 = vand.u32 %v179, 4294901760
    %v3068 = vsub.f32 %v179, %v3067
    %3069 = vmatpush1.msra.mxu0 %v3068
    %3070 = vmatprep.subr.mxu0 0.0
    %v3071 = vand.u32 %v180, 4294901760
    %v3072 = vsub.f32 %v180, %v3071
    %3073 = vmatpush1.msra.mxu0 %v3072
    %3074 = vmatprep.subr.mxu0 0.0
    %v3075 = vand.u32 %v181, 4294901760
    %v3076 = vsub.f32 %v181, %v3075
    %3077 = vmatpush1.msra.mxu0 %v3076
    %3078 = vmatprep.subr.mxu0 0.0
    %3079 = vmatpush1.msra.mxu0 0.0
    %3080 = vmatprep.subr.mxu0 0.0
    %3081 = vmatpush1.msra.mxu0 0.0
    %3082 = vmatprep.subr.mxu0 0.0
    %3083 = vmatpush1.msra.mxu0 0.0
    %3084 = vmatprep.subr.mxu0 0.0
    %3085 = vmatpush1.msra.mxu0 0.0
    %3086 = vmatprep.subr.mxu0 0.0
    %3087 = vmatpush1.msra.mxu0 0.0
    %3088 = vmatprep.subr.mxu0 0.0
    %3089 = vmatpush1.msra.mxu0 0.0
    %3090 = vmatprep.subr.mxu0 0.0
    %3091 = vmatpush1.msra.mxu0 0.0
    %3092 = vmatprep.subr.mxu0 0.0
    %3093 = vmatpush1.msra.mxu0 0.0
    %3094 = vmatprep.subr.mxu0 0.0
    %3095 = vmatpush1.msra.mxu0 0.0
    %3096 = vmatprep.subr.mxu0 0.0
    %3097 = vmatpush1.msra.mxu0 0.0
    %3098 = vmatprep.subr.mxu0 0.0
    %3099 = vmatpush1.msra.mxu0 0.0
    %3100 = vmatprep.subr.mxu0 0.0
    %3101 = vmatpush1.msra.mxu0 0.0
    %3102 = vmatprep.subr.mxu0 0.0
    %3103 = vmatpush1.msra.mxu0 0.0
    %3104 = vmatprep.subr.mxu0 0.0
    %3105 = vmatpush1.msra.mxu0 0.0
    %3106 = vmatprep.subr.mxu0 0.0
    %3107 = vmatpush1.msra.mxu0 0.0
    %3108 = vmatprep.subr.mxu0 0.0
    %3109 = vmatpush1.msra.mxu0 0.0
    %3110 = vmatprep.mubr.f32.mxu0 0.0
    %v3111 = vand.u32 %v69, 4294901760
    %v3112 = vsub.f32 %v69, %v3111
    %3113 = vmatmul.mubr.f32.gmra.mrb[0].mxu0 %v3112
    %v3114 = vpop.f32.mrb[0].mxu0
    %v3115 = vadd.f32 %v3011, %v3114
    %v3116 = vpop.f32.mrb[0].mxu0
    %3117 = vdwg.mxu0
    %3118 = vmatprep.subr.mxu0 0.0
    %v3119 = vand.u32 %v166, 4294901760
    %3120 = vmatpush1.msra.mxu0 %v3119
    %3121 = vmatprep.subr.mxu0 0.0
    %v3122 = vand.u32 %v167, 4294901760
    %3123 = vmatpush1.msra.mxu0 %v3122
    %3124 = vmatprep.subr.mxu0 0.0
    %v3125 = vand.u32 %v168, 4294901760
    %3126 = vmatpush1.msra.mxu0 %v3125
    %3127 = vmatprep.subr.mxu0 0.0
    %v3128 = vand.u32 %v169, 4294901760
    %3129 = vmatpush1.msra.mxu0 %v3128
    %3130 = vmatprep.subr.mxu0 0.0
    %v3131 = vand.u32 %v170, 4294901760
    %3132 = vmatpush1.msra.mxu0 %v3131
    %3133 = vmatprep.subr.mxu0 0.0
    %v3134 = vand.u32 %v171, 4294901760
    %3135 = vmatpush1.msra.mxu0 %v3134
    %3136 = vmatprep.subr.mxu0 0.0
    %v3137 = vand.u32 %v172, 4294901760
    %3138 = vmatpush1.msra.mxu0 %v3137
    %3139 = vmatprep.subr.mxu0 0.0
    %v3140 = vand.u32 %v173, 4294901760
    %3141 = vmatpush1.msra.mxu0 %v3140
    %3142 = vmatprep.subr.mxu0 0.0
    %v3143 = vand.u32 %v174, 4294901760
    %3144 = vmatpush1.msra.mxu0 %v3143
    %3145 = vmatprep.subr.mxu0 0.0
    %v3146 = vand.u32 %v175, 4294901760
    %3147 = vmatpush1.msra.mxu0 %v3146
    %3148 = vmatprep.subr.mxu0 0.0
    %v3149 = vand.u32 %v176, 4294901760
    %3150 = vmatpush1.msra.mxu0 %v3149
    %3151 = vmatprep.subr.mxu0 0.0
    %v3152 = vand.u32 %v177, 4294901760
    %3153 = vmatpush1.msra.mxu0 %v3152
    %3154 = vmatprep.subr.mxu0 0.0
    %v3155 = vand.u32 %v178, 4294901760
    %3156 = vmatpush1.msra.mxu0 %v3155
    %3157 = vmatprep.subr.mxu0 0.0
    %v3158 = vand.u32 %v179, 4294901760
    %3159 = vmatpush1.msra.mxu0 %v3158
    %3160 = vmatprep.subr.mxu0 0.0
    %v3161 = vand.u32 %v180, 4294901760
    %3162 = vmatpush1.msra.mxu0 %v3161
    %3163 = vmatprep.subr.mxu0 0.0
    %v3164 = vand.u32 %v181, 4294901760
    %3165 = vmatpush1.msra.mxu0 %v3164
    %3166 = vmatprep.subr.mxu0 0.0
    %3167 = vmatpush1.msra.mxu0 0.0
    %3168 = vmatprep.subr.mxu0 0.0
    %3169 = vmatpush1.msra.mxu0 0.0
    %3170 = vmatprep.subr.mxu0 0.0
    %3171 = vmatpush1.msra.mxu0 0.0
    %3172 = vmatprep.subr.mxu0 0.0
    %3173 = vmatpush1.msra.mxu0 0.0
    %3174 = vmatprep.subr.mxu0 0.0
    %3175 = vmatpush1.msra.mxu0 0.0
    %3176 = vmatprep.subr.mxu0 0.0
    %3177 = vmatpush1.msra.mxu0 0.0
    %3178 = vmatprep.subr.mxu0 0.0
    %3179 = vmatpush1.msra.mxu0 0.0
    %3180 = vmatprep.subr.mxu0 0.0
    %3181 = vmatpush1.msra.mxu0 0.0
    %3182 = vmatprep.subr.mxu0 0.0
    %3183 = vmatpush1.msra.mxu0 0.0
    %3184 = vmatprep.subr.mxu0 0.0
    %3185 = vmatpush1.msra.mxu0 0.0
    %3186 = vmatprep.subr.mxu0 0.0
    %3187 = vmatpush1.msra.mxu0 0.0
    %3188 = vmatprep.subr.mxu0 0.0
    %3189 = vmatpush1.msra.mxu0 0.0
    %3190 = vmatprep.subr.mxu0 0.0
    %3191 = vmatpush1.msra.mxu0 0.0
    %3192 = vmatprep.subr.mxu0 0.0
    %3193 = vmatpush1.msra.mxu0 0.0
    %3194 = vmatprep.subr.mxu0 0.0
    %3195 = vmatpush1.msra.mxu0 0.0
    %3196 = vmatprep.subr.mxu0 0.0
    %3197 = vmatpush1.msra.mxu0 0.0
    %3198 = vmatprep.mubr.f32.mxu0 0.0
    %v3199 = vand.u32 %v69, 4294901760
    %v3200 = vsub.f32 %v69, %v3199
    %v3201 = vand.u32 %v3200, 4294901760
    %3202 = vmatmul.mubr.f32.gmra.mrb[0].mxu0 %v3201
    %v3203 = vpop.f32.mrb[0].mxu0
    %v3204 = vadd.f32 %v3115, %v3203
    %v3205 = vpop.f32.mrb[0].mxu0
    %3206 = vdwg.mxu0
    %3207 = vmatprep.subr.mxu0 0.0
    %v3208 = vand.u32 %v166, 4294901760
    %v3209 = vsub.f32 %v166, %v3208
    %v3210 = vand.u32 %v3209, 4294901760
    %3211 = vmatpush1.msra.mxu0 %v3210
    %3212 = vmatprep.subr.mxu0 0.0
    %v3213 = vand.u32 %v167, 4294901760
    %v3214 = vsub.f32 %v167, %v3213
    %v3215 = vand.u32 %v3214, 4294901760
    %3216 = vmatpush1.msra.mxu0 %v3215
    %3217 = vmatprep.subr.mxu0 0.0
    %v3218 = vand.u32 %v168, 4294901760
    %v3219 = vsub.f32 %v168, %v3218
    %v3220 = vand.u32 %v3219, 4294901760
    %3221 = vmatpush1.msra.mxu0 %v3220
    %3222 = vmatprep.subr.mxu0 0.0
    %v3223 = vand.u32 %v169, 4294901760
    %v3224 = vsub.f32 %v169, %v3223
    %v3225 = vand.u32 %v3224, 4294901760
    %3226 = vmatpush1.msra.mxu0 %v3225
    %3227 = vmatprep.subr.mxu0 0.0
    %v3228 = vand.u32 %v170, 4294901760
    %v3229 = vsub.f32 %v170, %v3228
    %v3230 = vand.u32 %v3229, 4294901760
    %3231 = vmatpush1.msra.mxu0 %v3230
    %3232 = vmatprep.subr.mxu0 0.0
    %v3233 = vand.u32 %v171, 4294901760
    %v3234 = vsub.f32 %v171, %v3233
    %v3235 = vand.u32 %v3234, 4294901760
    %3236 = vmatpush1.msra.mxu0 %v3235
    %3237 = vmatprep.subr.mxu0 0.0
    %v3238 = vand.u32 %v172, 4294901760
    %v3239 = vsub.f32 %v172, %v3238
    %v3240 = vand.u32 %v3239, 4294901760
    %3241 = vmatpush1.msra.mxu0 %v3240
    %3242 = vmatprep.subr.mxu0 0.0
    %v3243 = vand.u32 %v173, 4294901760
    %v3244 = vsub.f32 %v173, %v3243
    %v3245 = vand.u32 %v3244, 4294901760
    %3246 = vmatpush1.msra.mxu0 %v3245
    %3247 = vmatprep.subr.mxu0 0.0
    %v3248 = vand.u32 %v174, 4294901760
    %v3249 = vsub.f32 %v174, %v3248
    %v3250 = vand.u32 %v3249, 4294901760
    %3251 = vmatpush1.msra.mxu0 %v3250
    %3252 = vmatprep.subr.mxu0 0.0
    %v3253 = vand.u32 %v175, 4294901760
    %v3254 = vsub.f32 %v175, %v3253
    %v3255 = vand.u32 %v3254, 4294901760
    %3256 = vmatpush1.msra.mxu0 %v3255
    %3257 = vmatprep.subr.mxu0 0.0
    %v3258 = vand.u32 %v176, 4294901760
    %v3259 = vsub.f32 %v176, %v3258
    %v3260 = vand.u32 %v3259, 4294901760
    %3261 = vmatpush1.msra.mxu0 %v3260
    %3262 = vmatprep.subr.mxu0 0.0
    %v3263 = vand.u32 %v177, 4294901760
    %v3264 = vsub.f32 %v177, %v3263
    %v3265 = vand.u32 %v3264, 4294901760
    %3266 = vmatpush1.msra.mxu0 %v3265
    %3267 = vmatprep.subr.mxu0 0.0
    %v3268 = vand.u32 %v178, 4294901760
    %v3269 = vsub.f32 %v178, %v3268
    %v3270 = vand.u32 %v3269, 4294901760
    %3271 = vmatpush1.msra.mxu0 %v3270
    %3272 = vmatprep.subr.mxu0 0.0
    %v3273 = vand.u32 %v179, 4294901760
    %v3274 = vsub.f32 %v179, %v3273
    %v3275 = vand.u32 %v3274, 4294901760
    %3276 = vmatpush1.msra.mxu0 %v3275
    %3277 = vmatprep.subr.mxu0 0.0
    %v3278 = vand.u32 %v180, 4294901760
    %v3279 = vsub.f32 %v180, %v3278
    %v3280 = vand.u32 %v3279, 4294901760
    %3281 = vmatpush1.msra.mxu0 %v3280
    %3282 = vmatprep.subr.mxu0 0.0
    %v3283 = vand.u32 %v181, 4294901760
    %v3284 = vsub.f32 %v181, %v3283
    %v3285 = vand.u32 %v3284, 4294901760
    %3286 = vmatpush1.msra.mxu0 %v3285
    %3287 = vmatprep.subr.mxu0 0.0
    %3288 = vmatpush1.msra.mxu0 0.0
    %3289 = vmatprep.subr.mxu0 0.0
    %3290 = vmatpush1.msra.mxu0 0.0
    %3291 = vmatprep.subr.mxu0 0.0
    %3292 = vmatpush1.msra.mxu0 0.0
    %3293 = vmatprep.subr.mxu0 0.0
    %3294 = vmatpush1.msra.mxu0 0.0
    %3295 = vmatprep.subr.mxu0 0.0
    %3296 = vmatpush1.msra.mxu0 0.0
    %3297 = vmatprep.subr.mxu0 0.0
    %3298 = vmatpush1.msra.mxu0 0.0
    %3299 = vmatprep.subr.mxu0 0.0
    %3300 = vmatpush1.msra.mxu0 0.0
    %3301 = vmatprep.subr.mxu0 0.0
    %3302 = vmatpush1.msra.mxu0 0.0
    %3303 = vmatprep.subr.mxu0 0.0
    %3304 = vmatpush1.msra.mxu0 0.0
    %3305 = vmatprep.subr.mxu0 0.0
    %3306 = vmatpush1.msra.mxu0 0.0
    %3307 = vmatprep.subr.mxu0 0.0
    %3308 = vmatpush1.msra.mxu0 0.0
    %3309 = vmatprep.subr.mxu0 0.0
    %3310 = vmatpush1.msra.mxu0 0.0
    %3311 = vmatprep.subr.mxu0 0.0
    %3312 = vmatpush1.msra.mxu0 0.0
    %3313 = vmatprep.subr.mxu0 0.0
    %3314 = vmatpush1.msra.mxu0 0.0
    %3315 = vmatprep.subr.mxu0 0.0
    %3316 = vmatpush1.msra.mxu0 0.0
    %3317 = vmatprep.subr.mxu0 0.0
    %3318 = vmatpush1.msra.mxu0 0.0
    %3319 = vmatprep.mubr.f32.mxu0 0.0
    %v3320 = vand.u32 %v69, 4294901760
    %3321 = vmatmul.mubr.f32.gmra.mrb[0].mxu0 %v3320
    %v3322 = vpop.f32.mrb[0].mxu0
    %v3323 = vadd.f32 %v3204, %v3322
    %v3324 = vpop.f32.mrb[0].mxu0
    %3325 = vdwg.mxu0
    %3326 = vmatprep.subr.mxu0 0.0
    %v3327 = vand.u32 %v166, 4294901760
    %3328 = vmatpush1.msra.mxu0 %v3327
    %3329 = vmatprep.subr.mxu0 0.0
    %v3330 = vand.u32 %v167, 4294901760
    %3331 = vmatpush1.msra.mxu0 %v3330
    %3332 = vmatprep.subr.mxu0 0.0
    %v3333 = vand.u32 %v168, 4294901760
    %3334 = vmatpush1.msra.mxu0 %v3333
    %3335 = vmatprep.subr.mxu0 0.0
    %v3336 = vand.u32 %v169, 4294901760
    %3337 = vmatpush1.msra.mxu0 %v3336
    %3338 = vmatprep.subr.mxu0 0.0
    %v3339 = vand.u32 %v170, 4294901760
    %3340 = vmatpush1.msra.mxu0 %v3339
    %3341 = vmatprep.subr.mxu0 0.0
    %v3342 = vand.u32 %v171, 4294901760
    %3343 = vmatpush1.msra.mxu0 %v3342
    %3344 = vmatprep.subr.mxu0 0.0
    %v3345 = vand.u32 %v172, 4294901760
    %3346 = vmatpush1.msra.mxu0 %v3345
    %3347 = vmatprep.subr.mxu0 0.0
    %v3348 = vand.u32 %v173, 4294901760
    %3349 = vmatpush1.msra.mxu0 %v3348
    %3350 = vmatprep.subr.mxu0 0.0
    %v3351 = vand.u32 %v174, 4294901760
    %3352 = vmatpush1.msra.mxu0 %v3351
    %3353 = vmatprep.subr.mxu0 0.0
    %v3354 = vand.u32 %v175, 4294901760
    %3355 = vmatpush1.msra.mxu0 %v3354
    %3356 = vmatprep.subr.mxu0 0.0
    %v3357 = vand.u32 %v176, 4294901760
    %3358 = vmatpush1.msra.mxu0 %v3357
    %3359 = vmatprep.subr.mxu0 0.0
    %v3360 = vand.u32 %v177, 4294901760
    %3361 = vmatpush1.msra.mxu0 %v3360
    %3362 = vmatprep.subr.mxu0 0.0
    %v3363 = vand.u32 %v178, 4294901760
    %3364 = vmatpush1.msra.mxu0 %v3363
    %3365 = vmatprep.subr.mxu0 0.0
    %v3366 = vand.u32 %v179, 4294901760
    %3367 = vmatpush1.msra.mxu0 %v3366
    %3368 = vmatprep.subr.mxu0 0.0
    %v3369 = vand.u32 %v180, 4294901760
    %3370 = vmatpush1.msra.mxu0 %v3369
    %3371 = vmatprep.subr.mxu0 0.0
    %v3372 = vand.u32 %v181, 4294901760
    %3373 = vmatpush1.msra.mxu0 %v3372
    %3374 = vmatprep.subr.mxu0 0.0
    %3375 = vmatpush1.msra.mxu0 0.0
    %3376 = vmatprep.subr.mxu0 0.0
    %3377 = vmatpush1.msra.mxu0 0.0
    %3378 = vmatprep.subr.mxu0 0.0
    %3379 = vmatpush1.msra.mxu0 0.0
    %3380 = vmatprep.subr.mxu0 0.0
    %3381 = vmatpush1.msra.mxu0 0.0
    %3382 = vmatprep.subr.mxu0 0.0
    %3383 = vmatpush1.msra.mxu0 0.0
    %3384 = vmatprep.subr.mxu0 0.0
    %3385 = vmatpush1.msra.mxu0 0.0
    %3386 = vmatprep.subr.mxu0 0.0
    %3387 = vmatpush1.msra.mxu0 0.0
    %3388 = vmatprep.subr.mxu0 0.0
    %3389 = vmatpush1.msra.mxu0 0.0
    %3390 = vmatprep.subr.mxu0 0.0
    %3391 = vmatpush1.msra.mxu0 0.0
    %3392 = vmatprep.subr.mxu0 0.0
    %3393 = vmatpush1.msra.mxu0 0.0
    %3394 = vmatprep.subr.mxu0 0.0
    %3395 = vmatpush1.msra.mxu0 0.0
    %3396 = vmatprep.subr.mxu0 0.0
    %3397 = vmatpush1.msra.mxu0 0.0
    %3398 = vmatprep.subr.mxu0 0.0
    %3399 = vmatpush1.msra.mxu0 0.0
    %3400 = vmatprep.subr.mxu0 0.0
    %3401 = vmatpush1.msra.mxu0 0.0
    %3402 = vmatprep.subr.mxu0 0.0
    %3403 = vmatpush1.msra.mxu0 0.0
    %3404 = vmatprep.subr.mxu0 0.0
    %3405 = vmatpush1.msra.mxu0 0.0
    %3406 = vmatprep.mubr.f32.mxu0 0.0
    %v3407 = vand.u32 %v69, 4294901760
    %3408 = vmatmul.mubr.f32.gmra.mrb[0].mxu0 %v3407
    %v3409 = vpop.f32.mrb[0].mxu0
    %v3410 = vadd.f32 %v3323, %v3409
    %v3411 = vpop.f32.mrb[0].mxu0
    %3412 = vdwg.mxu0
    %v3413 = vmax.f32 %v3410, 0.0
    %v3414 = vld [vmem:[#allocation5] sm:$0xff]
    %v3415 = vld [vmem:[#allocation5 + $0x8] sm:$0xff]
    %v3416 = vld [vmem:[#allocation5 + $0x10] sm:$0xff]
    %v3417 = vld [vmem:[#allocation5 + $0x18] sm:$0xff]
    %v3418 = vld [vmem:[#allocation5 + $0x20] sm:$0xff]
    %v3419 = vld [vmem:[#allocation5 + $0x28] sm:$0xff]
    %v3420 = vld [vmem:[#allocation5 + $0x30] sm:$0xff]
    %v3421 = vld [vmem:[#allocation5 + $0x38] sm:$0xff]
    %v3422 = vld [vmem:[#allocation5 + $0x40] sm:$0xff]
    %v3423 = vld [vmem:[#allocation5 + $0x48] sm:$0xff]
    %v3424 = vld [vmem:[#allocation5 + $0x50] sm:$0xff]
    %v3425 = vld [vmem:[#allocation5 + $0x58] sm:$0xff]
    %v3426 = vld [vmem:[#allocation5 + $0x60] sm:$0xff]
    %v3427 = vld [vmem:[#allocation5 + $0x68] sm:$0xff]
    %v3428 = vld [vmem:[#allocation5 + $0x70] sm:$0xff]
    %v3429 = vld [vmem:[#allocation5 + $0x78] sm:$0xff]
    %v3430 = vlaneseq
    %v3431 = vshrl.u32 %v3430, 7
    %v3432 = vsub.s32 1, %v3431
    %v3433 = vrot.slane %v62, %v3432
    %3434 = vmatprep.subr.mxu0 0.0
    %v3435 = vand.u32 %v3414, 4294901760
    %3436 = vmatpush1.msra.mxu0 %v3435
    %3437 = vmatprep.subr.mxu0 0.0
    %v3438 = vand.u32 %v3415, 4294901760
    %3439 = vmatpush1.msra.mxu0 %v3438
    %3440 = vmatprep.subr.mxu0 0.0
    %v3441 = vand.u32 %v3416, 4294901760
    %3442 = vmatpush1.msra.mxu0 %v3441
    %3443 = vmatprep.subr.mxu0 0.0
    %v3444 = vand.u32 %v3417, 4294901760
    %3445 = vmatpush1.msra.mxu0 %v3444
    %3446 = vmatprep.subr.mxu0 0.0
    %v3447 = vand.u32 %v3418, 4294901760
    %3448 = vmatpush1.msra.mxu0 %v3447
    %3449 = vmatprep.subr.mxu0 0.0
    %v3450 = vand.u32 %v3419, 4294901760
    %3451 = vmatpush1.msra.mxu0 %v3450
    %3452 = vmatprep.subr.mxu0 0.0
    %v3453 = vand.u32 %v3420, 4294901760
    %3454 = vmatpush1.msra.mxu0 %v3453
    %3455 = vmatprep.subr.mxu0 0.0
    %v3456 = vand.u32 %v3421, 4294901760
    %3457 = vmatpush1.msra.mxu0 %v3456
    %3458 = vmatprep.subr.mxu0 0.0
    %v3459 = vand.u32 %v3422, 4294901760
    %3460 = vmatpush1.msra.mxu0 %v3459
    %3461 = vmatprep.subr.mxu0 0.0
    %v3462 = vand.u32 %v3423, 4294901760
    %3463 = vmatpush1.msra.mxu0 %v3462
    %3464 = vmatprep.subr.mxu0 0.0
    %v3465 = vand.u32 %v3424, 4294901760
    %3466 = vmatpush1.msra.mxu0 %v3465
    %3467 = vmatprep.subr.mxu0 0.0
    %v3468 = vand.u32 %v3425, 4294901760
    %3469 = vmatpush1.msra.mxu0 %v3468
    %3470 = vmatprep.subr.mxu0 0.0
    %v3471 = vand.u32 %v3426, 4294901760
    %3472 = vmatpush1.msra.mxu0 %v3471
    %3473 = vmatprep.subr.mxu0 0.0
    %v3474 = vand.u32 %v3427, 4294901760
    %3475 = vmatpush1.msra.mxu0 %v3474
    %3476 = vmatprep.subr.mxu0 0.0
    %v3477 = vand.u32 %v3428, 4294901760
    %3478 = vmatpush1.msra.mxu0 %v3477
    %3479 = vmatprep.subr.mxu0 0.0
    %v3480 = vand.u32 %v3429, 4294901760
    %3481 = vmatpush1.msra.mxu0 %v3480
    %3482 = vmatprep.subr.mxu0 0.0
    %3483 = vmatpush1.msra.mxu0 0.0
    %3484 = vmatprep.subr.mxu0 0.0
    %3485 = vmatpush1.msra.mxu0 0.0
    %3486 = vmatprep.subr.mxu0 0.0
    %3487 = vmatpush1.msra.mxu0 0.0
    %3488 = vmatprep.subr.mxu0 0.0
    %3489 = vmatpush1.msra.mxu0 0.0
    %3490 = vmatprep.subr.mxu0 0.0
    %3491 = vmatpush1.msra.mxu0 0.0
    %3492 = vmatprep.subr.mxu0 0.0
    %3493 = vmatpush1.msra.mxu0 0.0
    %3494 = vmatprep.subr.mxu0 0.0
    %3495 = vmatpush1.msra.mxu0 0.0
    %3496 = vmatprep.subr.mxu0 0.0
    %3497 = vmatpush1.msra.mxu0 0.0
    %3498 = vmatprep.subr.mxu0 0.0
    %3499 = vmatpush1.msra.mxu0 0.0
    %3500 = vmatprep.subr.mxu0 0.0
    %3501 = vmatpush1.msra.mxu0 0.0
    %3502 = vmatprep.subr.mxu0 0.0
    %3503 = vmatpush1.msra.mxu0 0.0
    %3504 = vmatprep.subr.mxu0 0.0
    %3505 = vmatpush1.msra.mxu0 0.0
    %3506 = vmatprep.subr.mxu0 0.0
    %3507 = vmatpush1.msra.mxu0 0.0
    %3508 = vmatprep.subr.mxu0 0.0
    %3509 = vmatpush1.msra.mxu0 0.0
    %3510 = vmatprep.subr.mxu0 0.0
    %3511 = vmatpush1.msra.mxu0 0.0
    %3512 = vmatprep.subr.mxu0 0.0
    %3513 = vmatpush1.msra.mxu0 0.0
    %3514 = vmatprep.mubr.f32.mxu0 0.0
    %v3515 = vand.u32 %v3413, 4294901760
    %v3516 = vsub.f32 %v3413, %v3515
    %v3517 = vand.u32 %v3516, 4294901760
    %v3518 = vsub.f32 %v3516, %v3517
    %v3519 = vand.u32 %v3518, 4294901760
    %3520 = vmatmul.mubr.f32.gmra.mrb[0].mxu0 %v3519
    %v3521 = vpop.f32.mrb[0].mxu0
    %v3522 = vadd.f32 %v3433, %v3521
    %v3523 = vpop.f32.mrb[0].mxu0
    %3524 = vdwg.mxu0
    %3525 = vmatprep.subr.mxu0 0.0
    %v3526 = vand.u32 %v3414, 4294901760
    %v3527 = vsub.f32 %v3414, %v3526
    %v3528 = vand.u32 %v3527, 4294901760
    %v3529 = vsub.f32 %v3527, %v3528
    %v3530 = vand.u32 %v3529, 4294901760
    %3531 = vmatpush1.msra.mxu0 %v3530
    %3532 = vmatprep.subr.mxu0 0.0
    %v3533 = vand.u32 %v3415, 4294901760
    %v3534 = vsub.f32 %v3415, %v3533
    %v3535 = vand.u32 %v3534, 4294901760
    %v3536 = vsub.f32 %v3534, %v3535
    %v3537 = vand.u32 %v3536, 4294901760
    %3538 = vmatpush1.msra.mxu0 %v3537
    %3539 = vmatprep.subr.mxu0 0.0
    %v3540 = vand.u32 %v3416, 4294901760
    %v3541 = vsub.f32 %v3416, %v3540
    %v3542 = vand.u32 %v3541, 4294901760
    %v3543 = vsub.f32 %v3541, %v3542
    %v3544 = vand.u32 %v3543, 4294901760
    %3545 = vmatpush1.msra.mxu0 %v3544
    %3546 = vmatprep.subr.mxu0 0.0
    %v3547 = vand.u32 %v3417, 4294901760
    %v3548 = vsub.f32 %v3417, %v3547
    %v3549 = vand.u32 %v3548, 4294901760
    %v3550 = vsub.f32 %v3548, %v3549
    %v3551 = vand.u32 %v3550, 4294901760
    %3552 = vmatpush1.msra.mxu0 %v3551
    %3553 = vmatprep.subr.mxu0 0.0
    %v3554 = vand.u32 %v3418, 4294901760
    %v3555 = vsub.f32 %v3418, %v3554
    %v3556 = vand.u32 %v3555, 4294901760
    %v3557 = vsub.f32 %v3555, %v3556
    %v3558 = vand.u32 %v3557, 4294901760
    %3559 = vmatpush1.msra.mxu0 %v3558
    %3560 = vmatprep.subr.mxu0 0.0
    %v3561 = vand.u32 %v3419, 4294901760
    %v3562 = vsub.f32 %v3419, %v3561
    %v3563 = vand.u32 %v3562, 4294901760
    %v3564 = vsub.f32 %v3562, %v3563
    %v3565 = vand.u32 %v3564, 4294901760
    %3566 = vmatpush1.msra.mxu0 %v3565
    %3567 = vmatprep.subr.mxu0 0.0
    %v3568 = vand.u32 %v3420, 4294901760
    %v3569 = vsub.f32 %v3420, %v3568
    %v3570 = vand.u32 %v3569, 4294901760
    %v3571 = vsub.f32 %v3569, %v3570
    %v3572 = vand.u32 %v3571, 4294901760
    %3573 = vmatpush1.msra.mxu0 %v3572
    %3574 = vmatprep.subr.mxu0 0.0
    %v3575 = vand.u32 %v3421, 4294901760
    %v3576 = vsub.f32 %v3421, %v3575
    %v3577 = vand.u32 %v3576, 4294901760
    %v3578 = vsub.f32 %v3576, %v3577
    %v3579 = vand.u32 %v3578, 4294901760
    %3580 = vmatpush1.msra.mxu0 %v3579
    %3581 = vmatprep.subr.mxu0 0.0
    %v3582 = vand.u32 %v3422, 4294901760
    %v3583 = vsub.f32 %v3422, %v3582
    %v3584 = vand.u32 %v3583, 4294901760
    %v3585 = vsub.f32 %v3583, %v3584
    %v3586 = vand.u32 %v3585, 4294901760
    %3587 = vmatpush1.msra.mxu0 %v3586
    %3588 = vmatprep.subr.mxu0 0.0
    %v3589 = vand.u32 %v3423, 4294901760
    %v3590 = vsub.f32 %v3423, %v3589
    %v3591 = vand.u32 %v3590, 4294901760
    %v3592 = vsub.f32 %v3590, %v3591
    %v3593 = vand.u32 %v3592, 4294901760
    %3594 = vmatpush1.msra.mxu0 %v3593
    %3595 = vmatprep.subr.mxu0 0.0
    %v3596 = vand.u32 %v3424, 4294901760
    %v3597 = vsub.f32 %v3424, %v3596
    %v3598 = vand.u32 %v3597, 4294901760
    %v3599 = vsub.f32 %v3597, %v3598
    %v3600 = vand.u32 %v3599, 4294901760
    %3601 = vmatpush1.msra.mxu0 %v3600
    %3602 = vmatprep.subr.mxu0 0.0
    %v3603 = vand.u32 %v3425, 4294901760
    %v3604 = vsub.f32 %v3425, %v3603
    %v3605 = vand.u32 %v3604, 4294901760
    %v3606 = vsub.f32 %v3604, %v3605
    %v3607 = vand.u32 %v3606, 4294901760
    %3608 = vmatpush1.msra.mxu0 %v3607
    %3609 = vmatprep.subr.mxu0 0.0
    %v3610 = vand.u32 %v3426, 4294901760
    %v3611 = vsub.f32 %v3426, %v3610
    %v3612 = vand.u32 %v3611, 4294901760
    %v3613 = vsub.f32 %v3611, %v3612
    %v3614 = vand.u32 %v3613, 4294901760
    %3615 = vmatpush1.msra.mxu0 %v3614
    %3616 = vmatprep.subr.mxu0 0.0
    %v3617 = vand.u32 %v3427, 4294901760
    %v3618 = vsub.f32 %v3427, %v3617
    %v3619 = vand.u32 %v3618, 4294901760
    %v3620 = vsub.f32 %v3618, %v3619
    %v3621 = vand.u32 %v3620, 4294901760
    %3622 = vmatpush1.msra.mxu0 %v3621
    %3623 = vmatprep.subr.mxu0 0.0
    %v3624 = vand.u32 %v3428, 4294901760
    %v3625 = vsub.f32 %v3428, %v3624
    %v3626 = vand.u32 %v3625, 4294901760
    %v3627 = vsub.f32 %v3625, %v3626
    %v3628 = vand.u32 %v3627, 4294901760
    %3629 = vmatpush1.msra.mxu0 %v3628
    %3630 = vmatprep.subr.mxu0 0.0
    %v3631 = vand.u32 %v3429, 4294901760
    %v3632 = vsub.f32 %v3429, %v3631
    %v3633 = vand.u32 %v3632, 4294901760
    %v3634 = vsub.f32 %v3632, %v3633
    %v3635 = vand.u32 %v3634, 4294901760
    %3636 = vmatpush1.msra.mxu0 %v3635
    %3637 = vmatprep.subr.mxu0 0.0
    %3638 = vmatpush1.msra.mxu0 0.0
    %3639 = vmatprep.subr.mxu0 0.0
    %3640 = vmatpush1.msra.mxu0 0.0
    %3641 = vmatprep.subr.mxu0 0.0
    %3642 = vmatpush1.msra.mxu0 0.0
    %3643 = vmatprep.subr.mxu0 0.0
    %3644 = vmatpush1.msra.mxu0 0.0
    %3645 = vmatprep.subr.mxu0 0.0
    %3646 = vmatpush1.msra.mxu0 0.0
    %3647 = vmatprep.subr.mxu0 0.0
    %3648 = vmatpush1.msra.mxu0 0.0
    %3649 = vmatprep.subr.mxu0 0.0
    %3650 = vmatpush1.msra.mxu0 0.0
    %3651 = vmatprep.subr.mxu0 0.0
    %3652 = vmatpush1.msra.mxu0 0.0
    %3653 = vmatprep.subr.mxu0 0.0
    %3654 = vmatpush1.msra.mxu0 0.0
    %3655 = vmatprep.subr.mxu0 0.0
    %3656 = vmatpush1.msra.mxu0 0.0
    %3657 = vmatprep.subr.mxu0 0.0
    %3658 = vmatpush1.msra.mxu0 0.0
    %3659 = vmatprep.subr.mxu0 0.0
    %3660 = vmatpush1.msra.mxu0 0.0
    %3661 = vmatprep.subr.mxu0 0.0
    %3662 = vmatpush1.msra.mxu0 0.0
    %3663 = vmatprep.subr.mxu0 0.0
    %3664 = vmatpush1.msra.mxu0 0.0
    %3665 = vmatprep.subr.mxu0 0.0
    %3666 = vmatpush1.msra.mxu0 0.0
    %3667 = vmatprep.subr.mxu0 0.0
    %3668 = vmatpush1.msra.mxu0 0.0
    %3669 = vmatprep.mubr.f32.mxu0 0.0
    %v3670 = vand.u32 %v3413, 4294901760
    %3671 = vmatmul.mubr.f32.gmra.mrb[0].mxu0 %v3670
    %v3672 = vpop.f32.mrb[0].mxu0
    %v3673 = vadd.f32 %v3522, %v3672
    %v3674 = vpop.f32.mrb[0].mxu0
    %3675 = vdwg.mxu0
    %3676 = vmatprep.subr.mxu0 0.0
    %v3677 = vand.u32 %v3414, 4294901760
    %v3678 = vsub.f32 %v3414, %v3677
    %3679 = vmatpush1.msra.mxu0 %v3678
    %3680 = vmatprep.subr.mxu0 0.0
    %v3681 = vand.u32 %v3415, 4294901760
    %v3682 = vsub.f32 %v3415, %v3681
    %3683 = vmatpush1.msra.mxu0 %v3682
    %3684 = vmatprep.subr.mxu0 0.0
    %v3685 = vand.u32 %v3416, 4294901760
    %v3686 = vsub.f32 %v3416, %v3685
    %3687 = vmatpush1.msra.mxu0 %v3686
    %3688 = vmatprep.subr.mxu0 0.0
    %v3689 = vand.u32 %v3417, 4294901760
    %v3690 = vsub.f32 %v3417, %v3689
    %3691 = vmatpush1.msra.mxu0 %v3690
    %3692 = vmatprep.subr.mxu0 0.0
    %v3693 = vand.u32 %v3418, 4294901760
    %v3694 = vsub.f32 %v3418, %v3693
    %3695 = vmatpush1.msra.mxu0 %v3694
    %3696 = vmatprep.subr.mxu0 0.0
    %v3697 = vand.u32 %v3419, 4294901760
    %v3698 = vsub.f32 %v3419, %v3697
    %3699 = vmatpush1.msra.mxu0 %v3698
    %3700 = vmatprep.subr.mxu0 0.0
    %v3701 = vand.u32 %v3420, 4294901760
    %v3702 = vsub.f32 %v3420, %v3701
    %3703 = vmatpush1.msra.mxu0 %v3702
    %3704 = vmatprep.subr.mxu0 0.0
    %v3705 = vand.u32 %v3421, 4294901760
    %v3706 = vsub.f32 %v3421, %v3705
    %3707 = vmatpush1.msra.mxu0 %v3706
    %3708 = vmatprep.subr.mxu0 0.0
    %v3709 = vand.u32 %v3422, 4294901760
    %v3710 = vsub.f32 %v3422, %v3709
    %3711 = vmatpush1.msra.mxu0 %v3710
    %3712 = vmatprep.subr.mxu0 0.0
    %v3713 = vand.u32 %v3423, 4294901760
    %v3714 = vsub.f32 %v3423, %v3713
    %3715 = vmatpush1.msra.mxu0 %v3714
    %3716 = vmatprep.subr.mxu0 0.0
    %v3717 = vand.u32 %v3424, 4294901760
    %v3718 = vsub.f32 %v3424, %v3717
    %3719 = vmatpush1.msra.mxu0 %v3718
    %3720 = vmatprep.subr.mxu0 0.0
    %v3721 = vand.u32 %v3425, 4294901760
    %v3722 = vsub.f32 %v3425, %v3721
    %3723 = vmatpush1.msra.mxu0 %v3722
    %3724 = vmatprep.subr.mxu0 0.0
    %v3725 = vand.u32 %v3426, 4294901760
    %v3726 = vsub.f32 %v3426, %v3725
    %3727 = vmatpush1.msra.mxu0 %v3726
    %3728 = vmatprep.subr.mxu0 0.0
    %v3729 = vand.u32 %v3427, 4294901760
    %v3730 = vsub.f32 %v3427, %v3729
    %3731 = vmatpush1.msra.mxu0 %v3730
    %3732 = vmatprep.subr.mxu0 0.0
    %v3733 = vand.u32 %v3428, 4294901760
    %v3734 = vsub.f32 %v3428, %v3733
    %3735 = vmatpush1.msra.mxu0 %v3734
    %3736 = vmatprep.subr.mxu0 0.0
    %v3737 = vand.u32 %v3429, 4294901760
    %v3738 = vsub.f32 %v3429, %v3737
    %3739 = vmatpush1.msra.mxu0 %v3738
    %3740 = vmatprep.subr.mxu0 0.0
    %3741 = vmatpush1.msra.mxu0 0.0
    %3742 = vmatprep.subr.mxu0 0.0
    %3743 = vmatpush1.msra.mxu0 0.0
    %3744 = vmatprep.subr.mxu0 0.0
    %3745 = vmatpush1.msra.mxu0 0.0
    %3746 = vmatprep.subr.mxu0 0.0
    %3747 = vmatpush1.msra.mxu0 0.0
    %3748 = vmatprep.subr.mxu0 0.0
    %3749 = vmatpush1.msra.mxu0 0.0
    %3750 = vmatprep.subr.mxu0 0.0
    %3751 = vmatpush1.msra.mxu0 0.0
    %3752 = vmatprep.subr.mxu0 0.0
    %3753 = vmatpush1.msra.mxu0 0.0
    %3754 = vmatprep.subr.mxu0 0.0
    %3755 = vmatpush1.msra.mxu0 0.0
    %3756 = vmatprep.subr.mxu0 0.0
    %3757 = vmatpush1.msra.mxu0 0.0
    %3758 = vmatprep.subr.mxu0 0.0
    %3759 = vmatpush1.msra.mxu0 0.0
    %3760 = vmatprep.subr.mxu0 0.0
    %3761 = vmatpush1.msra.mxu0 0.0
    %3762 = vmatprep.subr.mxu0 0.0
    %3763 = vmatpush1.msra.mxu0 0.0
    %3764 = vmatprep.subr.mxu0 0.0
    %3765 = vmatpush1.msra.mxu0 0.0
    %3766 = vmatprep.subr.mxu0 0.0
    %3767 = vmatpush1.msra.mxu0 0.0
    %3768 = vmatprep.subr.mxu0 0.0
    %3769 = vmatpush1.msra.mxu0 0.0
    %3770 = vmatprep.subr.mxu0 0.0
    %3771 = vmatpush1.msra.mxu0 0.0
    %3772 = vmatprep.mubr.f32.mxu0 0.0
    %v3773 = vand.u32 %v3413, 4294901760
    %v3774 = vsub.f32 %v3413, %v3773
    %3775 = vmatmul.mubr.f32.gmra.mrb[0].mxu0 %v3774
    %v3776 = vpop.f32.mrb[0].mxu0
    %v3777 = vadd.f32 %v3673, %v3776
    %v3778 = vpop.f32.mrb[0].mxu0
    %3779 = vdwg.mxu0
    %3780 = vmatprep.subr.mxu0 0.0
    %v3781 = vand.u32 %v3414, 4294901760
    %3782 = vmatpush1.msra.mxu0 %v3781
    %3783 = vmatprep.subr.mxu0 0.0
    %v3784 = vand.u32 %v3415, 4294901760
    %3785 = vmatpush1.msra.mxu0 %v3784
    %3786 = vmatprep.subr.mxu0 0.0
    %v3787 = vand.u32 %v3416, 4294901760
    %3788 = vmatpush1.msra.mxu0 %v3787
    %3789 = vmatprep.subr.mxu0 0.0
    %v3790 = vand.u32 %v3417, 4294901760
    %3791 = vmatpush1.msra.mxu0 %v3790
    %3792 = vmatprep.subr.mxu0 0.0
    %v3793 = vand.u32 %v3418, 4294901760
    %3794 = vmatpush1.msra.mxu0 %v3793
    %3795 = vmatprep.subr.mxu0 0.0
    %v3796 = vand.u32 %v3419, 4294901760
    %3797 = vmatpush1.msra.mxu0 %v3796
    %3798 = vmatprep.subr.mxu0 0.0
    %v3799 = vand.u32 %v3420, 4294901760
    %3800 = vmatpush1.msra.mxu0 %v3799
    %3801 = vmatprep.subr.mxu0 0.0
    %v3802 = vand.u32 %v3421, 4294901760
    %3803 = vmatpush1.msra.mxu0 %v3802
    %3804 = vmatprep.subr.mxu0 0.0
    %v3805 = vand.u32 %v3422, 4294901760
    %3806 = vmatpush1.msra.mxu0 %v3805
    %3807 = vmatprep.subr.mxu0 0.0
    %v3808 = vand.u32 %v3423, 4294901760
    %3809 = vmatpush1.msra.mxu0 %v3808
    %3810 = vmatprep.subr.mxu0 0.0
    %v3811 = vand.u32 %v3424, 4294901760
    %3812 = vmatpush1.msra.mxu0 %v3811
    %3813 = vmatprep.subr.mxu0 0.0
    %v3814 = vand.u32 %v3425, 4294901760
    %3815 = vmatpush1.msra.mxu0 %v3814
    %3816 = vmatprep.subr.mxu0 0.0
    %v3817 = vand.u32 %v3426, 4294901760
    %3818 = vmatpush1.msra.mxu0 %v3817
    %3819 = vmatprep.subr.mxu0 0.0
    %v3820 = vand.u32 %v3427, 4294901760
    %3821 = vmatpush1.msra.mxu0 %v3820
    %3822 = vmatprep.subr.mxu0 0.0
    %v3823 = vand.u32 %v3428, 4294901760
    %3824 = vmatpush1.msra.mxu0 %v3823
    %3825 = vmatprep.subr.mxu0 0.0
    %v3826 = vand.u32 %v3429, 4294901760
    %3827 = vmatpush1.msra.mxu0 %v3826
    %3828 = vmatprep.subr.mxu0 0.0
    %3829 = vmatpush1.msra.mxu0 0.0
    %3830 = vmatprep.subr.mxu0 0.0
    %3831 = vmatpush1.msra.mxu0 0.0
    %3832 = vmatprep.subr.mxu0 0.0
    %3833 = vmatpush1.msra.mxu0 0.0
    %3834 = vmatprep.subr.mxu0 0.0
    %3835 = vmatpush1.msra.mxu0 0.0
    %3836 = vmatprep.subr.mxu0 0.0
    %3837 = vmatpush1.msra.mxu0 0.0
    %3838 = vmatprep.subr.mxu0 0.0
    %3839 = vmatpush1.msra.mxu0 0.0
    %3840 = vmatprep.subr.mxu0 0.0
    %3841 = vmatpush1.msra.mxu0 0.0
    %3842 = vmatprep.subr.mxu0 0.0
    %3843 = vmatpush1.msra.mxu0 0.0
    %3844 = vmatprep.subr.mxu0 0.0
    %3845 = vmatpush1.msra.mxu0 0.0
    %3846 = vmatprep.subr.mxu0 0.0
    %3847 = vmatpush1.msra.mxu0 0.0
    %3848 = vmatprep.subr.mxu0 0.0
    %3849 = vmatpush1.msra.mxu0 0.0
    %3850 = vmatprep.subr.mxu0 0.0
    %3851 = vmatpush1.msra.mxu0 0.0
    %3852 = vmatprep.subr.mxu0 0.0
    %3853 = vmatpush1.msra.mxu0 0.0
    %3854 = vmatprep.subr.mxu0 0.0
    %3855 = vmatpush1.msra.mxu0 0.0
    %3856 = vmatprep.subr.mxu0 0.0
    %3857 = vmatpush1.msra.mxu0 0.0
    %3858 = vmatprep.subr.mxu0 0.0
    %3859 = vmatpush1.msra.mxu0 0.0
    %3860 = vmatprep.mubr.f32.mxu0 0.0
    %v3861 = vand.u32 %v3413, 4294901760
    %v3862 = vsub.f32 %v3413, %v3861
    %v3863 = vand.u32 %v3862, 4294901760
    %3864 = vmatmul.mubr.f32.gmra.mrb[0].mxu0 %v3863
    %v3865 = vpop.f32.mrb[0].mxu0
    %v3866 = vadd.f32 %v3777, %v3865
    %v3867 = vpop.f32.mrb[0].mxu0
    %3868 = vdwg.mxu0
    %3869 = vmatprep.subr.mxu0 0.0
    %v3870 = vand.u32 %v3414, 4294901760
    %v3871 = vsub.f32 %v3414, %v3870
    %v3872 = vand.u32 %v3871, 4294901760
    %3873 = vmatpush1.msra.mxu0 %v3872
    %3874 = vmatprep.subr.mxu0 0.0
    %v3875 = vand.u32 %v3415, 4294901760
    %v3876 = vsub.f32 %v3415, %v3875
    %v3877 = vand.u32 %v3876, 4294901760
    %3878 = vmatpush1.msra.mxu0 %v3877
    %3879 = vmatprep.subr.mxu0 0.0
    %v3880 = vand.u32 %v3416, 4294901760
    %v3881 = vsub.f32 %v3416, %v3880
    %v3882 = vand.u32 %v3881, 4294901760
    %3883 = vmatpush1.msra.mxu0 %v3882
    %3884 = vmatprep.subr.mxu0 0.0
    %v3885 = vand.u32 %v3417, 4294901760
    %v3886 = vsub.f32 %v3417, %v3885
    %v3887 = vand.u32 %v3886, 4294901760
    %3888 = vmatpush1.msra.mxu0 %v3887
    %3889 = vmatprep.subr.mxu0 0.0
    %v3890 = vand.u32 %v3418, 4294901760
    %v3891 = vsub.f32 %v3418, %v3890
    %v3892 = vand.u32 %v3891, 4294901760
    %3893 = vmatpush1.msra.mxu0 %v3892
    %3894 = vmatprep.subr.mxu0 0.0
    %v3895 = vand.u32 %v3419, 4294901760
    %v3896 = vsub.f32 %v3419, %v3895
    %v3897 = vand.u32 %v3896, 4294901760
    %3898 = vmatpush1.msra.mxu0 %v3897
    %3899 = vmatprep.subr.mxu0 0.0
    %v3900 = vand.u32 %v3420, 4294901760
    %v3901 = vsub.f32 %v3420, %v3900
    %v3902 = vand.u32 %v3901, 4294901760
    %3903 = vmatpush1.msra.mxu0 %v3902
    %3904 = vmatprep.subr.mxu0 0.0
    %v3905 = vand.u32 %v3421, 4294901760
    %v3906 = vsub.f32 %v3421, %v3905
    %v3907 = vand.u32 %v3906, 4294901760
    %3908 = vmatpush1.msra.mxu0 %v3907
    %3909 = vmatprep.subr.mxu0 0.0
    %v3910 = vand.u32 %v3422, 4294901760
    %v3911 = vsub.f32 %v3422, %v3910
    %v3912 = vand.u32 %v3911, 4294901760
    %3913 = vmatpush1.msra.mxu0 %v3912
    %3914 = vmatprep.subr.mxu0 0.0
    %v3915 = vand.u32 %v3423, 4294901760
    %v3916 = vsub.f32 %v3423, %v3915
    %v3917 = vand.u32 %v3916, 4294901760
    %3918 = vmatpush1.msra.mxu0 %v3917
    %3919 = vmatprep.subr.mxu0 0.0
    %v3920 = vand.u32 %v3424, 4294901760
    %v3921 = vsub.f32 %v3424, %v3920
    %v3922 = vand.u32 %v3921, 4294901760
    %3923 = vmatpush1.msra.mxu0 %v3922
    %3924 = vmatprep.subr.mxu0 0.0
    %v3925 = vand.u32 %v3425, 4294901760
    %v3926 = vsub.f32 %v3425, %v3925
    %v3927 = vand.u32 %v3926, 4294901760
    %3928 = vmatpush1.msra.mxu0 %v3927
    %3929 = vmatprep.subr.mxu0 0.0
    %v3930 = vand.u32 %v3426, 4294901760
    %v3931 = vsub.f32 %v3426, %v3930
    %v3932 = vand.u32 %v3931, 4294901760
    %3933 = vmatpush1.msra.mxu0 %v3932
    %3934 = vmatprep.subr.mxu0 0.0
    %v3935 = vand.u32 %v3427, 4294901760
    %v3936 = vsub.f32 %v3427, %v3935
    %v3937 = vand.u32 %v3936, 4294901760
    %3938 = vmatpush1.msra.mxu0 %v3937
    %3939 = vmatprep.subr.mxu0 0.0
    %v3940 = vand.u32 %v3428, 4294901760
    %v3941 = vsub.f32 %v3428, %v3940
    %v3942 = vand.u32 %v3941, 4294901760
    %3943 = vmatpush1.msra.mxu0 %v3942
    %3944 = vmatprep.subr.mxu0 0.0
    %v3945 = vand.u32 %v3429, 4294901760
    %v3946 = vsub.f32 %v3429, %v3945
    %v3947 = vand.u32 %v3946, 4294901760
    %3948 = vmatpush1.msra.mxu0 %v3947
    %3949 = vmatprep.subr.mxu0 0.0
    %3950 = vmatpush1.msra.mxu0 0.0
    %3951 = vmatprep.subr.mxu0 0.0
    %3952 = vmatpush1.msra.mxu0 0.0
    %3953 = vmatprep.subr.mxu0 0.0
    %3954 = vmatpush1.msra.mxu0 0.0
    %3955 = vmatprep.subr.mxu0 0.0
    %3956 = vmatpush1.msra.mxu0 0.0
    %3957 = vmatprep.subr.mxu0 0.0
    %3958 = vmatpush1.msra.mxu0 0.0
    %3959 = vmatprep.subr.mxu0 0.0
    %3960 = vmatpush1.msra.mxu0 0.0
    %3961 = vmatprep.subr.mxu0 0.0
    %3962 = vmatpush1.msra.mxu0 0.0
    %3963 = vmatprep.subr.mxu0 0.0
    %3964 = vmatpush1.msra.mxu0 0.0
    %3965 = vmatprep.subr.mxu0 0.0
    %3966 = vmatpush1.msra.mxu0 0.0
    %3967 = vmatprep.subr.mxu0 0.0
    %3968 = vmatpush1.msra.mxu0 0.0
    %3969 = vmatprep.subr.mxu0 0.0
    %3970 = vmatpush1.msra.mxu0 0.0
    %3971 = vmatprep.subr.mxu0 0.0
    %3972 = vmatpush1.msra.mxu0 0.0
    %3973 = vmatprep.subr.mxu0 0.0
    %3974 = vmatpush1.msra.mxu0 0.0
    %3975 = vmatprep.subr.mxu0 0.0
    %3976 = vmatpush1.msra.mxu0 0.0
    %3977 = vmatprep.subr.mxu0 0.0
    %3978 = vmatpush1.msra.mxu0 0.0
    %3979 = vmatprep.subr.mxu0 0.0
    %3980 = vmatpush1.msra.mxu0 0.0
    %3981 = vmatprep.mubr.f32.mxu0 0.0
    %v3982 = vand.u32 %v3413, 4294901760
    %3983 = vmatmul.mubr.f32.gmra.mrb[0].mxu0 %v3982
    %v3984 = vpop.f32.mrb[0].mxu0
    %v3985 = vadd.f32 %v3866, %v3984
    %v3986 = vpop.f32.mrb[0].mxu0
    %3987 = vdwg.mxu0
    %3988 = vmatprep.subr.mxu0 0.0
    %v3989 = vand.u32 %v3414, 4294901760
    %3990 = vmatpush1.msra.mxu0 %v3989
    %3991 = vmatprep.subr.mxu0 0.0
    %v3992 = vand.u32 %v3415, 4294901760
    %3993 = vmatpush1.msra.mxu0 %v3992
    %3994 = vmatprep.subr.mxu0 0.0
    %v3995 = vand.u32 %v3416, 4294901760
    %3996 = vmatpush1.msra.mxu0 %v3995
    %3997 = vmatprep.subr.mxu0 0.0
    %v3998 = vand.u32 %v3417, 4294901760
    %3999 = vmatpush1.msra.mxu0 %v3998
    %4000 = vmatprep.subr.mxu0 0.0
    %v4001 = vand.u32 %v3418, 4294901760
    %4002 = vmatpush1.msra.mxu0 %v4001
    %4003 = vmatprep.subr.mxu0 0.0
    %v4004 = vand.u32 %v3419, 4294901760
    %4005 = vmatpush1.msra.mxu0 %v4004
    %4006 = vmatprep.subr.mxu0 0.0
    %v4007 = vand.u32 %v3420, 4294901760
    %4008 = vmatpush1.msra.mxu0 %v4007
    %4009 = vmatprep.subr.mxu0 0.0
    %v4010 = vand.u32 %v3421, 4294901760
    %4011 = vmatpush1.msra.mxu0 %v4010
    %4012 = vmatprep.subr.mxu0 0.0
    %v4013 = vand.u32 %v3422, 4294901760
    %4014 = vmatpush1.msra.mxu0 %v4013
    %4015 = vmatprep.subr.mxu0 0.0
    %v4016 = vand.u32 %v3423, 4294901760
    %4017 = vmatpush1.msra.mxu0 %v4016
    %4018 = vmatprep.subr.mxu0 0.0
    %v4019 = vand.u32 %v3424, 4294901760
    %4020 = vmatpush1.msra.mxu0 %v4019
    %4021 = vmatprep.subr.mxu0 0.0
    %v4022 = vand.u32 %v3425, 4294901760
    %4023 = vmatpush1.msra.mxu0 %v4022
    %4024 = vmatprep.subr.mxu0 0.0
    %v4025 = vand.u32 %v3426, 4294901760
    %4026 = vmatpush1.msra.mxu0 %v4025
    %4027 = vmatprep.subr.mxu0 0.0
    %v4028 = vand.u32 %v3427, 4294901760
    %4029 = vmatpush1.msra.mxu0 %v4028
    %4030 = vmatprep.subr.mxu0 0.0
    %v4031 = vand.u32 %v3428, 4294901760
    %4032 = vmatpush1.msra.mxu0 %v4031
    %4033 = vmatprep.subr.mxu0 0.0
    %v4034 = vand.u32 %v3429, 4294901760
    %4035 = vmatpush1.msra.mxu0 %v4034
    %4036 = vmatprep.subr.mxu0 0.0
    %4037 = vmatpush1.msra.mxu0 0.0
    %4038 = vmatprep.subr.mxu0 0.0
    %4039 = vmatpush1.msra.mxu0 0.0
    %4040 = vmatprep.subr.mxu0 0.0
    %4041 = vmatpush1.msra.mxu0 0.0
    %4042 = vmatprep.subr.mxu0 0.0
    %4043 = vmatpush1.msra.mxu0 0.0
    %4044 = vmatprep.subr.mxu0 0.0
    %4045 = vmatpush1.msra.mxu0 0.0
    %4046 = vmatprep.subr.mxu0 0.0
    %4047 = vmatpush1.msra.mxu0 0.0
    %4048 = vmatprep.subr.mxu0 0.0
    %4049 = vmatpush1.msra.mxu0 0.0
    %4050 = vmatprep.subr.mxu0 0.0
    %4051 = vmatpush1.msra.mxu0 0.0
    %4052 = vmatprep.subr.mxu0 0.0
    %4053 = vmatpush1.msra.mxu0 0.0
    %4054 = vmatprep.subr.mxu0 0.0
    %4055 = vmatpush1.msra.mxu0 0.0
    %4056 = vmatprep.subr.mxu0 0.0
    %4057 = vmatpush1.msra.mxu0 0.0
    %4058 = vmatprep.subr.mxu0 0.0
    %4059 = vmatpush1.msra.mxu0 0.0
    %4060 = vmatprep.subr.mxu0 0.0
    %4061 = vmatpush1.msra.mxu0 0.0
    %4062 = vmatprep.subr.mxu0 0.0
    %4063 = vmatpush1.msra.mxu0 0.0
    %4064 = vmatprep.subr.mxu0 0.0
    %4065 = vmatpush1.msra.mxu0 0.0
    %4066 = vmatprep.subr.mxu0 0.0
    %4067 = vmatpush1.msra.mxu0 0.0
    %4068 = vmatprep.mubr.f32.mxu0 0.0
    %v4069 = vand.u32 %v3413, 4294901760
    %4070 = vmatmul.mubr.f32.gmra.mrb[0].mxu0 %v4069
    %v4071 = vpop.f32.mrb[0].mxu0
    %v4072 = vadd.f32 %v3985, %v4071
    %v4073 = vpop.f32.mrb[0].mxu0
    %4074 = vdwg.mxu0
    %v4075 = vmax.f32 %v4072, 0.0
    %s4076 = scalar_lea.vmem [#allocation5], 128
    %v4077 = vld [vmem:[%s4076] sm:$0xff]
    %v4078 = vld [vmem:[%s4076 + $0x8] sm:$0xff]
    %v4079 = vld [vmem:[%s4076 + $0x10] sm:$0xff]
    %v4080 = vld [vmem:[%s4076 + $0x18] sm:$0xff]
    %v4081 = vld [vmem:[%s4076 + $0x20] sm:$0xff]
    %v4082 = vld [vmem:[%s4076 + $0x28] sm:$0xff]
    %v4083 = vld [vmem:[%s4076 + $0x30] sm:$0xff]
    %v4084 = vld [vmem:[%s4076 + $0x38] sm:$0xff]
    %v4085 = vld [vmem:[%s4076 + $0x40] sm:$0xff]
    %v4086 = vld [vmem:[%s4076 + $0x48] sm:$0xff]
    %v4087 = vld [vmem:[%s4076 + $0x50] sm:$0xff]
    %v4088 = vld [vmem:[%s4076 + $0x58] sm:$0xff]
    %v4089 = vld [vmem:[%s4076 + $0x60] sm:$0xff]
    %v4090 = vld [vmem:[%s4076 + $0x68] sm:$0xff]
    %v4091 = vld [vmem:[%s4076 + $0x70] sm:$0xff]
    %v4092 = vld [vmem:[%s4076 + $0x78] sm:$0xff]
    %v4093 = vlaneseq
    %v4094 = vshrl.u32 %v4093, 7
    %v4095 = vsub.s32 2, %v4094
    %v4096 = vrot.slane %v62, %v4095
    %4097 = vmatprep.subr.mxu0 0.0
    %v4098 = vand.u32 %v4077, 4294901760
    %4099 = vmatpush1.msra.mxu0 %v4098
    %4100 = vmatprep.subr.mxu0 0.0
    %v4101 = vand.u32 %v4078, 4294901760
    %4102 = vmatpush1.msra.mxu0 %v4101
    %4103 = vmatprep.subr.mxu0 0.0
    %v4104 = vand.u32 %v4079, 4294901760
    %4105 = vmatpush1.msra.mxu0 %v4104
    %4106 = vmatprep.subr.mxu0 0.0
    %v4107 = vand.u32 %v4080, 4294901760
    %4108 = vmatpush1.msra.mxu0 %v4107
    %4109 = vmatprep.subr.mxu0 0.0
    %v4110 = vand.u32 %v4081, 4294901760
    %4111 = vmatpush1.msra.mxu0 %v4110
    %4112 = vmatprep.subr.mxu0 0.0
    %v4113 = vand.u32 %v4082, 4294901760
    %4114 = vmatpush1.msra.mxu0 %v4113
    %4115 = vmatprep.subr.mxu0 0.0
    %v4116 = vand.u32 %v4083, 4294901760
    %4117 = vmatpush1.msra.mxu0 %v4116
    %4118 = vmatprep.subr.mxu0 0.0
    %v4119 = vand.u32 %v4084, 4294901760
    %4120 = vmatpush1.msra.mxu0 %v4119
    %4121 = vmatprep.subr.mxu0 0.0
    %v4122 = vand.u32 %v4085, 4294901760
    %4123 = vmatpush1.msra.mxu0 %v4122
    %4124 = vmatprep.subr.mxu0 0.0
    %v4125 = vand.u32 %v4086, 4294901760
    %4126 = vmatpush1.msra.mxu0 %v4125
    %4127 = vmatprep.subr.mxu0 0.0
    %v4128 = vand.u32 %v4087, 4294901760
    %4129 = vmatpush1.msra.mxu0 %v4128
    %4130 = vmatprep.subr.mxu0 0.0
    %v4131 = vand.u32 %v4088, 4294901760
    %4132 = vmatpush1.msra.mxu0 %v4131
    %4133 = vmatprep.subr.mxu0 0.0
    %v4134 = vand.u32 %v4089, 4294901760
    %4135 = vmatpush1.msra.mxu0 %v4134
    %4136 = vmatprep.subr.mxu0 0.0
    %v4137 = vand.u32 %v4090, 4294901760
    %4138 = vmatpush1.msra.mxu0 %v4137
    %4139 = vmatprep.subr.mxu0 0.0
    %v4140 = vand.u32 %v4091, 4294901760
    %4141 = vmatpush1.msra.mxu0 %v4140
    %4142 = vmatprep.subr.mxu0 0.0
    %v4143 = vand.u32 %v4092, 4294901760
    %4144 = vmatpush1.msra.mxu0 %v4143
    %4145 = vmatprep.subr.mxu0 0.0
    %4146 = vmatpush1.msra.mxu0 0.0
    %4147 = vmatprep.subr.mxu0 0.0
    %4148 = vmatpush1.msra.mxu0 0.0
    %4149 = vmatprep.subr.mxu0 0.0
    %4150 = vmatpush1.msra.mxu0 0.0
    %4151 = vmatprep.subr.mxu0 0.0
    %4152 = vmatpush1.msra.mxu0 0.0
    %4153 = vmatprep.subr.mxu0 0.0
    %4154 = vmatpush1.msra.mxu0 0.0
    %4155 = vmatprep.subr.mxu0 0.0
    %4156 = vmatpush1.msra.mxu0 0.0
    %4157 = vmatprep.subr.mxu0 0.0
    %4158 = vmatpush1.msra.mxu0 0.0
    %4159 = vmatprep.subr.mxu0 0.0
    %4160 = vmatpush1.msra.mxu0 0.0
    %4161 = vmatprep.subr.mxu0 0.0
    %4162 = vmatpush1.msra.mxu0 0.0
    %4163 = vmatprep.subr.mxu0 0.0
    %4164 = vmatpush1.msra.mxu0 0.0
    %4165 = vmatprep.subr.mxu0 0.0
    %4166 = vmatpush1.msra.mxu0 0.0
    %4167 = vmatprep.subr.mxu0 0.0
    %4168 = vmatpush1.msra.mxu0 0.0
    %4169 = vmatprep.subr.mxu0 0.0
    %4170 = vmatpush1.msra.mxu0 0.0
    %4171 = vmatprep.subr.mxu0 0.0
    %4172 = vmatpush1.msra.mxu0 0.0
    %4173 = vmatprep.subr.mxu0 0.0
    %4174 = vmatpush1.msra.mxu0 0.0
    %4175 = vmatprep.subr.mxu0 0.0
    %4176 = vmatpush1.msra.mxu0 0.0
    %4177 = vmatprep.mubr.f32.mxu0 0.0
    %v4178 = vand.u32 %v4075, 4294901760
    %v4179 = vsub.f32 %v4075, %v4178
    %v4180 = vand.u32 %v4179, 4294901760
    %v4181 = vsub.f32 %v4179, %v4180
    %v4182 = vand.u32 %v4181, 4294901760
    %4183 = vmatmul.mubr.f32.gmra.mrb[0].mxu0 %v4182
    %v4184 = vpop.f32.mrb[0].mxu0
    %v4185 = vadd.f32 %v4096, %v4184
    %v4186 = vpop.f32.mrb[0].mxu0
    %4187 = vdwg.mxu0
    %4188 = vmatprep.subr.mxu0 0.0
    %v4189 = vand.u32 %v4077, 4294901760
    %v4190 = vsub.f32 %v4077, %v4189
    %v4191 = vand.u32 %v4190, 4294901760
    %v4192 = vsub.f32 %v4190, %v4191
    %v4193 = vand.u32 %v4192, 4294901760
    %4194 = vmatpush1.msra.mxu0 %v4193
    %4195 = vmatprep.subr.mxu0 0.0
    %v4196 = vand.u32 %v4078, 4294901760
    %v4197 = vsub.f32 %v4078, %v4196
    %v4198 = vand.u32 %v4197, 4294901760
    %v4199 = vsub.f32 %v4197, %v4198
    %v4200 = vand.u32 %v4199, 4294901760
    %4201 = vmatpush1.msra.mxu0 %v4200
    %4202 = vmatprep.subr.mxu0 0.0
    %v4203 = vand.u32 %v4079, 4294901760
    %v4204 = vsub.f32 %v4079, %v4203
    %v4205 = vand.u32 %v4204, 4294901760
    %v4206 = vsub.f32 %v4204, %v4205
    %v4207 = vand.u32 %v4206, 4294901760
    %4208 = vmatpush1.msra.mxu0 %v4207
    %4209 = vmatprep.subr.mxu0 0.0
    %v4210 = vand.u32 %v4080, 4294901760
    %v4211 = vsub.f32 %v4080, %v4210
    %v4212 = vand.u32 %v4211, 4294901760
    %v4213 = vsub.f32 %v4211, %v4212
    %v4214 = vand.u32 %v4213, 4294901760
    %4215 = vmatpush1.msra.mxu0 %v4214
    %4216 = vmatprep.subr.mxu0 0.0
    %v4217 = vand.u32 %v4081, 4294901760
    %v4218 = vsub.f32 %v4081, %v4217
    %v4219 = vand.u32 %v4218, 4294901760
    %v4220 = vsub.f32 %v4218, %v4219
    %v4221 = vand.u32 %v4220, 4294901760
    %4222 = vmatpush1.msra.mxu0 %v4221
    %4223 = vmatprep.subr.mxu0 0.0
    %v4224 = vand.u32 %v4082, 4294901760
    %v4225 = vsub.f32 %v4082, %v4224
    %v4226 = vand.u32 %v4225, 4294901760
    %v4227 = vsub.f32 %v4225, %v4226
    %v4228 = vand.u32 %v4227, 4294901760
    %4229 = vmatpush1.msra.mxu0 %v4228
    %4230 = vmatprep.subr.mxu0 0.0
    %v4231 = vand.u32 %v4083, 4294901760
    %v4232 = vsub.f32 %v4083, %v4231
    %v4233 = vand.u32 %v4232, 4294901760
    %v4234 = vsub.f32 %v4232, %v4233
    %v4235 = vand.u32 %v4234, 4294901760
    %4236 = vmatpush1.msra.mxu0 %v4235
    %4237 = vmatprep.subr.mxu0 0.0
    %v4238 = vand.u32 %v4084, 4294901760
    %v4239 = vsub.f32 %v4084, %v4238
    %v4240 = vand.u32 %v4239, 4294901760
    %v4241 = vsub.f32 %v4239, %v4240
    %v4242 = vand.u32 %v4241, 4294901760
    %4243 = vmatpush1.msra.mxu0 %v4242
    %4244 = vmatprep.subr.mxu0 0.0
    %v4245 = vand.u32 %v4085, 4294901760
    %v4246 = vsub.f32 %v4085, %v4245
    %v4247 = vand.u32 %v4246, 4294901760
    %v4248 = vsub.f32 %v4246, %v4247
    %v4249 = vand.u32 %v4248, 4294901760
    %4250 = vmatpush1.msra.mxu0 %v4249
    %4251 = vmatprep.subr.mxu0 0.0
    %v4252 = vand.u32 %v4086, 4294901760
    %v4253 = vsub.f32 %v4086, %v4252
    %v4254 = vand.u32 %v4253, 4294901760
    %v4255 = vsub.f32 %v4253, %v4254
    %v4256 = vand.u32 %v4255, 4294901760
    %4257 = vmatpush1.msra.mxu0 %v4256
    %4258 = vmatprep.subr.mxu0 0.0
    %v4259 = vand.u32 %v4087, 4294901760
    %v4260 = vsub.f32 %v4087, %v4259
    %v4261 = vand.u32 %v4260, 4294901760
    %v4262 = vsub.f32 %v4260, %v4261
    %v4263 = vand.u32 %v4262, 4294901760
    %4264 = vmatpush1.msra.mxu0 %v4263
    %4265 = vmatprep.subr.mxu0 0.0
    %v4266 = vand.u32 %v4088, 4294901760
    %v4267 = vsub.f32 %v4088, %v4266
    %v4268 = vand.u32 %v4267, 4294901760
    %v4269 = vsub.f32 %v4267, %v4268
    %v4270 = vand.u32 %v4269, 4294901760
    %4271 = vmatpush1.msra.mxu0 %v4270
    %4272 = vmatprep.subr.mxu0 0.0
    %v4273 = vand.u32 %v4089, 4294901760
    %v4274 = vsub.f32 %v4089, %v4273
    %v4275 = vand.u32 %v4274, 4294901760
    %v4276 = vsub.f32 %v4274, %v4275
    %v4277 = vand.u32 %v4276, 4294901760
    %4278 = vmatpush1.msra.mxu0 %v4277
    %4279 = vmatprep.subr.mxu0 0.0
    %v4280 = vand.u32 %v4090, 4294901760
    %v4281 = vsub.f32 %v4090, %v4280
    %v4282 = vand.u32 %v4281, 4294901760
    %v4283 = vsub.f32 %v4281, %v4282
    %v4284 = vand.u32 %v4283, 4294901760
    %4285 = vmatpush1.msra.mxu0 %v4284
    %4286 = vmatprep.subr.mxu0 0.0
    %v4287 = vand.u32 %v4091, 4294901760
    %v4288 = vsub.f32 %v4091, %v4287
    %v4289 = vand.u32 %v4288, 4294901760
    %v4290 = vsub.f32 %v4288, %v4289
    %v4291 = vand.u32 %v4290, 4294901760
    %4292 = vmatpush1.msra.mxu0 %v4291
    %4293 = vmatprep.subr.mxu0 0.0
    %v4294 = vand.u32 %v4092, 4294901760
    %v4295 = vsub.f32 %v4092, %v4294
    %v4296 = vand.u32 %v4295, 4294901760
    %v4297 = vsub.f32 %v4295, %v4296
    %v4298 = vand.u32 %v4297, 4294901760
    %4299 = vmatpush1.msra.mxu0 %v4298
    %4300 = vmatprep.subr.mxu0 0.0
    %4301 = vmatpush1.msra.mxu0 0.0
    %4302 = vmatprep.subr.mxu0 0.0
    %4303 = vmatpush1.msra.mxu0 0.0
    %4304 = vmatprep.subr.mxu0 0.0
    %4305 = vmatpush1.msra.mxu0 0.0
    %4306 = vmatprep.subr.mxu0 0.0
    %4307 = vmatpush1.msra.mxu0 0.0
    %4308 = vmatprep.subr.mxu0 0.0
    %4309 = vmatpush1.msra.mxu0 0.0
    %4310 = vmatprep.subr.mxu0 0.0
    %4311 = vmatpush1.msra.mxu0 0.0
    %4312 = vmatprep.subr.mxu0 0.0
    %4313 = vmatpush1.msra.mxu0 0.0
    %4314 = vmatprep.subr.mxu0 0.0
    %4315 = vmatpush1.msra.mxu0 0.0
    %4316 = vmatprep.subr.mxu0 0.0
    %4317 = vmatpush1.msra.mxu0 0.0
    %4318 = vmatprep.subr.mxu0 0.0
    %4319 = vmatpush1.msra.mxu0 0.0
    %4320 = vmatprep.subr.mxu0 0.0
    %4321 = vmatpush1.msra.mxu0 0.0
    %4322 = vmatprep.subr.mxu0 0.0
    %4323 = vmatpush1.msra.mxu0 0.0
    %4324 = vmatprep.subr.mxu0 0.0
    %4325 = vmatpush1.msra.mxu0 0.0
    %4326 = vmatprep.subr.mxu0 0.0
    %4327 = vmatpush1.msra.mxu0 0.0
    %4328 = vmatprep.subr.mxu0 0.0
    %4329 = vmatpush1.msra.mxu0 0.0
    %4330 = vmatprep.subr.mxu0 0.0
    %4331 = vmatpush1.msra.mxu0 0.0
    %4332 = vmatprep.mubr.f32.mxu0 0.0
    %v4333 = vand.u32 %v4075, 4294901760
    %4334 = vmatmul.mubr.f32.gmra.mrb[0].mxu0 %v4333
    %v4335 = vpop.f32.mrb[0].mxu0
    %v4336 = vadd.f32 %v4185, %v4335
    %v4337 = vpop.f32.mrb[0].mxu0
    %4338 = vdwg.mxu0
    %4339 = vmatprep.subr.mxu0 0.0
    %v4340 = vand.u32 %v4077, 4294901760
    %v4341 = vsub.f32 %v4077, %v4340
    %4342 = vmatpush1.msra.mxu0 %v4341
    %4343 = vmatprep.subr.mxu0 0.0
    %v4344 = vand.u32 %v4078, 4294901760
    %v4345 = vsub.f32 %v4078, %v4344
    %4346 = vmatpush1.msra.mxu0 %v4345
    %4347 = vmatprep.subr.mxu0 0.0
    %v4348 = vand.u32 %v4079, 4294901760
    %v4349 = vsub.f32 %v4079, %v4348
    %4350 = vmatpush1.msra.mxu0 %v4349
    %4351 = vmatprep.subr.mxu0 0.0
    %v4352 = vand.u32 %v4080, 4294901760
    %v4353 = vsub.f32 %v4080, %v4352
    %4354 = vmatpush1.msra.mxu0 %v4353
    %4355 = vmatprep.subr.mxu0 0.0
    %v4356 = vand.u32 %v4081, 4294901760
    %v4357 = vsub.f32 %v4081, %v4356
    %4358 = vmatpush1.msra.mxu0 %v4357
    %4359 = vmatprep.subr.mxu0 0.0
    %v4360 = vand.u32 %v4082, 4294901760
    %v4361 = vsub.f32 %v4082, %v4360
    %4362 = vmatpush1.msra.mxu0 %v4361
    %4363 = vmatprep.subr.mxu0 0.0
    %v4364 = vand.u32 %v4083, 4294901760
    %v4365 = vsub.f32 %v4083, %v4364
    %4366 = vmatpush1.msra.mxu0 %v4365
    %4367 = vmatprep.subr.mxu0 0.0
    %v4368 = vand.u32 %v4084, 4294901760
    %v4369 = vsub.f32 %v4084, %v4368
    %4370 = vmatpush1.msra.mxu0 %v4369
    %4371 = vmatprep.subr.mxu0 0.0
    %v4372 = vand.u32 %v4085, 4294901760
    %v4373 = vsub.f32 %v4085, %v4372
    %4374 = vmatpush1.msra.mxu0 %v4373
    %4375 = vmatprep.subr.mxu0 0.0
    %v4376 = vand.u32 %v4086, 4294901760
    %v4377 = vsub.f32 %v4086, %v4376
    %4378 = vmatpush1.msra.mxu0 %v4377
    %4379 = vmatprep.subr.mxu0 0.0
    %v4380 = vand.u32 %v4087, 4294901760
    %v4381 = vsub.f32 %v4087, %v4380
    %4382 = vmatpush1.msra.mxu0 %v4381
    %4383 = vmatprep.subr.mxu0 0.0
    %v4384 = vand.u32 %v4088, 4294901760
    %v4385 = vsub.f32 %v4088, %v4384
    %4386 = vmatpush1.msra.mxu0 %v4385
    %4387 = vmatprep.subr.mxu0 0.0
    %v4388 = vand.u32 %v4089, 4294901760
    %v4389 = vsub.f32 %v4089, %v4388
    %4390 = vmatpush1.msra.mxu0 %v4389
    %4391 = vmatprep.subr.mxu0 0.0
    %v4392 = vand.u32 %v4090, 4294901760
    %v4393 = vsub.f32 %v4090, %v4392
    %4394 = vmatpush1.msra.mxu0 %v4393
    %4395 = vmatprep.subr.mxu0 0.0
    %v4396 = vand.u32 %v4091, 4294901760
    %v4397 = vsub.f32 %v4091, %v4396
    %4398 = vmatpush1.msra.mxu0 %v4397
    %4399 = vmatprep.subr.mxu0 0.0
    %v4400 = vand.u32 %v4092, 4294901760
    %v4401 = vsub.f32 %v4092, %v4400
    %4402 = vmatpush1.msra.mxu0 %v4401
    %4403 = vmatprep.subr.mxu0 0.0
    %4404 = vmatpush1.msra.mxu0 0.0
    %4405 = vmatprep.subr.mxu0 0.0
    %4406 = vmatpush1.msra.mxu0 0.0
    %4407 = vmatprep.subr.mxu0 0.0
    %4408 = vmatpush1.msra.mxu0 0.0
    %4409 = vmatprep.subr.mxu0 0.0
    %4410 = vmatpush1.msra.mxu0 0.0
    %4411 = vmatprep.subr.mxu0 0.0
    %4412 = vmatpush1.msra.mxu0 0.0
    %4413 = vmatprep.subr.mxu0 0.0
    %4414 = vmatpush1.msra.mxu0 0.0
    %4415 = vmatprep.subr.mxu0 0.0
    %4416 = vmatpush1.msra.mxu0 0.0
    %4417 = vmatprep.subr.mxu0 0.0
    %4418 = vmatpush1.msra.mxu0 0.0
    %4419 = vmatprep.subr.mxu0 0.0
    %4420 = vmatpush1.msra.mxu0 0.0
    %4421 = vmatprep.subr.mxu0 0.0
    %4422 = vmatpush1.msra.mxu0 0.0
    %4423 = vmatprep.subr.mxu0 0.0
    %4424 = vmatpush1.msra.mxu0 0.0
    %4425 = vmatprep.subr.mxu0 0.0
    %4426 = vmatpush1.msra.mxu0 0.0
    %4427 = vmatprep.subr.mxu0 0.0
    %4428 = vmatpush1.msra.mxu0 0.0
    %4429 = vmatprep.subr.mxu0 0.0
    %4430 = vmatpush1.msra.mxu0 0.0
    %4431 = vmatprep.subr.mxu0 0.0
    %4432 = vmatpush1.msra.mxu0 0.0
    %4433 = vmatprep.subr.mxu0 0.0
    %4434 = vmatpush1.msra.mxu0 0.0
    %4435 = vmatprep.mubr.f32.mxu0 0.0
    %v4436 = vand.u32 %v4075, 4294901760
    %v4437 = vsub.f32 %v4075, %v4436
    %4438 = vmatmul.mubr.f32.gmra.mrb[0].mxu0 %v4437
    %v4439 = vpop.f32.mrb[0].mxu0
    %v4440 = vadd.f32 %v4336, %v4439
    %v4441 = vpop.f32.mrb[0].mxu0
    %4442 = vdwg.mxu0
    %4443 = vmatprep.subr.mxu0 0.0
    %v4444 = vand.u32 %v4077, 4294901760
    %4445 = vmatpush1.msra.mxu0 %v4444
    %4446 = vmatprep.subr.mxu0 0.0
    %v4447 = vand.u32 %v4078, 4294901760
    %4448 = vmatpush1.msra.mxu0 %v4447
    %4449 = vmatprep.subr.mxu0 0.0
    %v4450 = vand.u32 %v4079, 4294901760
    %4451 = vmatpush1.msra.mxu0 %v4450
    %4452 = vmatprep.subr.mxu0 0.0
    %v4453 = vand.u32 %v4080, 4294901760
    %4454 = vmatpush1.msra.mxu0 %v4453
    %4455 = vmatprep.subr.mxu0 0.0
    %v4456 = vand.u32 %v4081, 4294901760
    %4457 = vmatpush1.msra.mxu0 %v4456
    %4458 = vmatprep.subr.mxu0 0.0
    %v4459 = vand.u32 %v4082, 4294901760
    %4460 = vmatpush1.msra.mxu0 %v4459
    %4461 = vmatprep.subr.mxu0 0.0
    %v4462 = vand.u32 %v4083, 4294901760
    %4463 = vmatpush1.msra.mxu0 %v4462
    %4464 = vmatprep.subr.mxu0 0.0
    %v4465 = vand.u32 %v4084, 4294901760
    %4466 = vmatpush1.msra.mxu0 %v4465
    %4467 = vmatprep.subr.mxu0 0.0
    %v4468 = vand.u32 %v4085, 4294901760
    %4469 = vmatpush1.msra.mxu0 %v4468
    %4470 = vmatprep.subr.mxu0 0.0
    %v4471 = vand.u32 %v4086, 4294901760
    %4472 = vmatpush1.msra.mxu0 %v4471
    %4473 = vmatprep.subr.mxu0 0.0
    %v4474 = vand.u32 %v4087, 4294901760
    %4475 = vmatpush1.msra.mxu0 %v4474
    %4476 = vmatprep.subr.mxu0 0.0
    %v4477 = vand.u32 %v4088, 4294901760
    %4478 = vmatpush1.msra.mxu0 %v4477
    %4479 = vmatprep.subr.mxu0 0.0
    %v4480 = vand.u32 %v4089, 4294901760
    %4481 = vmatpush1.msra.mxu0 %v4480
    %4482 = vmatprep.subr.mxu0 0.0
    %v4483 = vand.u32 %v4090, 4294901760
    %4484 = vmatpush1.msra.mxu0 %v4483
    %4485 = vmatprep.subr.mxu0 0.0
    %v4486 = vand.u32 %v4091, 4294901760
    %4487 = vmatpush1.msra.mxu0 %v4486
    %4488 = vmatprep.subr.mxu0 0.0
    %v4489 = vand.u32 %v4092, 4294901760
    %4490 = vmatpush1.msra.mxu0 %v4489
    %4491 = vmatprep.subr.mxu0 0.0
    %4492 = vmatpush1.msra.mxu0 0.0
    %4493 = vmatprep.subr.mxu0 0.0
    %4494 = vmatpush1.msra.mxu0 0.0
    %4495 = vmatprep.subr.mxu0 0.0
    %4496 = vmatpush1.msra.mxu0 0.0
    %4497 = vmatprep.subr.mxu0 0.0
    %4498 = vmatpush1.msra.mxu0 0.0
    %4499 = vmatprep.subr.mxu0 0.0
    %4500 = vmatpush1.msra.mxu0 0.0
    %4501 = vmatprep.subr.mxu0 0.0
    %4502 = vmatpush1.msra.mxu0 0.0
    %4503 = vmatprep.subr.mxu0 0.0
    %4504 = vmatpush1.msra.mxu0 0.0
    %4505 = vmatprep.subr.mxu0 0.0
    %4506 = vmatpush1.msra.mxu0 0.0
    %4507 = vmatprep.subr.mxu0 0.0
    %4508 = vmatpush1.msra.mxu0 0.0
    %4509 = vmatprep.subr.mxu0 0.0
    %4510 = vmatpush1.msra.mxu0 0.0
    %4511 = vmatprep.subr.mxu0 0.0
    %4512 = vmatpush1.msra.mxu0 0.0
    %4513 = vmatprep.subr.mxu0 0.0
    %4514 = vmatpush1.msra.mxu0 0.0
    %4515 = vmatprep.subr.mxu0 0.0
    %4516 = vmatpush1.msra.mxu0 0.0
    %4517 = vmatprep.subr.mxu0 0.0
    %4518 = vmatpush1.msra.mxu0 0.0
    %4519 = vmatprep.subr.mxu0 0.0
    %4520 = vmatpush1.msra.mxu0 0.0
    %4521 = vmatprep.subr.mxu0 0.0
    %4522 = vmatpush1.msra.mxu0 0.0
    %4523 = vmatprep.mubr.f32.mxu0 0.0
    %v4524 = vand.u32 %v4075, 4294901760
    %v4525 = vsub.f32 %v4075, %v4524
    %v4526 = vand.u32 %v4525, 4294901760
    %4527 = vmatmul.mubr.f32.gmra.mrb[0].mxu0 %v4526
    %v4528 = vpop.f32.mrb[0].mxu0
    %v4529 = vadd.f32 %v4440, %v4528
    %v4530 = vpop.f32.mrb[0].mxu0
    %4531 = vdwg.mxu0
    %4532 = vmatprep.subr.mxu0 0.0
    %v4533 = vand.u32 %v4077, 4294901760
    %v4534 = vsub.f32 %v4077, %v4533
    %v4535 = vand.u32 %v4534, 4294901760
    %4536 = vmatpush1.msra.mxu0 %v4535
    %4537 = vmatprep.subr.mxu0 0.0
    %v4538 = vand.u32 %v4078, 4294901760
    %v4539 = vsub.f32 %v4078, %v4538
    %v4540 = vand.u32 %v4539, 4294901760
    %4541 = vmatpush1.msra.mxu0 %v4540
    %4542 = vmatprep.subr.mxu0 0.0
    %v4543 = vand.u32 %v4079, 4294901760
    %v4544 = vsub.f32 %v4079, %v4543
    %v4545 = vand.u32 %v4544, 4294901760
    %4546 = vmatpush1.msra.mxu0 %v4545
    %4547 = vmatprep.subr.mxu0 0.0
    %v4548 = vand.u32 %v4080, 4294901760
    %v4549 = vsub.f32 %v4080, %v4548
    %v4550 = vand.u32 %v4549, 4294901760
    %4551 = vmatpush1.msra.mxu0 %v4550
    %4552 = vmatprep.subr.mxu0 0.0
    %v4553 = vand.u32 %v4081, 4294901760
    %v4554 = vsub.f32 %v4081, %v4553
    %v4555 = vand.u32 %v4554, 4294901760
    %4556 = vmatpush1.msra.mxu0 %v4555
    %4557 = vmatprep.subr.mxu0 0.0
    %v4558 = vand.u32 %v4082, 4294901760
    %v4559 = vsub.f32 %v4082, %v4558
    %v4560 = vand.u32 %v4559, 4294901760
    %4561 = vmatpush1.msra.mxu0 %v4560
    %4562 = vmatprep.subr.mxu0 0.0
    %v4563 = vand.u32 %v4083, 4294901760
    %v4564 = vsub.f32 %v4083, %v4563
    %v4565 = vand.u32 %v4564, 4294901760
    %4566 = vmatpush1.msra.mxu0 %v4565
    %4567 = vmatprep.subr.mxu0 0.0
    %v4568 = vand.u32 %v4084, 4294901760
    %v4569 = vsub.f32 %v4084, %v4568
    %v4570 = vand.u32 %v4569, 4294901760
    %4571 = vmatpush1.msra.mxu0 %v4570
    %4572 = vmatprep.subr.mxu0 0.0
    %v4573 = vand.u32 %v4085, 4294901760
    %v4574 = vsub.f32 %v4085, %v4573
    %v4575 = vand.u32 %v4574, 4294901760
    %4576 = vmatpush1.msra.mxu0 %v4575
    %4577 = vmatprep.subr.mxu0 0.0
    %v4578 = vand.u32 %v4086, 4294901760
    %v4579 = vsub.f32 %v4086, %v4578
    %v4580 = vand.u32 %v4579, 4294901760
    %4581 = vmatpush1.msra.mxu0 %v4580
    %4582 = vmatprep.subr.mxu0 0.0
    %v4583 = vand.u32 %v4087, 4294901760
    %v4584 = vsub.f32 %v4087, %v4583
    %v4585 = vand.u32 %v4584, 4294901760
    %4586 = vmatpush1.msra.mxu0 %v4585
    %4587 = vmatprep.subr.mxu0 0.0
    %v4588 = vand.u32 %v4088, 4294901760
    %v4589 = vsub.f32 %v4088, %v4588
    %v4590 = vand.u32 %v4589, 4294901760
    %4591 = vmatpush1.msra.mxu0 %v4590
    %4592 = vmatprep.subr.mxu0 0.0
    %v4593 = vand.u32 %v4089, 4294901760
    %v4594 = vsub.f32 %v4089, %v4593
    %v4595 = vand.u32 %v4594, 4294901760
    %4596 = vmatpush1.msra.mxu0 %v4595
    %4597 = vmatprep.subr.mxu0 0.0
    %v4598 = vand.u32 %v4090, 4294901760
    %v4599 = vsub.f32 %v4090, %v4598
    %v4600 = vand.u32 %v4599, 4294901760
    %4601 = vmatpush1.msra.mxu0 %v4600
    %4602 = vmatprep.subr.mxu0 0.0
    %v4603 = vand.u32 %v4091, 4294901760
    %v4604 = vsub.f32 %v4091, %v4603
    %v4605 = vand.u32 %v4604, 4294901760
    %4606 = vmatpush1.msra.mxu0 %v4605
    %4607 = vmatprep.subr.mxu0 0.0
    %v4608 = vand.u32 %v4092, 4294901760
    %v4609 = vsub.f32 %v4092, %v4608
    %v4610 = vand.u32 %v4609, 4294901760
    %4611 = vmatpush1.msra.mxu0 %v4610
    %4612 = vmatprep.subr.mxu0 0.0
    %4613 = vmatpush1.msra.mxu0 0.0
    %4614 = vmatprep.subr.mxu0 0.0
    %4615 = vmatpush1.msra.mxu0 0.0
    %4616 = vmatprep.subr.mxu0 0.0
    %4617 = vmatpush1.msra.mxu0 0.0
    %4618 = vmatprep.subr.mxu0 0.0
    %4619 = vmatpush1.msra.mxu0 0.0
    %4620 = vmatprep.subr.mxu0 0.0
    %4621 = vmatpush1.msra.mxu0 0.0
    %4622 = vmatprep.subr.mxu0 0.0
    %4623 = vmatpush1.msra.mxu0 0.0
    %4624 = vmatprep.subr.mxu0 0.0
    %4625 = vmatpush1.msra.mxu0 0.0
    %4626 = vmatprep.subr.mxu0 0.0
    %4627 = vmatpush1.msra.mxu0 0.0
    %4628 = vmatprep.subr.mxu0 0.0
    %4629 = vmatpush1.msra.mxu0 0.0
    %4630 = vmatprep.subr.mxu0 0.0
    %4631 = vmatpush1.msra.mxu0 0.0
    %4632 = vmatprep.subr.mxu0 0.0
    %4633 = vmatpush1.msra.mxu0 0.0
    %4634 = vmatprep.subr.mxu0 0.0
    %4635 = vmatpush1.msra.mxu0 0.0
    %4636 = vmatprep.subr.mxu0 0.0
    %4637 = vmatpush1.msra.mxu0 0.0
    %4638 = vmatprep.subr.mxu0 0.0
    %4639 = vmatpush1.msra.mxu0 0.0
    %4640 = vmatprep.subr.mxu0 0.0
    %4641 = vmatpush1.msra.mxu0 0.0
    %4642 = vmatprep.subr.mxu0 0.0
    %4643 = vmatpush1.msra.mxu0 0.0
    %4644 = vmatprep.mubr.f32.mxu0 0.0
    %v4645 = vand.u32 %v4075, 4294901760
    %4646 = vmatmul.mubr.f32.gmra.mrb[0].mxu0 %v4645
    %v4647 = vpop.f32.mrb[0].mxu0
    %v4648 = vadd.f32 %v4529, %v4647
    %v4649 = vpop.f32.mrb[0].mxu0
    %4650 = vdwg.mxu0
    %4651 = vmatprep.subr.mxu0 0.0
    %v4652 = vand.u32 %v4077, 4294901760
    %4653 = vmatpush1.msra.mxu0 %v4652
    %4654 = vmatprep.subr.mxu0 0.0
    %v4655 = vand.u32 %v4078, 4294901760
    %4656 = vmatpush1.msra.mxu0 %v4655
    %4657 = vmatprep.subr.mxu0 0.0
    %v4658 = vand.u32 %v4079, 4294901760
    %4659 = vmatpush1.msra.mxu0 %v4658
    %4660 = vmatprep.subr.mxu0 0.0
    %v4661 = vand.u32 %v4080, 4294901760
    %4662 = vmatpush1.msra.mxu0 %v4661
    %4663 = vmatprep.subr.mxu0 0.0
    %v4664 = vand.u32 %v4081, 4294901760
    %4665 = vmatpush1.msra.mxu0 %v4664
    %4666 = vmatprep.subr.mxu0 0.0
    %v4667 = vand.u32 %v4082, 4294901760
    %4668 = vmatpush1.msra.mxu0 %v4667
    %4669 = vmatprep.subr.mxu0 0.0
    %v4670 = vand.u32 %v4083, 4294901760
    %4671 = vmatpush1.msra.mxu0 %v4670
    %4672 = vmatprep.subr.mxu0 0.0
    %v4673 = vand.u32 %v4084, 4294901760
    %4674 = vmatpush1.msra.mxu0 %v4673
    %4675 = vmatprep.subr.mxu0 0.0
    %v4676 = vand.u32 %v4085, 4294901760
    %4677 = vmatpush1.msra.mxu0 %v4676
    %4678 = vmatprep.subr.mxu0 0.0
    %v4679 = vand.u32 %v4086, 4294901760
    %4680 = vmatpush1.msra.mxu0 %v4679
    %4681 = vmatprep.subr.mxu0 0.0
    %v4682 = vand.u32 %v4087, 4294901760
    %4683 = vmatpush1.msra.mxu0 %v4682
    %4684 = vmatprep.subr.mxu0 0.0
    %v4685 = vand.u32 %v4088, 4294901760
    %4686 = vmatpush1.msra.mxu0 %v4685
    %4687 = vmatprep.subr.mxu0 0.0
    %v4688 = vand.u32 %v4089, 4294901760
    %4689 = vmatpush1.msra.mxu0 %v4688
    %4690 = vmatprep.subr.mxu0 0.0
    %v4691 = vand.u32 %v4090, 4294901760
    %4692 = vmatpush1.msra.mxu0 %v4691
    %4693 = vmatprep.subr.mxu0 0.0
    %v4694 = vand.u32 %v4091, 4294901760
    %4695 = vmatpush1.msra.mxu0 %v4694
    %4696 = vmatprep.subr.mxu0 0.0
    %v4697 = vand.u32 %v4092, 4294901760
    %4698 = vmatpush1.msra.mxu0 %v4697
    %4699 = vmatprep.subr.mxu0 0.0
    %4700 = vmatpush1.msra.mxu0 0.0
    %4701 = vmatprep.subr.mxu0 0.0
    %4702 = vmatpush1.msra.mxu0 0.0
    %4703 = vmatprep.subr.mxu0 0.0
    %4704 = vmatpush1.msra.mxu0 0.0
    %4705 = vmatprep.subr.mxu0 0.0
    %4706 = vmatpush1.msra.mxu0 0.0
    %4707 = vmatprep.subr.mxu0 0.0
    %4708 = vmatpush1.msra.mxu0 0.0
    %4709 = vmatprep.subr.mxu0 0.0
    %4710 = vmatpush1.msra.mxu0 0.0
    %4711 = vmatprep.subr.mxu0 0.0
    %4712 = vmatpush1.msra.mxu0 0.0
    %4713 = vmatprep.subr.mxu0 0.0
    %4714 = vmatpush1.msra.mxu0 0.0
    %4715 = vmatprep.subr.mxu0 0.0
    %4716 = vmatpush1.msra.mxu0 0.0
    %4717 = vmatprep.subr.mxu0 0.0
    %4718 = vmatpush1.msra.mxu0 0.0
    %4719 = vmatprep.subr.mxu0 0.0
    %4720 = vmatpush1.msra.mxu0 0.0
    %4721 = vmatprep.subr.mxu0 0.0
    %4722 = vmatpush1.msra.mxu0 0.0
    %4723 = vmatprep.subr.mxu0 0.0
    %4724 = vmatpush1.msra.mxu0 0.0
    %4725 = vmatprep.subr.mxu0 0.0
    %4726 = vmatpush1.msra.mxu0 0.0
    %4727 = vmatprep.subr.mxu0 0.0
    %4728 = vmatpush1.msra.mxu0 0.0
    %4729 = vmatprep.subr.mxu0 0.0
    %4730 = vmatpush1.msra.mxu0 0.0
    %4731 = vmatprep.mubr.f32.mxu0 0.0
    %v4732 = vand.u32 %v4075, 4294901760
    %4733 = vmatmul.mubr.f32.gmra.mrb[0].mxu0 %v4732
    %v4734 = vpop.f32.mrb[0].mxu0
    %v4735 = vadd.f32 %v4648, %v4734
    %v4736 = vpop.f32.mrb[0].mxu0
    %4737 = vdwg.mxu0
    %v4738 = vmax.f32 %v4735, 0.0
    %s4739 = scalar_lea.vmem [#allocation5], 256
    %v4740 = vld [vmem:[%s4739] sm:$0xff]
    %v4741 = vld [vmem:[%s4739 + $0x8] sm:$0xff]
    %v4742 = vld [vmem:[%s4739 + $0x10] sm:$0xff]
    %v4743 = vld [vmem:[%s4739 + $0x18] sm:$0xff]
    %v4744 = vld [vmem:[%s4739 + $0x20] sm:$0xff]
    %v4745 = vld [vmem:[%s4739 + $0x28] sm:$0xff]
    %v4746 = vld [vmem:[%s4739 + $0x30] sm:$0xff]
    %v4747 = vld [vmem:[%s4739 + $0x38] sm:$0xff]
    %v4748 = vld [vmem:[%s4739 + $0x40] sm:$0xff]
    %v4749 = vld [vmem:[%s4739 + $0x48] sm:$0xff]
    %v4750 = vld [vmem:[%s4739 + $0x50] sm:$0xff]
    %v4751 = vld [vmem:[%s4739 + $0x58] sm:$0xff]
    %v4752 = vld [vmem:[%s4739 + $0x60] sm:$0xff]
    %v4753 = vld [vmem:[%s4739 + $0x68] sm:$0xff]
    %v4754 = vld [vmem:[%s4739 + $0x70] sm:$0xff]
    %v4755 = vld [vmem:[%s4739 + $0x78] sm:$0xff]
    %v4756 = vlaneseq
    %v4757 = vshrl.u32 %v4756, 7
    %v4758 = vsub.s32 3, %v4757
    %v4759 = vrot.slane %v62, %v4758
    %4760 = vmatprep.subr.mxu0 0.0
    %v4761 = vand.u32 %v4740, 4294901760
    %4762 = vmatpush1.msra.mxu0 %v4761
    %4763 = vmatprep.subr.mxu0 0.0
    %v4764 = vand.u32 %v4741, 4294901760
    %4765 = vmatpush1.msra.mxu0 %v4764
    %4766 = vmatprep.subr.mxu0 0.0
    %v4767 = vand.u32 %v4742, 4294901760
    %4768 = vmatpush1.msra.mxu0 %v4767
    %4769 = vmatprep.subr.mxu0 0.0
    %v4770 = vand.u32 %v4743, 4294901760
    %4771 = vmatpush1.msra.mxu0 %v4770
    %4772 = vmatprep.subr.mxu0 0.0
    %v4773 = vand.u32 %v4744, 4294901760
    %4774 = vmatpush1.msra.mxu0 %v4773
    %4775 = vmatprep.subr.mxu0 0.0
    %v4776 = vand.u32 %v4745, 4294901760
    %4777 = vmatpush1.msra.mxu0 %v4776
    %4778 = vmatprep.subr.mxu0 0.0
    %v4779 = vand.u32 %v4746, 4294901760
    %4780 = vmatpush1.msra.mxu0 %v4779
    %4781 = vmatprep.subr.mxu0 0.0
    %v4782 = vand.u32 %v4747, 4294901760
    %4783 = vmatpush1.msra.mxu0 %v4782
    %4784 = vmatprep.subr.mxu0 0.0
    %v4785 = vand.u32 %v4748, 4294901760
    %4786 = vmatpush1.msra.mxu0 %v4785
    %4787 = vmatprep.subr.mxu0 0.0
    %v4788 = vand.u32 %v4749, 4294901760
    %4789 = vmatpush1.msra.mxu0 %v4788
    %4790 = vmatprep.subr.mxu0 0.0
    %v4791 = vand.u32 %v4750, 4294901760
    %4792 = vmatpush1.msra.mxu0 %v4791
    %4793 = vmatprep.subr.mxu0 0.0
    %v4794 = vand.u32 %v4751, 4294901760
    %4795 = vmatpush1.msra.mxu0 %v4794
    %4796 = vmatprep.subr.mxu0 0.0
    %v4797 = vand.u32 %v4752, 4294901760
    %4798 = vmatpush1.msra.mxu0 %v4797
    %4799 = vmatprep.subr.mxu0 0.0
    %v4800 = vand.u32 %v4753, 4294901760
    %4801 = vmatpush1.msra.mxu0 %v4800
    %4802 = vmatprep.subr.mxu0 0.0
    %v4803 = vand.u32 %v4754, 4294901760
    %4804 = vmatpush1.msra.mxu0 %v4803
    %4805 = vmatprep.subr.mxu0 0.0
    %v4806 = vand.u32 %v4755, 4294901760
    %4807 = vmatpush1.msra.mxu0 %v4806
    %4808 = vmatprep.subr.mxu0 0.0
    %4809 = vmatpush1.msra.mxu0 0.0
    %4810 = vmatprep.subr.mxu0 0.0
    %4811 = vmatpush1.msra.mxu0 0.0
    %4812 = vmatprep.subr.mxu0 0.0
    %4813 = vmatpush1.msra.mxu0 0.0
    %4814 = vmatprep.subr.mxu0 0.0
    %4815 = vmatpush1.msra.mxu0 0.0
    %4816 = vmatprep.subr.mxu0 0.0
    %4817 = vmatpush1.msra.mxu0 0.0
    %4818 = vmatprep.subr.mxu0 0.0
    %4819 = vmatpush1.msra.mxu0 0.0
    %4820 = vmatprep.subr.mxu0 0.0
    %4821 = vmatpush1.msra.mxu0 0.0
    %4822 = vmatprep.subr.mxu0 0.0
    %4823 = vmatpush1.msra.mxu0 0.0
    %4824 = vmatprep.subr.mxu0 0.0
    %4825 = vmatpush1.msra.mxu0 0.0
    %4826 = vmatprep.subr.mxu0 0.0
    %4827 = vmatpush1.msra.mxu0 0.0
    %4828 = vmatprep.subr.mxu0 0.0
    %4829 = vmatpush1.msra.mxu0 0.0
    %4830 = vmatprep.subr.mxu0 0.0
    %4831 = vmatpush1.msra.mxu0 0.0
    %4832 = vmatprep.subr.mxu0 0.0
    %4833 = vmatpush1.msra.mxu0 0.0
    %4834 = vmatprep.subr.mxu0 0.0
    %4835 = vmatpush1.msra.mxu0 0.0
    %4836 = vmatprep.subr.mxu0 0.0
    %4837 = vmatpush1.msra.mxu0 0.0
    %4838 = vmatprep.subr.mxu0 0.0
    %4839 = vmatpush1.msra.mxu0 0.0
    %4840 = vmatprep.mubr.f32.mxu0 0.0
    %v4841 = vand.u32 %v4738, 4294901760
    %v4842 = vsub.f32 %v4738, %v4841
    %v4843 = vand.u32 %v4842, 4294901760
    %v4844 = vsub.f32 %v4842, %v4843
    %v4845 = vand.u32 %v4844, 4294901760
    %4846 = vmatmul.mubr.f32.gmra.mrb[0].mxu0 %v4845
    %v4847 = vpop.f32.mrb[0].mxu0
    %v4848 = vadd.f32 %v4759, %v4847
    %v4849 = vpop.f32.mrb[0].mxu0
    %4850 = vdwg.mxu0
    %4851 = vmatprep.subr.mxu0 0.0
    %v4852 = vand.u32 %v4740, 4294901760
    %v4853 = vsub.f32 %v4740, %v4852
    %v4854 = vand.u32 %v4853, 4294901760
    %v4855 = vsub.f32 %v4853, %v4854
    %v4856 = vand.u32 %v4855, 4294901760
    %4857 = vmatpush1.msra.mxu0 %v4856
    %4858 = vmatprep.subr.mxu0 0.0
    %v4859 = vand.u32 %v4741, 4294901760
    %v4860 = vsub.f32 %v4741, %v4859
    %v4861 = vand.u32 %v4860, 4294901760
    %v4862 = vsub.f32 %v4860, %v4861
    %v4863 = vand.u32 %v4862, 4294901760
    %4864 = vmatpush1.msra.mxu0 %v4863
    %4865 = vmatprep.subr.mxu0 0.0
    %v4866 = vand.u32 %v4742, 4294901760
    %v4867 = vsub.f32 %v4742, %v4866
    %v4868 = vand.u32 %v4867, 4294901760
    %v4869 = vsub.f32 %v4867, %v4868
    %v4870 = vand.u32 %v4869, 4294901760
    %4871 = vmatpush1.msra.mxu0 %v4870
    %4872 = vmatprep.subr.mxu0 0.0
    %v4873 = vand.u32 %v4743, 4294901760
    %v4874 = vsub.f32 %v4743, %v4873
    %v4875 = vand.u32 %v4874, 4294901760
    %v4876 = vsub.f32 %v4874, %v4875
    %v4877 = vand.u32 %v4876, 4294901760
    %4878 = vmatpush1.msra.mxu0 %v4877
    %4879 = vmatprep.subr.mxu0 0.0
    %v4880 = vand.u32 %v4744, 4294901760
    %v4881 = vsub.f32 %v4744, %v4880
    %v4882 = vand.u32 %v4881, 4294901760
    %v4883 = vsub.f32 %v4881, %v4882
    %v4884 = vand.u32 %v4883, 4294901760
    %4885 = vmatpush1.msra.mxu0 %v4884
    %4886 = vmatprep.subr.mxu0 0.0
    %v4887 = vand.u32 %v4745, 4294901760
    %v4888 = vsub.f32 %v4745, %v4887
    %v4889 = vand.u32 %v4888, 4294901760
    %v4890 = vsub.f32 %v4888, %v4889
    %v4891 = vand.u32 %v4890, 4294901760
    %4892 = vmatpush1.msra.mxu0 %v4891
    %4893 = vmatprep.subr.mxu0 0.0
    %v4894 = vand.u32 %v4746, 4294901760
    %v4895 = vsub.f32 %v4746, %v4894
    %v4896 = vand.u32 %v4895, 4294901760
    %v4897 = vsub.f32 %v4895, %v4896
    %v4898 = vand.u32 %v4897, 4294901760
    %4899 = vmatpush1.msra.mxu0 %v4898
    %4900 = vmatprep.subr.mxu0 0.0
    %v4901 = vand.u32 %v4747, 4294901760
    %v4902 = vsub.f32 %v4747, %v4901
    %v4903 = vand.u32 %v4902, 4294901760
    %v4904 = vsub.f32 %v4902, %v4903
    %v4905 = vand.u32 %v4904, 4294901760
    %4906 = vmatpush1.msra.mxu0 %v4905
    %4907 = vmatprep.subr.mxu0 0.0
    %v4908 = vand.u32 %v4748, 4294901760
    %v4909 = vsub.f32 %v4748, %v4908
    %v4910 = vand.u32 %v4909, 4294901760
    %v4911 = vsub.f32 %v4909, %v4910
    %v4912 = vand.u32 %v4911, 4294901760
    %4913 = vmatpush1.msra.mxu0 %v4912
    %4914 = vmatprep.subr.mxu0 0.0
    %v4915 = vand.u32 %v4749, 4294901760
    %v4916 = vsub.f32 %v4749, %v4915
    %v4917 = vand.u32 %v4916, 4294901760
    %v4918 = vsub.f32 %v4916, %v4917
    %v4919 = vand.u32 %v4918, 4294901760
    %4920 = vmatpush1.msra.mxu0 %v4919
    %4921 = vmatprep.subr.mxu0 0.0
    %v4922 = vand.u32 %v4750, 4294901760
    %v4923 = vsub.f32 %v4750, %v4922
    %v4924 = vand.u32 %v4923, 4294901760
    %v4925 = vsub.f32 %v4923, %v4924
    %v4926 = vand.u32 %v4925, 4294901760
    %4927 = vmatpush1.msra.mxu0 %v4926
    %4928 = vmatprep.subr.mxu0 0.0
    %v4929 = vand.u32 %v4751, 4294901760
    %v4930 = vsub.f32 %v4751, %v4929
    %v4931 = vand.u32 %v4930, 4294901760
    %v4932 = vsub.f32 %v4930, %v4931
    %v4933 = vand.u32 %v4932, 4294901760
    %4934 = vmatpush1.msra.mxu0 %v4933
    %4935 = vmatprep.subr.mxu0 0.0
    %v4936 = vand.u32 %v4752, 4294901760
    %v4937 = vsub.f32 %v4752, %v4936
    %v4938 = vand.u32 %v4937, 4294901760
    %v4939 = vsub.f32 %v4937, %v4938
    %v4940 = vand.u32 %v4939, 4294901760
    %4941 = vmatpush1.msra.mxu0 %v4940
    %4942 = vmatprep.subr.mxu0 0.0
    %v4943 = vand.u32 %v4753, 4294901760
    %v4944 = vsub.f32 %v4753, %v4943
    %v4945 = vand.u32 %v4944, 4294901760
    %v4946 = vsub.f32 %v4944, %v4945
    %v4947 = vand.u32 %v4946, 4294901760
    %4948 = vmatpush1.msra.mxu0 %v4947
    %4949 = vmatprep.subr.mxu0 0.0
    %v4950 = vand.u32 %v4754, 4294901760
    %v4951 = vsub.f32 %v4754, %v4950
    %v4952 = vand.u32 %v4951, 4294901760
    %v4953 = vsub.f32 %v4951, %v4952
    %v4954 = vand.u32 %v4953, 4294901760
    %4955 = vmatpush1.msra.mxu0 %v4954
    %4956 = vmatprep.subr.mxu0 0.0
    %v4957 = vand.u32 %v4755, 4294901760
    %v4958 = vsub.f32 %v4755, %v4957
    %v4959 = vand.u32 %v4958, 4294901760
    %v4960 = vsub.f32 %v4958, %v4959
    %v4961 = vand.u32 %v4960, 4294901760
    %4962 = vmatpush1.msra.mxu0 %v4961
    %4963 = vmatprep.subr.mxu0 0.0
    %4964 = vmatpush1.msra.mxu0 0.0
    %4965 = vmatprep.subr.mxu0 0.0
    %4966 = vmatpush1.msra.mxu0 0.0
    %4967 = vmatprep.subr.mxu0 0.0
    %4968 = vmatpush1.msra.mxu0 0.0
    %4969 = vmatprep.subr.mxu0 0.0
    %4970 = vmatpush1.msra.mxu0 0.0
    %4971 = vmatprep.subr.mxu0 0.0
    %4972 = vmatpush1.msra.mxu0 0.0
    %4973 = vmatprep.subr.mxu0 0.0
    %4974 = vmatpush1.msra.mxu0 0.0
    %4975 = vmatprep.subr.mxu0 0.0
    %4976 = vmatpush1.msra.mxu0 0.0
    %4977 = vmatprep.subr.mxu0 0.0
    %4978 = vmatpush1.msra.mxu0 0.0
    %4979 = vmatprep.subr.mxu0 0.0
    %4980 = vmatpush1.msra.mxu0 0.0
    %4981 = vmatprep.subr.mxu0 0.0
    %4982 = vmatpush1.msra.mxu0 0.0
    %4983 = vmatprep.subr.mxu0 0.0
    %4984 = vmatpush1.msra.mxu0 0.0
    %4985 = vmatprep.subr.mxu0 0.0
    %4986 = vmatpush1.msra.mxu0 0.0
    %4987 = vmatprep.subr.mxu0 0.0
    %4988 = vmatpush1.msra.mxu0 0.0
    %4989 = vmatprep.subr.mxu0 0.0
    %4990 = vmatpush1.msra.mxu0 0.0
    %4991 = vmatprep.subr.mxu0 0.0
    %4992 = vmatpush1.msra.mxu0 0.0
    %4993 = vmatprep.subr.mxu0 0.0
    %4994 = vmatpush1.msra.mxu0 0.0
    %4995 = vmatprep.mubr.f32.mxu0 0.0
    %v4996 = vand.u32 %v4738, 4294901760
    %4997 = vmatmul.mubr.f32.gmra.mrb[0].mxu0 %v4996
    %v4998 = vpop.f32.mrb[0].mxu0
    %v4999 = vadd.f32 %v4848, %v4998
    %v5000 = vpop.f32.mrb[0].mxu0
    %5001 = vdwg.mxu0
    %5002 = vmatprep.subr.mxu0 0.0
    %v5003 = vand.u32 %v4740, 4294901760
    %v5004 = vsub.f32 %v4740, %v5003
    %5005 = vmatpush1.msra.mxu0 %v5004
    %5006 = vmatprep.subr.mxu0 0.0
    %v5007 = vand.u32 %v4741, 4294901760
    %v5008 = vsub.f32 %v4741, %v5007
    %5009 = vmatpush1.msra.mxu0 %v5008
    %5010 = vmatprep.subr.mxu0 0.0
    %v5011 = vand.u32 %v4742, 4294901760
    %v5012 = vsub.f32 %v4742, %v5011
    %5013 = vmatpush1.msra.mxu0 %v5012
    %5014 = vmatprep.subr.mxu0 0.0
    %v5015 = vand.u32 %v4743, 4294901760
    %v5016 = vsub.f32 %v4743, %v5015
    %5017 = vmatpush1.msra.mxu0 %v5016
    %5018 = vmatprep.subr.mxu0 0.0
    %v5019 = vand.u32 %v4744, 4294901760
    %v5020 = vsub.f32 %v4744, %v5019
    %5021 = vmatpush1.msra.mxu0 %v5020
    %5022 = vmatprep.subr.mxu0 0.0
    %v5023 = vand.u32 %v4745, 4294901760
    %v5024 = vsub.f32 %v4745, %v5023
    %5025 = vmatpush1.msra.mxu0 %v5024
    %5026 = vmatprep.subr.mxu0 0.0
    %v5027 = vand.u32 %v4746, 4294901760
    %v5028 = vsub.f32 %v4746, %v5027
    %5029 = vmatpush1.msra.mxu0 %v5028
    %5030 = vmatprep.subr.mxu0 0.0
    %v5031 = vand.u32 %v4747, 4294901760
    %v5032 = vsub.f32 %v4747, %v5031
    %5033 = vmatpush1.msra.mxu0 %v5032
    %5034 = vmatprep.subr.mxu0 0.0
    %v5035 = vand.u32 %v4748, 4294901760
    %v5036 = vsub.f32 %v4748, %v5035
    %5037 = vmatpush1.msra.mxu0 %v5036
    %5038 = vmatprep.subr.mxu0 0.0
    %v5039 = vand.u32 %v4749, 4294901760
    %v5040 = vsub.f32 %v4749, %v5039
    %5041 = vmatpush1.msra.mxu0 %v5040
    %5042 = vmatprep.subr.mxu0 0.0
    %v5043 = vand.u32 %v4750, 4294901760
    %v5044 = vsub.f32 %v4750, %v5043
    %5045 = vmatpush1.msra.mxu0 %v5044
    %5046 = vmatprep.subr.mxu0 0.0
    %v5047 = vand.u32 %v4751, 4294901760
    %v5048 = vsub.f32 %v4751, %v5047
    %5049 = vmatpush1.msra.mxu0 %v5048
    %5050 = vmatprep.subr.mxu0 0.0
    %v5051 = vand.u32 %v4752, 4294901760
    %v5052 = vsub.f32 %v4752, %v5051
    %5053 = vmatpush1.msra.mxu0 %v5052
    %5054 = vmatprep.subr.mxu0 0.0
    %v5055 = vand.u32 %v4753, 4294901760
    %v5056 = vsub.f32 %v4753, %v5055
    %5057 = vmatpush1.msra.mxu0 %v5056
    %5058 = vmatprep.subr.mxu0 0.0
    %v5059 = vand.u32 %v4754, 4294901760
    %v5060 = vsub.f32 %v4754, %v5059
    %5061 = vmatpush1.msra.mxu0 %v5060
    %5062 = vmatprep.subr.mxu0 0.0
    %v5063 = vand.u32 %v4755, 4294901760
    %v5064 = vsub.f32 %v4755, %v5063
    %5065 = vmatpush1.msra.mxu0 %v5064
    %5066 = vmatprep.subr.mxu0 0.0
    %5067 = vmatpush1.msra.mxu0 0.0
    %5068 = vmatprep.subr.mxu0 0.0
    %5069 = vmatpush1.msra.mxu0 0.0
    %5070 = vmatprep.subr.mxu0 0.0
    %5071 = vmatpush1.msra.mxu0 0.0
    %5072 = vmatprep.subr.mxu0 0.0
    %5073 = vmatpush1.msra.mxu0 0.0
    %5074 = vmatprep.subr.mxu0 0.0
    %5075 = vmatpush1.msra.mxu0 0.0
    %5076 = vmatprep.subr.mxu0 0.0
    %5077 = vmatpush1.msra.mxu0 0.0
    %5078 = vmatprep.subr.mxu0 0.0
    %5079 = vmatpush1.msra.mxu0 0.0
    %5080 = vmatprep.subr.mxu0 0.0
    %5081 = vmatpush1.msra.mxu0 0.0
    %5082 = vmatprep.subr.mxu0 0.0
    %5083 = vmatpush1.msra.mxu0 0.0
    %5084 = vmatprep.subr.mxu0 0.0
    %5085 = vmatpush1.msra.mxu0 0.0
    %5086 = vmatprep.subr.mxu0 0.0
    %5087 = vmatpush1.msra.mxu0 0.0
    %5088 = vmatprep.subr.mxu0 0.0
    %5089 = vmatpush1.msra.mxu0 0.0
    %5090 = vmatprep.subr.mxu0 0.0
    %5091 = vmatpush1.msra.mxu0 0.0
    %5092 = vmatprep.subr.mxu0 0.0
    %5093 = vmatpush1.msra.mxu0 0.0
    %5094 = vmatprep.subr.mxu0 0.0
    %5095 = vmatpush1.msra.mxu0 0.0
    %5096 = vmatprep.subr.mxu0 0.0
    %5097 = vmatpush1.msra.mxu0 0.0
    %5098 = vmatprep.mubr.f32.mxu0 0.0
    %v5099 = vand.u32 %v4738, 4294901760
    %v5100 = vsub.f32 %v4738, %v5099
    %5101 = vmatmul.mubr.f32.gmra.mrb[0].mxu0 %v5100
    %v5102 = vpop.f32.mrb[0].mxu0
    %v5103 = vadd.f32 %v4999, %v5102
    %v5104 = vpop.f32.mrb[0].mxu0
    %5105 = vdwg.mxu0
    %5106 = vmatprep.subr.mxu0 0.0
    %v5107 = vand.u32 %v4740, 4294901760
    %5108 = vmatpush1.msra.mxu0 %v5107
    %5109 = vmatprep.subr.mxu0 0.0
    %v5110 = vand.u32 %v4741, 4294901760
    %5111 = vmatpush1.msra.mxu0 %v5110
    %5112 = vmatprep.subr.mxu0 0.0
    %v5113 = vand.u32 %v4742, 4294901760
    %5114 = vmatpush1.msra.mxu0 %v5113
    %5115 = vmatprep.subr.mxu0 0.0
    %v5116 = vand.u32 %v4743, 4294901760
    %5117 = vmatpush1.msra.mxu0 %v5116
    %5118 = vmatprep.subr.mxu0 0.0
    %v5119 = vand.u32 %v4744, 4294901760
    %5120 = vmatpush1.msra.mxu0 %v5119
    %5121 = vmatprep.subr.mxu0 0.0
    %v5122 = vand.u32 %v4745, 4294901760
    %5123 = vmatpush1.msra.mxu0 %v5122
    %5124 = vmatprep.subr.mxu0 0.0
    %v5125 = vand.u32 %v4746, 4294901760
    %5126 = vmatpush1.msra.mxu0 %v5125
    %5127 = vmatprep.subr.mxu0 0.0
    %v5128 = vand.u32 %v4747, 4294901760
    %5129 = vmatpush1.msra.mxu0 %v5128
    %5130 = vmatprep.subr.mxu0 0.0
    %v5131 = vand.u32 %v4748, 4294901760
    %5132 = vmatpush1.msra.mxu0 %v5131
    %5133 = vmatprep.subr.mxu0 0.0
    %v5134 = vand.u32 %v4749, 4294901760
    %5135 = vmatpush1.msra.mxu0 %v5134
    %5136 = vmatprep.subr.mxu0 0.0
    %v5137 = vand.u32 %v4750, 4294901760
    %5138 = vmatpush1.msra.mxu0 %v5137
    %5139 = vmatprep.subr.mxu0 0.0
    %v5140 = vand.u32 %v4751, 4294901760
    %5141 = vmatpush1.msra.mxu0 %v5140
    %5142 = vmatprep.subr.mxu0 0.0
    %v5143 = vand.u32 %v4752, 4294901760
    %5144 = vmatpush1.msra.mxu0 %v5143
    %5145 = vmatprep.subr.mxu0 0.0
    %v5146 = vand.u32 %v4753, 4294901760
    %5147 = vmatpush1.msra.mxu0 %v5146
    %5148 = vmatprep.subr.mxu0 0.0
    %v5149 = vand.u32 %v4754, 4294901760
    %5150 = vmatpush1.msra.mxu0 %v5149
    %5151 = vmatprep.subr.mxu0 0.0
    %v5152 = vand.u32 %v4755, 4294901760
    %5153 = vmatpush1.msra.mxu0 %v5152
    %5154 = vmatprep.subr.mxu0 0.0
    %5155 = vmatpush1.msra.mxu0 0.0
    %5156 = vmatprep.subr.mxu0 0.0
    %5157 = vmatpush1.msra.mxu0 0.0
    %5158 = vmatprep.subr.mxu0 0.0
    %5159 = vmatpush1.msra.mxu0 0.0
    %5160 = vmatprep.subr.mxu0 0.0
    %5161 = vmatpush1.msra.mxu0 0.0
    %5162 = vmatprep.subr.mxu0 0.0
    %5163 = vmatpush1.msra.mxu0 0.0
    %5164 = vmatprep.subr.mxu0 0.0
    %5165 = vmatpush1.msra.mxu0 0.0
    %5166 = vmatprep.subr.mxu0 0.0
    %5167 = vmatpush1.msra.mxu0 0.0
    %5168 = vmatprep.subr.mxu0 0.0
    %5169 = vmatpush1.msra.mxu0 0.0
    %5170 = vmatprep.subr.mxu0 0.0
    %5171 = vmatpush1.msra.mxu0 0.0
    %5172 = vmatprep.subr.mxu0 0.0
    %5173 = vmatpush1.msra.mxu0 0.0
    %5174 = vmatprep.subr.mxu0 0.0
    %5175 = vmatpush1.msra.mxu0 0.0
    %5176 = vmatprep.subr.mxu0 0.0
    %5177 = vmatpush1.msra.mxu0 0.0
    %5178 = vmatprep.subr.mxu0 0.0
    %5179 = vmatpush1.msra.mxu0 0.0
    %5180 = vmatprep.subr.mxu0 0.0
    %5181 = vmatpush1.msra.mxu0 0.0
    %5182 = vmatprep.subr.mxu0 0.0
    %5183 = vmatpush1.msra.mxu0 0.0
    %5184 = vmatprep.subr.mxu0 0.0
    %5185 = vmatpush1.msra.mxu0 0.0
    %5186 = vmatprep.mubr.f32.mxu0 0.0
    %v5187 = vand.u32 %v4738, 4294901760
    %v5188 = vsub.f32 %v4738, %v5187
    %v5189 = vand.u32 %v5188, 4294901760
    %5190 = vmatmul.mubr.f32.gmra.mrb[0].mxu0 %v5189
    %v5191 = vpop.f32.mrb[0].mxu0
    %v5192 = vadd.f32 %v5103, %v5191
    %v5193 = vpop.f32.mrb[0].mxu0
    %5194 = vdwg.mxu0
    %5195 = vmatprep.subr.mxu0 0.0
    %v5196 = vand.u32 %v4740, 4294901760
    %v5197 = vsub.f32 %v4740, %v5196
    %v5198 = vand.u32 %v5197, 4294901760
    %5199 = vmatpush1.msra.mxu0 %v5198
    %5200 = vmatprep.subr.mxu0 0.0
    %v5201 = vand.u32 %v4741, 4294901760
    %v5202 = vsub.f32 %v4741, %v5201
    %v5203 = vand.u32 %v5202, 4294901760
    %5204 = vmatpush1.msra.mxu0 %v5203
    %5205 = vmatprep.subr.mxu0 0.0
    %v5206 = vand.u32 %v4742, 4294901760
    %v5207 = vsub.f32 %v4742, %v5206
    %v5208 = vand.u32 %v5207, 4294901760
    %5209 = vmatpush1.msra.mxu0 %v5208
    %5210 = vmatprep.subr.mxu0 0.0
    %v5211 = vand.u32 %v4743, 4294901760
    %v5212 = vsub.f32 %v4743, %v5211
    %v5213 = vand.u32 %v5212, 4294901760
    %5214 = vmatpush1.msra.mxu0 %v5213
    %5215 = vmatprep.subr.mxu0 0.0
    %v5216 = vand.u32 %v4744, 4294901760
    %v5217 = vsub.f32 %v4744, %v5216
    %v5218 = vand.u32 %v5217, 4294901760
    %5219 = vmatpush1.msra.mxu0 %v5218
    %5220 = vmatprep.subr.mxu0 0.0
    %v5221 = vand.u32 %v4745, 4294901760
    %v5222 = vsub.f32 %v4745, %v5221
    %v5223 = vand.u32 %v5222, 4294901760
    %5224 = vmatpush1.msra.mxu0 %v5223
    %5225 = vmatprep.subr.mxu0 0.0
    %v5226 = vand.u32 %v4746, 4294901760
    %v5227 = vsub.f32 %v4746, %v5226
    %v5228 = vand.u32 %v5227, 4294901760
    %5229 = vmatpush1.msra.mxu0 %v5228
    %5230 = vmatprep.subr.mxu0 0.0
    %v5231 = vand.u32 %v4747, 4294901760
    %v5232 = vsub.f32 %v4747, %v5231
    %v5233 = vand.u32 %v5232, 4294901760
    %5234 = vmatpush1.msra.mxu0 %v5233
    %5235 = vmatprep.subr.mxu0 0.0
    %v5236 = vand.u32 %v4748, 4294901760
    %v5237 = vsub.f32 %v4748, %v5236
    %v5238 = vand.u32 %v5237, 4294901760
    %5239 = vmatpush1.msra.mxu0 %v5238
    %5240 = vmatprep.subr.mxu0 0.0
    %v5241 = vand.u32 %v4749, 4294901760
    %v5242 = vsub.f32 %v4749, %v5241
    %v5243 = vand.u32 %v5242, 4294901760
    %5244 = vmatpush1.msra.mxu0 %v5243
    %5245 = vmatprep.subr.mxu0 0.0
    %v5246 = vand.u32 %v4750, 4294901760
    %v5247 = vsub.f32 %v4750, %v5246
    %v5248 = vand.u32 %v5247, 4294901760
    %5249 = vmatpush1.msra.mxu0 %v5248
    %5250 = vmatprep.subr.mxu0 0.0
    %v5251 = vand.u32 %v4751, 4294901760
    %v5252 = vsub.f32 %v4751, %v5251
    %v5253 = vand.u32 %v5252, 4294901760
    %5254 = vmatpush1.msra.mxu0 %v5253
    %5255 = vmatprep.subr.mxu0 0.0
    %v5256 = vand.u32 %v4752, 4294901760
    %v5257 = vsub.f32 %v4752, %v5256
    %v5258 = vand.u32 %v5257, 4294901760
    %5259 = vmatpush1.msra.mxu0 %v5258
    %5260 = vmatprep.subr.mxu0 0.0
    %v5261 = vand.u32 %v4753, 4294901760
    %v5262 = vsub.f32 %v4753, %v5261
    %v5263 = vand.u32 %v5262, 4294901760
    %5264 = vmatpush1.msra.mxu0 %v5263
    %5265 = vmatprep.subr.mxu0 0.0
    %v5266 = vand.u32 %v4754, 4294901760
    %v5267 = vsub.f32 %v4754, %v5266
    %v5268 = vand.u32 %v5267, 4294901760
    %5269 = vmatpush1.msra.mxu0 %v5268
    %5270 = vmatprep.subr.mxu0 0.0
    %v5271 = vand.u32 %v4755, 4294901760
    %v5272 = vsub.f32 %v4755, %v5271
    %v5273 = vand.u32 %v5272, 4294901760
    %5274 = vmatpush1.msra.mxu0 %v5273
    %5275 = vmatprep.subr.mxu0 0.0
    %5276 = vmatpush1.msra.mxu0 0.0
    %5277 = vmatprep.subr.mxu0 0.0
    %5278 = vmatpush1.msra.mxu0 0.0
    %5279 = vmatprep.subr.mxu0 0.0
    %5280 = vmatpush1.msra.mxu0 0.0
    %5281 = vmatprep.subr.mxu0 0.0
    %5282 = vmatpush1.msra.mxu0 0.0
    %5283 = vmatprep.subr.mxu0 0.0
    %5284 = vmatpush1.msra.mxu0 0.0
    %5285 = vmatprep.subr.mxu0 0.0
    %5286 = vmatpush1.msra.mxu0 0.0
    %5287 = vmatprep.subr.mxu0 0.0
    %5288 = vmatpush1.msra.mxu0 0.0
    %5289 = vmatprep.subr.mxu0 0.0
    %5290 = vmatpush1.msra.mxu0 0.0
    %5291 = vmatprep.subr.mxu0 0.0
    %5292 = vmatpush1.msra.mxu0 0.0
    %5293 = vmatprep.subr.mxu0 0.0
    %5294 = vmatpush1.msra.mxu0 0.0
    %5295 = vmatprep.subr.mxu0 0.0
    %5296 = vmatpush1.msra.mxu0 0.0
    %5297 = vmatprep.subr.mxu0 0.0
    %5298 = vmatpush1.msra.mxu0 0.0
    %5299 = vmatprep.subr.mxu0 0.0
    %5300 = vmatpush1.msra.mxu0 0.0
    %5301 = vmatprep.subr.mxu0 0.0
    %5302 = vmatpush1.msra.mxu0 0.0
    %5303 = vmatprep.subr.mxu0 0.0
    %5304 = vmatpush1.msra.mxu0 0.0
    %5305 = vmatprep.subr.mxu0 0.0
    %5306 = vmatpush1.msra.mxu0 0.0
    %5307 = vmatprep.mubr.f32.mxu0 0.0
    %v5308 = vand.u32 %v4738, 4294901760
    %5309 = vmatmul.mubr.f32.gmra.mrb[0].mxu0 %v5308
    %v5310 = vpop.f32.mrb[0].mxu0
    %v5311 = vadd.f32 %v5192, %v5310
    %v5312 = vpop.f32.mrb[0].mxu0
    %5313 = vdwg.mxu0
    %5314 = vmatprep.subr.mxu0 0.0
    %v5315 = vand.u32 %v4740, 4294901760
    %5316 = vmatpush1.msra.mxu0 %v5315
    %5317 = vmatprep.subr.mxu0 0.0
    %v5318 = vand.u32 %v4741, 4294901760
    %5319 = vmatpush1.msra.mxu0 %v5318
    %5320 = vmatprep.subr.mxu0 0.0
    %v5321 = vand.u32 %v4742, 4294901760
    %5322 = vmatpush1.msra.mxu0 %v5321
    %5323 = vmatprep.subr.mxu0 0.0
    %v5324 = vand.u32 %v4743, 4294901760
    %5325 = vmatpush1.msra.mxu0 %v5324
    %5326 = vmatprep.subr.mxu0 0.0
    %v5327 = vand.u32 %v4744, 4294901760
    %5328 = vmatpush1.msra.mxu0 %v5327
    %5329 = vmatprep.subr.mxu0 0.0
    %v5330 = vand.u32 %v4745, 4294901760
    %5331 = vmatpush1.msra.mxu0 %v5330
    %5332 = vmatprep.subr.mxu0 0.0
    %v5333 = vand.u32 %v4746, 4294901760
    %5334 = vmatpush1.msra.mxu0 %v5333
    %5335 = vmatprep.subr.mxu0 0.0
    %v5336 = vand.u32 %v4747, 4294901760
    %5337 = vmatpush1.msra.mxu0 %v5336
    %5338 = vmatprep.subr.mxu0 0.0
    %v5339 = vand.u32 %v4748, 4294901760
    %5340 = vmatpush1.msra.mxu0 %v5339
    %5341 = vmatprep.subr.mxu0 0.0
    %v5342 = vand.u32 %v4749, 4294901760
    %5343 = vmatpush1.msra.mxu0 %v5342
    %5344 = vmatprep.subr.mxu0 0.0
    %v5345 = vand.u32 %v4750, 4294901760
    %5346 = vmatpush1.msra.mxu0 %v5345
    %5347 = vmatprep.subr.mxu0 0.0
    %v5348 = vand.u32 %v4751, 4294901760
    %5349 = vmatpush1.msra.mxu0 %v5348
    %5350 = vmatprep.subr.mxu0 0.0
    %v5351 = vand.u32 %v4752, 4294901760
    %5352 = vmatpush1.msra.mxu0 %v5351
    %5353 = vmatprep.subr.mxu0 0.0
    %v5354 = vand.u32 %v4753, 4294901760
    %5355 = vmatpush1.msra.mxu0 %v5354
    %5356 = vmatprep.subr.mxu0 0.0
    %v5357 = vand.u32 %v4754, 4294901760
    %5358 = vmatpush1.msra.mxu0 %v5357
    %5359 = vmatprep.subr.mxu0 0.0
    %v5360 = vand.u32 %v4755, 4294901760
    %5361 = vmatpush1.msra.mxu0 %v5360
    %5362 = vmatprep.subr.mxu0 0.0
    %5363 = vmatpush1.msra.mxu0 0.0
    %5364 = vmatprep.subr.mxu0 0.0
    %5365 = vmatpush1.msra.mxu0 0.0
    %5366 = vmatprep.subr.mxu0 0.0
    %5367 = vmatpush1.msra.mxu0 0.0
    %5368 = vmatprep.subr.mxu0 0.0
    %5369 = vmatpush1.msra.mxu0 0.0
    %5370 = vmatprep.subr.mxu0 0.0
    %5371 = vmatpush1.msra.mxu0 0.0
    %5372 = vmatprep.subr.mxu0 0.0
    %5373 = vmatpush1.msra.mxu0 0.0
    %5374 = vmatprep.subr.mxu0 0.0
    %5375 = vmatpush1.msra.mxu0 0.0
    %5376 = vmatprep.subr.mxu0 0.0
    %5377 = vmatpush1.msra.mxu0 0.0
    %5378 = vmatprep.subr.mxu0 0.0
    %5379 = vmatpush1.msra.mxu0 0.0
    %5380 = vmatprep.subr.mxu0 0.0
    %5381 = vmatpush1.msra.mxu0 0.0
    %5382 = vmatprep.subr.mxu0 0.0
    %5383 = vmatpush1.msra.mxu0 0.0
    %5384 = vmatprep.subr.mxu0 0.0
    %5385 = vmatpush1.msra.mxu0 0.0
    %5386 = vmatprep.subr.mxu0 0.0
    %5387 = vmatpush1.msra.mxu0 0.0
    %5388 = vmatprep.subr.mxu0 0.0
    %5389 = vmatpush1.msra.mxu0 0.0
    %5390 = vmatprep.subr.mxu0 0.0
    %5391 = vmatpush1.msra.mxu0 0.0
    %5392 = vmatprep.subr.mxu0 0.0
    %5393 = vmatpush1.msra.mxu0 0.0
    %5394 = vmatprep.mubr.f32.mxu0 0.0
    %v5395 = vand.u32 %v4738, 4294901760
    %5396 = vmatmul.mubr.f32.gmra.mrb[0].mxu0 %v5395
    %v5397 = vpop.f32.mrb[0].mxu0
    %v5398 = vadd.f32 %v5311, %v5397
    %v5399 = vpop.f32.mrb[0].mxu0
    %5400 = vdwg.mxu0
    %v5401 = vmax.f32 %v5398, 0.0
    %v5402 = vld [vmem:[#allocation7] sm:$0xff]
    %v5403 = vld [vmem:[#allocation7 + $0x8] sm:$0xff]
    %v5404 = vld [vmem:[#allocation7 + $0x10] sm:$0xff]
    %v5405 = vld [vmem:[#allocation7 + $0x18] sm:$0xff]
    %v5406 = vld [vmem:[#allocation7 + $0x20] sm:$0xff]
    %v5407 = vld [vmem:[#allocation7 + $0x28] sm:$0xff]
    %v5408 = vld [vmem:[#allocation7 + $0x30] sm:$0xff]
    %v5409 = vld [vmem:[#allocation7 + $0x38] sm:$0xff]
    %v5410 = vld [vmem:[#allocation7 + $0x40] sm:$0xff]
    %v5411 = vld [vmem:[#allocation7 + $0x48] sm:$0xff]
    %v5412 = vld [vmem:[#allocation7 + $0x50] sm:$0xff]
    %v5413 = vld [vmem:[#allocation7 + $0x58] sm:$0xff]
    %v5414 = vld [vmem:[#allocation7 + $0x60] sm:$0xff]
    %v5415 = vld [vmem:[#allocation7 + $0x68] sm:$0xff]
    %v5416 = vld [vmem:[#allocation7 + $0x70] sm:$0xff]
    %v5417 = vld [vmem:[#allocation7 + $0x78] sm:$0xff]
    %v5418 = vlaneseq
    %v5419 = vshrl.u32 %v5418, 7
    %v5420 = vsub.s32 4, %v5419
    %v5421 = vrot.slane %v62, %v5420
    %5422 = vmatprep.subr.mxu0 0.0
    %v5423 = vand.u32 %v5402, 4294901760
    %5424 = vmatpush1.msra.mxu0 %v5423
    %5425 = vmatprep.subr.mxu0 0.0
    %v5426 = vand.u32 %v5403, 4294901760
    %5427 = vmatpush1.msra.mxu0 %v5426
    %5428 = vmatprep.subr.mxu0 0.0
    %v5429 = vand.u32 %v5404, 4294901760
    %5430 = vmatpush1.msra.mxu0 %v5429
    %5431 = vmatprep.subr.mxu0 0.0
    %v5432 = vand.u32 %v5405, 4294901760
    %5433 = vmatpush1.msra.mxu0 %v5432
    %5434 = vmatprep.subr.mxu0 0.0
    %v5435 = vand.u32 %v5406, 4294901760
    %5436 = vmatpush1.msra.mxu0 %v5435
    %5437 = vmatprep.subr.mxu0 0.0
    %v5438 = vand.u32 %v5407, 4294901760
    %5439 = vmatpush1.msra.mxu0 %v5438
    %5440 = vmatprep.subr.mxu0 0.0
    %v5441 = vand.u32 %v5408, 4294901760
    %5442 = vmatpush1.msra.mxu0 %v5441
    %5443 = vmatprep.subr.mxu0 0.0
    %v5444 = vand.u32 %v5409, 4294901760
    %5445 = vmatpush1.msra.mxu0 %v5444
    %5446 = vmatprep.subr.mxu0 0.0
    %v5447 = vand.u32 %v5410, 4294901760
    %5448 = vmatpush1.msra.mxu0 %v5447
    %5449 = vmatprep.subr.mxu0 0.0
    %v5450 = vand.u32 %v5411, 4294901760
    %5451 = vmatpush1.msra.mxu0 %v5450
    %5452 = vmatprep.subr.mxu0 0.0
    %v5453 = vand.u32 %v5412, 4294901760
    %5454 = vmatpush1.msra.mxu0 %v5453
    %5455 = vmatprep.subr.mxu0 0.0
    %v5456 = vand.u32 %v5413, 4294901760
    %5457 = vmatpush1.msra.mxu0 %v5456
    %5458 = vmatprep.subr.mxu0 0.0
    %v5459 = vand.u32 %v5414, 4294901760
    %5460 = vmatpush1.msra.mxu0 %v5459
    %5461 = vmatprep.subr.mxu0 0.0
    %v5462 = vand.u32 %v5415, 4294901760
    %5463 = vmatpush1.msra.mxu0 %v5462
    %5464 = vmatprep.subr.mxu0 0.0
    %v5465 = vand.u32 %v5416, 4294901760
    %5466 = vmatpush1.msra.mxu0 %v5465
    %5467 = vmatprep.subr.mxu0 0.0
    %v5468 = vand.u32 %v5417, 4294901760
    %5469 = vmatpush1.msra.mxu0 %v5468
    %5470 = vmatprep.subr.mxu0 0.0
    %5471 = vmatpush1.msra.mxu0 0.0
    %5472 = vmatprep.subr.mxu0 0.0
    %5473 = vmatpush1.msra.mxu0 0.0
    %5474 = vmatprep.subr.mxu0 0.0
    %5475 = vmatpush1.msra.mxu0 0.0
    %5476 = vmatprep.subr.mxu0 0.0
    %5477 = vmatpush1.msra.mxu0 0.0
    %5478 = vmatprep.subr.mxu0 0.0
    %5479 = vmatpush1.msra.mxu0 0.0
    %5480 = vmatprep.subr.mxu0 0.0
    %5481 = vmatpush1.msra.mxu0 0.0
    %5482 = vmatprep.subr.mxu0 0.0
    %5483 = vmatpush1.msra.mxu0 0.0
    %5484 = vmatprep.subr.mxu0 0.0
    %5485 = vmatpush1.msra.mxu0 0.0
    %5486 = vmatprep.subr.mxu0 0.0
    %5487 = vmatpush1.msra.mxu0 0.0
    %5488 = vmatprep.subr.mxu0 0.0
    %5489 = vmatpush1.msra.mxu0 0.0
    %5490 = vmatprep.subr.mxu0 0.0
    %5491 = vmatpush1.msra.mxu0 0.0
    %5492 = vmatprep.subr.mxu0 0.0
    %5493 = vmatpush1.msra.mxu0 0.0
    %5494 = vmatprep.subr.mxu0 0.0
    %5495 = vmatpush1.msra.mxu0 0.0
    %5496 = vmatprep.subr.mxu0 0.0
    %5497 = vmatpush1.msra.mxu0 0.0
    %5498 = vmatprep.subr.mxu0 0.0
    %5499 = vmatpush1.msra.mxu0 0.0
    %5500 = vmatprep.subr.mxu0 0.0
    %5501 = vmatpush1.msra.mxu0 0.0
    %5502 = vmatprep.mubr.f32.mxu0 0.0
    %v5503 = vand.u32 %v5401, 4294901760
    %v5504 = vsub.f32 %v5401, %v5503
    %v5505 = vand.u32 %v5504, 4294901760
    %v5506 = vsub.f32 %v5504, %v5505
    %v5507 = vand.u32 %v5506, 4294901760
    %5508 = vmatmul.mubr.f32.gmra.mrb[0].mxu0 %v5507
    %v5509 = vpop.f32.mrb[0].mxu0
    %v5510 = vadd.f32 %v5421, %v5509
    %v5511 = vpop.f32.mrb[0].mxu0
    %5512 = vdwg.mxu0
    %5513 = vmatprep.subr.mxu0 0.0
    %v5514 = vand.u32 %v5402, 4294901760
    %v5515 = vsub.f32 %v5402, %v5514
    %v5516 = vand.u32 %v5515, 4294901760
    %v5517 = vsub.f32 %v5515, %v5516
    %v5518 = vand.u32 %v5517, 4294901760
    %5519 = vmatpush1.msra.mxu0 %v5518
    %5520 = vmatprep.subr.mxu0 0.0
    %v5521 = vand.u32 %v5403, 4294901760
    %v5522 = vsub.f32 %v5403, %v5521
    %v5523 = vand.u32 %v5522, 4294901760
    %v5524 = vsub.f32 %v5522, %v5523
    %v5525 = vand.u32 %v5524, 4294901760
    %5526 = vmatpush1.msra.mxu0 %v5525
    %5527 = vmatprep.subr.mxu0 0.0
    %v5528 = vand.u32 %v5404, 4294901760
    %v5529 = vsub.f32 %v5404, %v5528
    %v5530 = vand.u32 %v5529, 4294901760
    %v5531 = vsub.f32 %v5529, %v5530
    %v5532 = vand.u32 %v5531, 4294901760
    %5533 = vmatpush1.msra.mxu0 %v5532
    %5534 = vmatprep.subr.mxu0 0.0
    %v5535 = vand.u32 %v5405, 4294901760
    %v5536 = vsub.f32 %v5405, %v5535
    %v5537 = vand.u32 %v5536, 4294901760
    %v5538 = vsub.f32 %v5536, %v5537
    %v5539 = vand.u32 %v5538, 4294901760
    %5540 = vmatpush1.msra.mxu0 %v5539
    %5541 = vmatprep.subr.mxu0 0.0
    %v5542 = vand.u32 %v5406, 4294901760
    %v5543 = vsub.f32 %v5406, %v5542
    %v5544 = vand.u32 %v5543, 4294901760
    %v5545 = vsub.f32 %v5543, %v5544
    %v5546 = vand.u32 %v5545, 4294901760
    %5547 = vmatpush1.msra.mxu0 %v5546
    %5548 = vmatprep.subr.mxu0 0.0
    %v5549 = vand.u32 %v5407, 4294901760
    %v5550 = vsub.f32 %v5407, %v5549
    %v5551 = vand.u32 %v5550, 4294901760
    %v5552 = vsub.f32 %v5550, %v5551
    %v5553 = vand.u32 %v5552, 4294901760
    %5554 = vmatpush1.msra.mxu0 %v5553
    %5555 = vmatprep.subr.mxu0 0.0
    %v5556 = vand.u32 %v5408, 4294901760
    %v5557 = vsub.f32 %v5408, %v5556
    %v5558 = vand.u32 %v5557, 4294901760
    %v5559 = vsub.f32 %v5557, %v5558
    %v5560 = vand.u32 %v5559, 4294901760
    %5561 = vmatpush1.msra.mxu0 %v5560
    %5562 = vmatprep.subr.mxu0 0.0
    %v5563 = vand.u32 %v5409, 4294901760
    %v5564 = vsub.f32 %v5409, %v5563
    %v5565 = vand.u32 %v5564, 4294901760
    %v5566 = vsub.f32 %v5564, %v5565
    %v5567 = vand.u32 %v5566, 4294901760
    %5568 = vmatpush1.msra.mxu0 %v5567
    %5569 = vmatprep.subr.mxu0 0.0
    %v5570 = vand.u32 %v5410, 4294901760
    %v5571 = vsub.f32 %v5410, %v5570
    %v5572 = vand.u32 %v5571, 4294901760
    %v5573 = vsub.f32 %v5571, %v5572
    %v5574 = vand.u32 %v5573, 4294901760
    %5575 = vmatpush1.msra.mxu0 %v5574
    %5576 = vmatprep.subr.mxu0 0.0
    %v5577 = vand.u32 %v5411, 4294901760
    %v5578 = vsub.f32 %v5411, %v5577
    %v5579 = vand.u32 %v5578, 4294901760
    %v5580 = vsub.f32 %v5578, %v5579
    %v5581 = vand.u32 %v5580, 4294901760
    %5582 = vmatpush1.msra.mxu0 %v5581
    %5583 = vmatprep.subr.mxu0 0.0
    %v5584 = vand.u32 %v5412, 4294901760
    %v5585 = vsub.f32 %v5412, %v5584
    %v5586 = vand.u32 %v5585, 4294901760
    %v5587 = vsub.f32 %v5585, %v5586
    %v5588 = vand.u32 %v5587, 4294901760
    %5589 = vmatpush1.msra.mxu0 %v5588
    %5590 = vmatprep.subr.mxu0 0.0
    %v5591 = vand.u32 %v5413, 4294901760
    %v5592 = vsub.f32 %v5413, %v5591
    %v5593 = vand.u32 %v5592, 4294901760
    %v5594 = vsub.f32 %v5592, %v5593
    %v5595 = vand.u32 %v5594, 4294901760
    %5596 = vmatpush1.msra.mxu0 %v5595
    %5597 = vmatprep.subr.mxu0 0.0
    %v5598 = vand.u32 %v5414, 4294901760
    %v5599 = vsub.f32 %v5414, %v5598
    %v5600 = vand.u32 %v5599, 4294901760
    %v5601 = vsub.f32 %v5599, %v5600
    %v5602 = vand.u32 %v5601, 4294901760
    %5603 = vmatpush1.msra.mxu0 %v5602
    %5604 = vmatprep.subr.mxu0 0.0
    %v5605 = vand.u32 %v5415, 4294901760
    %v5606 = vsub.f32 %v5415, %v5605
    %v5607 = vand.u32 %v5606, 4294901760
    %v5608 = vsub.f32 %v5606, %v5607
    %v5609 = vand.u32 %v5608, 4294901760
    %5610 = vmatpush1.msra.mxu0 %v5609
    %5611 = vmatprep.subr.mxu0 0.0
    %v5612 = vand.u32 %v5416, 4294901760
    %v5613 = vsub.f32 %v5416, %v5612
    %v5614 = vand.u32 %v5613, 4294901760
    %v5615 = vsub.f32 %v5613, %v5614
    %v5616 = vand.u32 %v5615, 4294901760
    %5617 = vmatpush1.msra.mxu0 %v5616
    %5618 = vmatprep.subr.mxu0 0.0
    %v5619 = vand.u32 %v5417, 4294901760
    %v5620 = vsub.f32 %v5417, %v5619
    %v5621 = vand.u32 %v5620, 4294901760
    %v5622 = vsub.f32 %v5620, %v5621
    %v5623 = vand.u32 %v5622, 4294901760
    %5624 = vmatpush1.msra.mxu0 %v5623
    %5625 = vmatprep.subr.mxu0 0.0
    %5626 = vmatpush1.msra.mxu0 0.0
    %5627 = vmatprep.subr.mxu0 0.0
    %5628 = vmatpush1.msra.mxu0 0.0
    %5629 = vmatprep.subr.mxu0 0.0
    %5630 = vmatpush1.msra.mxu0 0.0
    %5631 = vmatprep.subr.mxu0 0.0
    %5632 = vmatpush1.msra.mxu0 0.0
    %5633 = vmatprep.subr.mxu0 0.0
    %5634 = vmatpush1.msra.mxu0 0.0
    %5635 = vmatprep.subr.mxu0 0.0
    %5636 = vmatpush1.msra.mxu0 0.0
    %5637 = vmatprep.subr.mxu0 0.0
    %5638 = vmatpush1.msra.mxu0 0.0
    %5639 = vmatprep.subr.mxu0 0.0
    %5640 = vmatpush1.msra.mxu0 0.0
    %5641 = vmatprep.subr.mxu0 0.0
    %5642 = vmatpush1.msra.mxu0 0.0
    %5643 = vmatprep.subr.mxu0 0.0
    %5644 = vmatpush1.msra.mxu0 0.0
    %5645 = vmatprep.subr.mxu0 0.0
    %5646 = vmatpush1.msra.mxu0 0.0
    %5647 = vmatprep.subr.mxu0 0.0
    %5648 = vmatpush1.msra.mxu0 0.0
    %5649 = vmatprep.subr.mxu0 0.0
    %5650 = vmatpush1.msra.mxu0 0.0
    %5651 = vmatprep.subr.mxu0 0.0
    %5652 = vmatpush1.msra.mxu0 0.0
    %5653 = vmatprep.subr.mxu0 0.0
    %5654 = vmatpush1.msra.mxu0 0.0
    %5655 = vmatprep.subr.mxu0 0.0
    %5656 = vmatpush1.msra.mxu0 0.0
    %5657 = vmatprep.mubr.f32.mxu0 0.0
    %v5658 = vand.u32 %v5401, 4294901760
    %5659 = vmatmul.mubr.f32.gmra.mrb[0].mxu0 %v5658
    %v5660 = vpop.f32.mrb[0].mxu0
    %v5661 = vadd.f32 %v5510, %v5660
    %v5662 = vpop.f32.mrb[0].mxu0
    %5663 = vdwg.mxu0
    %5664 = vmatprep.subr.mxu0 0.0
    %v5665 = vand.u32 %v5402, 4294901760
    %v5666 = vsub.f32 %v5402, %v5665
    %5667 = vmatpush1.msra.mxu0 %v5666
    %5668 = vmatprep.subr.mxu0 0.0
    %v5669 = vand.u32 %v5403, 4294901760
    %v5670 = vsub.f32 %v5403, %v5669
    %5671 = vmatpush1.msra.mxu0 %v5670
    %5672 = vmatprep.subr.mxu0 0.0
    %v5673 = vand.u32 %v5404, 4294901760
    %v5674 = vsub.f32 %v5404, %v5673
    %5675 = vmatpush1.msra.mxu0 %v5674
    %5676 = vmatprep.subr.mxu0 0.0
    %v5677 = vand.u32 %v5405, 4294901760
    %v5678 = vsub.f32 %v5405, %v5677
    %5679 = vmatpush1.msra.mxu0 %v5678
    %5680 = vmatprep.subr.mxu0 0.0
    %v5681 = vand.u32 %v5406, 4294901760
    %v5682 = vsub.f32 %v5406, %v5681
    %5683 = vmatpush1.msra.mxu0 %v5682
    %5684 = vmatprep.subr.mxu0 0.0
    %v5685 = vand.u32 %v5407, 4294901760
    %v5686 = vsub.f32 %v5407, %v5685
    %5687 = vmatpush1.msra.mxu0 %v5686
    %5688 = vmatprep.subr.mxu0 0.0
    %v5689 = vand.u32 %v5408, 4294901760
    %v5690 = vsub.f32 %v5408, %v5689
    %5691 = vmatpush1.msra.mxu0 %v5690
    %5692 = vmatprep.subr.mxu0 0.0
    %v5693 = vand.u32 %v5409, 4294901760
    %v5694 = vsub.f32 %v5409, %v5693
    %5695 = vmatpush1.msra.mxu0 %v5694
    %5696 = vmatprep.subr.mxu0 0.0
    %v5697 = vand.u32 %v5410, 4294901760
    %v5698 = vsub.f32 %v5410, %v5697
    %5699 = vmatpush1.msra.mxu0 %v5698
    %5700 = vmatprep.subr.mxu0 0.0
    %v5701 = vand.u32 %v5411, 4294901760
    %v5702 = vsub.f32 %v5411, %v5701
    %5703 = vmatpush1.msra.mxu0 %v5702
    %5704 = vmatprep.subr.mxu0 0.0
    %v5705 = vand.u32 %v5412, 4294901760
    %v5706 = vsub.f32 %v5412, %v5705
    %5707 = vmatpush1.msra.mxu0 %v5706
    %5708 = vmatprep.subr.mxu0 0.0
    %v5709 = vand.u32 %v5413, 4294901760
    %v5710 = vsub.f32 %v5413, %v5709
    %5711 = vmatpush1.msra.mxu0 %v5710
    %5712 = vmatprep.subr.mxu0 0.0
    %v5713 = vand.u32 %v5414, 4294901760
    %v5714 = vsub.f32 %v5414, %v5713
    %5715 = vmatpush1.msra.mxu0 %v5714
    %5716 = vmatprep.subr.mxu0 0.0
    %v5717 = vand.u32 %v5415, 4294901760
    %v5718 = vsub.f32 %v5415, %v5717
    %5719 = vmatpush1.msra.mxu0 %v5718
    %5720 = vmatprep.subr.mxu0 0.0
    %v5721 = vand.u32 %v5416, 4294901760
    %v5722 = vsub.f32 %v5416, %v5721
    %5723 = vmatpush1.msra.mxu0 %v5722
    %5724 = vmatprep.subr.mxu0 0.0
    %v5725 = vand.u32 %v5417, 4294901760
    %v5726 = vsub.f32 %v5417, %v5725
    %5727 = vmatpush1.msra.mxu0 %v5726
    %5728 = vmatprep.subr.mxu0 0.0
    %5729 = vmatpush1.msra.mxu0 0.0
    %5730 = vmatprep.subr.mxu0 0.0
    %5731 = vmatpush1.msra.mxu0 0.0
    %5732 = vmatprep.subr.mxu0 0.0
    %5733 = vmatpush1.msra.mxu0 0.0
    %5734 = vmatprep.subr.mxu0 0.0
    %5735 = vmatpush1.msra.mxu0 0.0
    %5736 = vmatprep.subr.mxu0 0.0
    %5737 = vmatpush1.msra.mxu0 0.0
    %5738 = vmatprep.subr.mxu0 0.0
    %5739 = vmatpush1.msra.mxu0 0.0
    %5740 = vmatprep.subr.mxu0 0.0
    %5741 = vmatpush1.msra.mxu0 0.0
    %5742 = vmatprep.subr.mxu0 0.0
    %5743 = vmatpush1.msra.mxu0 0.0
    %5744 = vmatprep.subr.mxu0 0.0
    %5745 = vmatpush1.msra.mxu0 0.0
    %5746 = vmatprep.subr.mxu0 0.0
    %5747 = vmatpush1.msra.mxu0 0.0
    %5748 = vmatprep.subr.mxu0 0.0
    %5749 = vmatpush1.msra.mxu0 0.0
    %5750 = vmatprep.subr.mxu0 0.0
    %5751 = vmatpush1.msra.mxu0 0.0
    %5752 = vmatprep.subr.mxu0 0.0
    %5753 = vmatpush1.msra.mxu0 0.0
    %5754 = vmatprep.subr.mxu0 0.0
    %5755 = vmatpush1.msra.mxu0 0.0
    %5756 = vmatprep.subr.mxu0 0.0
    %5757 = vmatpush1.msra.mxu0 0.0
    %5758 = vmatprep.subr.mxu0 0.0
    %5759 = vmatpush1.msra.mxu0 0.0
    %5760 = vmatprep.mubr.f32.mxu0 0.0
    %v5761 = vand.u32 %v5401, 4294901760
    %v5762 = vsub.f32 %v5401, %v5761
    %5763 = vmatmul.mubr.f32.gmra.mrb[0].mxu0 %v5762
    %v5764 = vpop.f32.mrb[0].mxu0
    %v5765 = vadd.f32 %v5661, %v5764
    %v5766 = vpop.f32.mrb[0].mxu0
    %5767 = vdwg.mxu0
    %5768 = vmatprep.subr.mxu0 0.0
    %v5769 = vand.u32 %v5402, 4294901760
    %5770 = vmatpush1.msra.mxu0 %v5769
    %5771 = vmatprep.subr.mxu0 0.0
    %v5772 = vand.u32 %v5403, 4294901760
    %5773 = vmatpush1.msra.mxu0 %v5772
    %5774 = vmatprep.subr.mxu0 0.0
    %v5775 = vand.u32 %v5404, 4294901760
    %5776 = vmatpush1.msra.mxu0 %v5775
    %5777 = vmatprep.subr.mxu0 0.0
    %v5778 = vand.u32 %v5405, 4294901760
    %5779 = vmatpush1.msra.mxu0 %v5778
    %5780 = vmatprep.subr.mxu0 0.0
    %v5781 = vand.u32 %v5406, 4294901760
    %5782 = vmatpush1.msra.mxu0 %v5781
    %5783 = vmatprep.subr.mxu0 0.0
    %v5784 = vand.u32 %v5407, 4294901760
    %5785 = vmatpush1.msra.mxu0 %v5784
    %5786 = vmatprep.subr.mxu0 0.0
    %v5787 = vand.u32 %v5408, 4294901760
    %5788 = vmatpush1.msra.mxu0 %v5787
    %5789 = vmatprep.subr.mxu0 0.0
    %v5790 = vand.u32 %v5409, 4294901760
    %5791 = vmatpush1.msra.mxu0 %v5790
    %5792 = vmatprep.subr.mxu0 0.0
    %v5793 = vand.u32 %v5410, 4294901760
    %5794 = vmatpush1.msra.mxu0 %v5793
    %5795 = vmatprep.subr.mxu0 0.0
    %v5796 = vand.u32 %v5411, 4294901760
    %5797 = vmatpush1.msra.mxu0 %v5796
    %5798 = vmatprep.subr.mxu0 0.0
    %v5799 = vand.u32 %v5412, 4294901760
    %5800 = vmatpush1.msra.mxu0 %v5799
    %5801 = vmatprep.subr.mxu0 0.0
    %v5802 = vand.u32 %v5413, 4294901760
    %5803 = vmatpush1.msra.mxu0 %v5802
    %5804 = vmatprep.subr.mxu0 0.0
    %v5805 = vand.u32 %v5414, 4294901760
    %5806 = vmatpush1.msra.mxu0 %v5805
    %5807 = vmatprep.subr.mxu0 0.0
    %v5808 = vand.u32 %v5415, 4294901760
    %5809 = vmatpush1.msra.mxu0 %v5808
    %5810 = vmatprep.subr.mxu0 0.0
    %v5811 = vand.u32 %v5416, 4294901760
    %5812 = vmatpush1.msra.mxu0 %v5811
    %5813 = vmatprep.subr.mxu0 0.0
    %v5814 = vand.u32 %v5417, 4294901760
    %5815 = vmatpush1.msra.mxu0 %v5814
    %5816 = vmatprep.subr.mxu0 0.0
    %5817 = vmatpush1.msra.mxu0 0.0
    %5818 = vmatprep.subr.mxu0 0.0
    %5819 = vmatpush1.msra.mxu0 0.0
    %5820 = vmatprep.subr.mxu0 0.0
    %5821 = vmatpush1.msra.mxu0 0.0
    %5822 = vmatprep.subr.mxu0 0.0
    %5823 = vmatpush1.msra.mxu0 0.0
    %5824 = vmatprep.subr.mxu0 0.0
    %5825 = vmatpush1.msra.mxu0 0.0
    %5826 = vmatprep.subr.mxu0 0.0
    %5827 = vmatpush1.msra.mxu0 0.0
    %5828 = vmatprep.subr.mxu0 0.0
    %5829 = vmatpush1.msra.mxu0 0.0
    %5830 = vmatprep.subr.mxu0 0.0
    %5831 = vmatpush1.msra.mxu0 0.0
    %5832 = vmatprep.subr.mxu0 0.0
    %5833 = vmatpush1.msra.mxu0 0.0
    %5834 = vmatprep.subr.mxu0 0.0
    %5835 = vmatpush1.msra.mxu0 0.0
    %5836 = vmatprep.subr.mxu0 0.0
    %5837 = vmatpush1.msra.mxu0 0.0
    %5838 = vmatprep.subr.mxu0 0.0
    %5839 = vmatpush1.msra.mxu0 0.0
    %5840 = vmatprep.subr.mxu0 0.0
    %5841 = vmatpush1.msra.mxu0 0.0
    %5842 = vmatprep.subr.mxu0 0.0
    %5843 = vmatpush1.msra.mxu0 0.0
    %5844 = vmatprep.subr.mxu0 0.0
    %5845 = vmatpush1.msra.mxu0 0.0
    %5846 = vmatprep.subr.mxu0 0.0
    %5847 = vmatpush1.msra.mxu0 0.0
    %5848 = vmatprep.mubr.f32.mxu0 0.0
    %v5849 = vand.u32 %v5401, 4294901760
    %v5850 = vsub.f32 %v5401, %v5849
    %v5851 = vand.u32 %v5850, 4294901760
    %5852 = vmatmul.mubr.f32.gmra.mrb[0].mxu0 %v5851
    %v5853 = vpop.f32.mrb[0].mxu0
    %v5854 = vadd.f32 %v5765, %v5853
    %v5855 = vpop.f32.mrb[0].mxu0
    %5856 = vdwg.mxu0
    %5857 = vmatprep.subr.mxu0 0.0
    %v5858 = vand.u32 %v5402, 4294901760
    %v5859 = vsub.f32 %v5402, %v5858
    %v5860 = vand.u32 %v5859, 4294901760
    %5861 = vmatpush1.msra.mxu0 %v5860
    %5862 = vmatprep.subr.mxu0 0.0
    %v5863 = vand.u32 %v5403, 4294901760
    %v5864 = vsub.f32 %v5403, %v5863
    %v5865 = vand.u32 %v5864, 4294901760
    %5866 = vmatpush1.msra.mxu0 %v5865
    %5867 = vmatprep.subr.mxu0 0.0
    %v5868 = vand.u32 %v5404, 4294901760
    %v5869 = vsub.f32 %v5404, %v5868
    %v5870 = vand.u32 %v5869, 4294901760
    %5871 = vmatpush1.msra.mxu0 %v5870
    %5872 = vmatprep.subr.mxu0 0.0
    %v5873 = vand.u32 %v5405, 4294901760
    %v5874 = vsub.f32 %v5405, %v5873
    %v5875 = vand.u32 %v5874, 4294901760
    %5876 = vmatpush1.msra.mxu0 %v5875
    %5877 = vmatprep.subr.mxu0 0.0
    %v5878 = vand.u32 %v5406, 4294901760
    %v5879 = vsub.f32 %v5406, %v5878
    %v5880 = vand.u32 %v5879, 4294901760
    %5881 = vmatpush1.msra.mxu0 %v5880
    %5882 = vmatprep.subr.mxu0 0.0
    %v5883 = vand.u32 %v5407, 4294901760
    %v5884 = vsub.f32 %v5407, %v5883
    %v5885 = vand.u32 %v5884, 4294901760
    %5886 = vmatpush1.msra.mxu0 %v5885
    %5887 = vmatprep.subr.mxu0 0.0
    %v5888 = vand.u32 %v5408, 4294901760
    %v5889 = vsub.f32 %v5408, %v5888
    %v5890 = vand.u32 %v5889, 4294901760
    %5891 = vmatpush1.msra.mxu0 %v5890
    %5892 = vmatprep.subr.mxu0 0.0
    %v5893 = vand.u32 %v5409, 4294901760
    %v5894 = vsub.f32 %v5409, %v5893
    %v5895 = vand.u32 %v5894, 4294901760
    %5896 = vmatpush1.msra.mxu0 %v5895
    %5897 = vmatprep.subr.mxu0 0.0
    %v5898 = vand.u32 %v5410, 4294901760
    %v5899 = vsub.f32 %v5410, %v5898
    %v5900 = vand.u32 %v5899, 4294901760
    %5901 = vmatpush1.msra.mxu0 %v5900
    %5902 = vmatprep.subr.mxu0 0.0
    %v5903 = vand.u32 %v5411, 4294901760
    %v5904 = vsub.f32 %v5411, %v5903
    %v5905 = vand.u32 %v5904, 4294901760
    %5906 = vmatpush1.msra.mxu0 %v5905
    %5907 = vmatprep.subr.mxu0 0.0
    %v5908 = vand.u32 %v5412, 4294901760
    %v5909 = vsub.f32 %v5412, %v5908
    %v5910 = vand.u32 %v5909, 4294901760
    %5911 = vmatpush1.msra.mxu0 %v5910
    %5912 = vmatprep.subr.mxu0 0.0
    %v5913 = vand.u32 %v5413, 4294901760
    %v5914 = vsub.f32 %v5413, %v5913
    %v5915 = vand.u32 %v5914, 4294901760
    %5916 = vmatpush1.msra.mxu0 %v5915
    %5917 = vmatprep.subr.mxu0 0.0
    %v5918 = vand.u32 %v5414, 4294901760
    %v5919 = vsub.f32 %v5414, %v5918
    %v5920 = vand.u32 %v5919, 4294901760
    %5921 = vmatpush1.msra.mxu0 %v5920
    %5922 = vmatprep.subr.mxu0 0.0
    %v5923 = vand.u32 %v5415, 4294901760
    %v5924 = vsub.f32 %v5415, %v5923
    %v5925 = vand.u32 %v5924, 4294901760
    %5926 = vmatpush1.msra.mxu0 %v5925
    %5927 = vmatprep.subr.mxu0 0.0
    %v5928 = vand.u32 %v5416, 4294901760
    %v5929 = vsub.f32 %v5416, %v5928
    %v5930 = vand.u32 %v5929, 4294901760
    %5931 = vmatpush1.msra.mxu0 %v5930
    %5932 = vmatprep.subr.mxu0 0.0
    %v5933 = vand.u32 %v5417, 4294901760
    %v5934 = vsub.f32 %v5417, %v5933
    %v5935 = vand.u32 %v5934, 4294901760
    %5936 = vmatpush1.msra.mxu0 %v5935
    %5937 = vmatprep.subr.mxu0 0.0
    %5938 = vmatpush1.msra.mxu0 0.0
    %5939 = vmatprep.subr.mxu0 0.0
    %5940 = vmatpush1.msra.mxu0 0.0
    %5941 = vmatprep.subr.mxu0 0.0
    %5942 = vmatpush1.msra.mxu0 0.0
    %5943 = vmatprep.subr.mxu0 0.0
    %5944 = vmatpush1.msra.mxu0 0.0
    %5945 = vmatprep.subr.mxu0 0.0
    %5946 = vmatpush1.msra.mxu0 0.0
    %5947 = vmatprep.subr.mxu0 0.0
    %5948 = vmatpush1.msra.mxu0 0.0
    %5949 = vmatprep.subr.mxu0 0.0
    %5950 = vmatpush1.msra.mxu0 0.0
    %5951 = vmatprep.subr.mxu0 0.0
    %5952 = vmatpush1.msra.mxu0 0.0
    %5953 = vmatprep.subr.mxu0 0.0
    %5954 = vmatpush1.msra.mxu0 0.0
    %5955 = vmatprep.subr.mxu0 0.0
    %5956 = vmatpush1.msra.mxu0 0.0
    %5957 = vmatprep.subr.mxu0 0.0
    %5958 = vmatpush1.msra.mxu0 0.0
    %5959 = vmatprep.subr.mxu0 0.0
    %5960 = vmatpush1.msra.mxu0 0.0
    %5961 = vmatprep.subr.mxu0 0.0
    %5962 = vmatpush1.msra.mxu0 0.0
    %5963 = vmatprep.subr.mxu0 0.0
    %5964 = vmatpush1.msra.mxu0 0.0
    %5965 = vmatprep.subr.mxu0 0.0
    %5966 = vmatpush1.msra.mxu0 0.0
    %5967 = vmatprep.subr.mxu0 0.0
    %5968 = vmatpush1.msra.mxu0 0.0
    %5969 = vmatprep.mubr.f32.mxu0 0.0
    %v5970 = vand.u32 %v5401, 4294901760
    %5971 = vmatmul.mubr.f32.gmra.mrb[0].mxu0 %v5970
    %v5972 = vpop.f32.mrb[0].mxu0
    %v5973 = vadd.f32 %v5854, %v5972
    %v5974 = vpop.f32.mrb[0].mxu0
    %5975 = vdwg.mxu0
    %5976 = vmatprep.subr.mxu0 0.0
    %v5977 = vand.u32 %v5402, 4294901760
    %5978 = vmatpush1.msra.mxu0 %v5977
    %5979 = vmatprep.subr.mxu0 0.0
    %v5980 = vand.u32 %v5403, 4294901760
    %5981 = vmatpush1.msra.mxu0 %v5980
    %5982 = vmatprep.subr.mxu0 0.0
    %v5983 = vand.u32 %v5404, 4294901760
    %5984 = vmatpush1.msra.mxu0 %v5983
    %5985 = vmatprep.subr.mxu0 0.0
    %v5986 = vand.u32 %v5405, 4294901760
    %5987 = vmatpush1.msra.mxu0 %v5986
    %5988 = vmatprep.subr.mxu0 0.0
    %v5989 = vand.u32 %v5406, 4294901760
    %5990 = vmatpush1.msra.mxu0 %v5989
    %5991 = vmatprep.subr.mxu0 0.0
    %v5992 = vand.u32 %v5407, 4294901760
    %5993 = vmatpush1.msra.mxu0 %v5992
    %5994 = vmatprep.subr.mxu0 0.0
    %v5995 = vand.u32 %v5408, 4294901760
    %5996 = vmatpush1.msra.mxu0 %v5995
    %5997 = vmatprep.subr.mxu0 0.0
    %v5998 = vand.u32 %v5409, 4294901760
    %5999 = vmatpush1.msra.mxu0 %v5998
    %6000 = vmatprep.subr.mxu0 0.0
    %v6001 = vand.u32 %v5410, 4294901760
    %6002 = vmatpush1.msra.mxu0 %v6001
    %6003 = vmatprep.subr.mxu0 0.0
    %v6004 = vand.u32 %v5411, 4294901760
    %6005 = vmatpush1.msra.mxu0 %v6004
    %6006 = vmatprep.subr.mxu0 0.0
    %v6007 = vand.u32 %v5412, 4294901760
    %6008 = vmatpush1.msra.mxu0 %v6007
    %6009 = vmatprep.subr.mxu0 0.0
    %v6010 = vand.u32 %v5413, 4294901760
    %6011 = vmatpush1.msra.mxu0 %v6010
    %6012 = vmatprep.subr.mxu0 0.0
    %v6013 = vand.u32 %v5414, 4294901760
    %6014 = vmatpush1.msra.mxu0 %v6013
    %6015 = vmatprep.subr.mxu0 0.0
    %v6016 = vand.u32 %v5415, 4294901760
    %6017 = vmatpush1.msra.mxu0 %v6016
    %6018 = vmatprep.subr.mxu0 0.0
    %v6019 = vand.u32 %v5416, 4294901760
    %6020 = vmatpush1.msra.mxu0 %v6019
    %6021 = vmatprep.subr.mxu0 0.0
    %v6022 = vand.u32 %v5417, 4294901760
    %6023 = vmatpush1.msra.mxu0 %v6022
    %6024 = vmatprep.subr.mxu0 0.0
    %6025 = vmatpush1.msra.mxu0 0.0
    %6026 = vmatprep.subr.mxu0 0.0
    %6027 = vmatpush1.msra.mxu0 0.0
    %6028 = vmatprep.subr.mxu0 0.0
    %6029 = vmatpush1.msra.mxu0 0.0
    %6030 = vmatprep.subr.mxu0 0.0
    %6031 = vmatpush1.msra.mxu0 0.0
    %6032 = vmatprep.subr.mxu0 0.0
    %6033 = vmatpush1.msra.mxu0 0.0
    %6034 = vmatprep.subr.mxu0 0.0
    %6035 = vmatpush1.msra.mxu0 0.0
    %6036 = vmatprep.subr.mxu0 0.0
    %6037 = vmatpush1.msra.mxu0 0.0
    %6038 = vmatprep.subr.mxu0 0.0
    %6039 = vmatpush1.msra.mxu0 0.0
    %6040 = vmatprep.subr.mxu0 0.0
    %6041 = vmatpush1.msra.mxu0 0.0
    %6042 = vmatprep.subr.mxu0 0.0
    %6043 = vmatpush1.msra.mxu0 0.0
    %6044 = vmatprep.subr.mxu0 0.0
    %6045 = vmatpush1.msra.mxu0 0.0
    %6046 = vmatprep.subr.mxu0 0.0
    %6047 = vmatpush1.msra.mxu0 0.0
    %6048 = vmatprep.subr.mxu0 0.0
    %6049 = vmatpush1.msra.mxu0 0.0
    %6050 = vmatprep.subr.mxu0 0.0
    %6051 = vmatpush1.msra.mxu0 0.0
    %6052 = vmatprep.subr.mxu0 0.0
    %6053 = vmatpush1.msra.mxu0 0.0
    %6054 = vmatprep.subr.mxu0 0.0
    %6055 = vmatpush1.msra.mxu0 0.0
    %6056 = vmatprep.mubr.f32.mxu0 0.0
    %v6057 = vand.u32 %v5401, 4294901760
    %6058 = vmatmul.mubr.f32.gmra.mrb[0].mxu0 %v6057
    %v6059 = vpop.f32.mrb[0].mxu0
    %v6060 = vadd.f32 %v5973, %v6059
    %v6061 = vpop.f32.mrb[0].mxu0
    %6062 = vdwg.mxu0
    %6063 = vst [vmem:[#allocation8] sm:$0xff] %v6060
    // Predicated region
    $region34: #{model_nn_forward.1} parent=1 // pred_check
      _
    $region35: #{model_nn_forward.1} parent=1 // pred_check_branch
      %6065 = sbr.rel (0) target = $region37
    $region36: #{model_nn_forward.1} parent=1 // pred_region
      %s6067 = ssub.s32 128, 128
      %6068 = vsyncadd [#allocation4], %s6067
      %s6070 = sshll.u32 [#allocation8], 4
      %s6071 = int_to_ptr.vmem [resolvable:$true] %s6070
      %6073 = dma.vmem_to_hbm [thread:$0]  %s6071, 128, %s5, [#allocation4]
    $region37: #{model_nn_forward.1} parent=1 // pred_fallthru
      _
    // Predicated region
    $region38: #{model_nn_forward.1} parent=1 // pred_check
      _
    $region39: #{model_nn_forward.1} parent=1 // pred_check_branch
      %6075 = sbr.rel (0) target = $region41
    $region40: #{model_nn_forward.1} parent=1 // pred_region
      %6076 = dma.done [#allocation4], 128
    $region41: #{model_nn_forward.1} parent=1 // pred_fallthru
      _
    %6077 = vsyncpa [#allocation3], 1
    %6078 = vsyncpa [#allocation6], 1
    %6079 = vsyncpa [#allocation4], 1

</llo_original>
